<compile_context>
chip_gen: v7x
topology: tpu7x:2x2x1
jax: 0.10.0
libtpu: 0.0.40
codegen_flags: <defaults>
</compile_context>

<pallas_src>
import numpy as np
import jax
import jax.numpy as jnp
from jax.experimental import pallas as pl
from jax.experimental.pallas import tpu as pltpu

# STBlock(in_channels, n_units_gc, n_heads, n_units_lstm, sequence_len)
N_NODES   = 16          # number of graph nodes (== GRU batch)
IN_CH     = 4           # in_channels
C_GC      = 8           # n_units_gc
N_HEADS   = 2           # n_heads
HID       = 32          # n_units_lstm
SEQ_LEN   = 8           # sequence_len
GAT_OUT   = N_HEADS * C_GC            # 16
RNN_IN    = IN_CH + GAT_OUT           # 20
TN        = SEQ_LEN * N_NODES         # 128
NEG_SLOPE = 0.2                       # GATConv default LeakyReLU slope

# fused projection lane layout: [ GRU x-input (96) | GAT features (16) | dst attn (2) | pad ]
GI_W   = 3 * HID                      # 96
XP_OFF = GI_W                         # 96
AD_OFF = XP_OFF + GAT_OUT             # 112
WAUG_W = 128

# coalesced weight-slab row layout (96 columns)
R_WIHG    = 0
R_WHH     = R_WIHG + GAT_OUT          # 16
R_BHH     = R_WHH + HID               # 48
R_BGAT    = R_BHH + 1                 # 49
R_WSRC    = R_BGAT + 1                # 50
SLAB_ROWS = R_WSRC + N_HEADS          # 52


def st_block_kernel(xaug_ref, xT_ref, adjb_ref, waug_ref, slab_ref, out_ref, g_scr):
    # ---- one fused projection over all T*N rows (bias folded via the ones column) ----
    P = jnp.dot(xaug_ref[...], waug_ref[...], preferred_element_type=jnp.float32)   # (T*N, 128)
    AS = jnp.dot(slab_ref[R_WSRC:R_WSRC + N_HEADS, 0:IN_CH], xT_ref[...],
                 preferred_element_type=jnp.float32)                                # (H, T*N)

    # ---- GAT: all timesteps batched per head via block-diagonal (per-time) masking ----
    for hd in range(N_HEADS):
        raw = P[:, AD_OFF + hd:AD_OFF + hd + 1] + AS[hd:hd + 1, :]     # (T*N, T*N)  [dst, src]
        raw = jnp.maximum(raw, NEG_SLOPE * raw)                        # LeakyReLU(0.2)
        logit = raw + adjb_ref[...]                                    # mask off-edge & cross-time
        m = jnp.max(logit, axis=-1, keepdims=True)
        p = jnp.exp(logit - m)
        inv = pl.reciprocal(jnp.sum(p, axis=-1, keepdims=True), approx=True)
        attn = p * inv                                                 # batched softmax over src
        xp_h = P[:, XP_OFF + hd * C_GC:XP_OFF + (hd + 1) * C_GC]       # (T*N, C_gc)
        agg = jnp.dot(attn, xp_h, preferred_element_type=jnp.float32)  # (T*N, C_gc)
        bg = slab_ref[R_BGAT:R_BGAT + 1, hd * C_GC:(hd + 1) * C_GC]    # (1, C_gc)
        g_scr[:, hd * C_GC:(hd + 1) * C_GC] = jnp.maximum(agg + bg, 0.0)   # bias + ReLU -> VMEM

    # ---- hoist the GAT -> GRU input projection out of the recurrence (one matmul over all T) ----
    GI = P[:, 0:GI_W] + jnp.dot(g_scr[...], slab_ref[R_WIHG:R_WIHG + GAT_OUT, :],
                                preferred_element_type=jnp.float32)    # (T*N, 3*HID)

    whh = slab_ref[R_WHH:R_WHH + HID, :]                               # (HID, 3*HID), hoisted
    bhh = slab_ref[R_BHH:R_BHH + 1, :]                                 # (1, 3*HID)

    # ---- GRU recurrence (PyTorch gate order: reset, update, new); only h@whh + gates per step ----
    h = jnp.zeros((N_NODES, HID), jnp.float32)
    hs = []
    for t in range(SEQ_LEN):                                           # statically unrolled T=8
        gi = GI[t * N_NODES:(t + 1) * N_NODES, :]                      # (N, 3*HID)
        gh = jnp.dot(h, whh, preferred_element_type=jnp.float32) + bhh
        r = jax.nn.sigmoid(gi[:, 0:HID]           + gh[:, 0:HID])
        z = jax.nn.sigmoid(gi[:, HID:2 * HID]     + gh[:, HID:2 * HID])
        n = jnp.tanh(      gi[:, 2 * HID:3 * HID] + r * gh[:, 2 * HID:3 * HID])
        h = (1.0 - z) * n + z * h
        hs.append(h)

    out_ref[...] = jnp.concatenate(hs, axis=1)                         # single lane-dense (N, T*HID) store


def st_block_forward(x, adj, params):
    """x: (N, IN_CH, SEQ_LEN) float32 (PyTorch data.x layout). Returns (rnn_out [N,T,HID], hid [N,HID])."""
    wgat, asrc, adst, bgat = params["wgat"], params["asrc"], params["adst"], params["bgat"]
    w_ih, w_hh, b_ih, b_hh = params["w_ih"], params["w_hh"], params["b_ih"], params["b_hh"]
    N, C_in, T = x.shape

    # ---- glue: layout flattening + exact parameter repacking (one-time, tiny) ----
    x_flat  = jnp.transpose(x, (2, 0, 1)).reshape(T * N, C_in)          # row t*N+n = x[n,:,t]
    x_aug   = jnp.concatenate([x_flat, jnp.ones((T * N, 1), jnp.float32)], axis=1)   # (T*N, C_in+1)
    xT_flat = jnp.transpose(x, (1, 2, 0)).reshape(C_in, T * N)          # col t*N+n = x[n,:,t]

    # block-diagonal (per-time) additive adjacency bias: 0 on same-time edges, -1e30 elsewhere
    edge = (adj > 0).astype(jnp.float32)                                # (N, N)
    on_diag = jnp.kron(jnp.eye(T, dtype=jnp.float32), edge)             # (T*N, T*N)
    adjb_big = jnp.where(on_diag > 0, 0.0, -1e30).astype(jnp.float32)

    wgat_heads = wgat.reshape(C_in, N_HEADS, C_GC)
    wsrc = jnp.einsum("chf,hf->hc", wgat_heads, asrc)                   # (H, C_in)
    wdst = jnp.einsum("chf,hf->ch", wgat_heads, adst)                   # (C_in, H)
    wih_t = jnp.transpose(w_ih)                                         # (RNN_IN, 3*HID)
    wihx, wihg = wih_t[:C_in, :], wih_t[C_in:, :]
    whh_t = jnp.transpose(w_hh)                                         # (HID, 3*HID)

    # fused X-projection weight: [ wihx | wgat | wdst | pad ]; bias row goes with the ones column
    waug = jnp.zeros((C_in + 1, WAUG_W), jnp.float32)
    waug = waug.at[:C_in, 0:GI_W].set(wihx)
    waug = waug.at[C_in, 0:GI_W].set(b_ih)
    waug = waug.at[:C_in, XP_OFF:XP_OFF + GAT_OUT].set(wgat)
    waug = waug.at[:C_in, AD_OFF:AD_OFF + N_HEADS].set(wdst)

    # coalesced weight slab: [ wihg ; whh ; bhh ; bgat(pad) ; wsrc(pad) ]
    slab = jnp.zeros((SLAB_ROWS, GI_W), jnp.float32)
    slab = slab.at[R_WIHG:R_WIHG + GAT_OUT, :].set(wihg)
    slab = slab.at[R_WHH:R_WHH + HID, :].set(whh_t)
    slab = slab.at[R_BHH, :].set(b_hh)
    slab = slab.at[R_BGAT, 0:GAT_OUT].set(bgat)
    slab = slab.at[R_WSRC:R_WSRC + N_HEADS, 0:C_in].set(wsrc)

    grid_spec = pltpu.PrefetchScalarGridSpec(
        num_scalar_prefetch=0,
        grid=(1,),                                   # single invocation; time loop is in-kernel
        in_specs=[
            pl.BlockSpec((T * N, C_in + 1),   lambda i: (0, 0)),
            pl.BlockSpec((C_in, T * N),       lambda i: (0, 0)),
            pl.BlockSpec((T * N, T * N),      lambda i: (0, 0)),
            pl.BlockSpec((C_in + 1, WAUG_W),  lambda i: (0, 0)),
            pl.BlockSpec((SLAB_ROWS, GI_W),   lambda i: (0, 0)),
        ],
        out_specs=pl.BlockSpec((N, T * HID), lambda i: (0, 0)),
        scratch_shapes=[pltpu.VMEM((T * N, GAT_OUT), jnp.float32)],
    )
    rnn_slab = pl.pallas_call(
        st_block_kernel,
        out_shape=jax.ShapeDtypeStruct((N, T * HID), jnp.float32),
        grid_spec=grid_spec,
        compiler_params=pltpu.CompilerParams(dimension_semantics=("arbitrary",)),
    )(x_aug, xT_flat, adjb_big, waug, slab)
    # TODO(synk): for a batch of independent graphs, add a leading "parallel" grid axis so the
    # second TensorCore on v7x is used; a single STBlock forward has no batch axis to split.

    rnn_out = rnn_slab.reshape(N, T, HID)            # free reshape, no transpose
    hid = rnn_out[:, -1, :]                          # single-layer unidirectional GRU
    return rnn_out, hid


def reference_forward(x, adj, params):
    """Pure-JAX mirror of STBlock.forward (GATConv per step + ReLU + concat + GRU)."""
    wgat, asrc, adst, bgat = params["wgat"], params["asrc"], params["adst"], params["bgat"]
    w_ih, w_hh, b_ih, b_hh = params["w_ih"], params["w_hh"], params["b_ih"], params["b_hh"]
    N, C_in, T = x.shape
    gat_all = []
    for t in range(T):
        x_t = x[:, :, t]
        heads = []
        for h in range(N_HEADS):
            xp  = x_t @ wgat[:, h * C_GC:(h + 1) * C_GC]
            a_s = jnp.sum(xp * asrc[h], axis=-1)
            a_d = jnp.sum(xp * adst[h], axis=-1)
            logit = a_d[:, None] + a_s[None, :]
            logit = jnp.where(logit > 0, logit, NEG_SLOPE * logit)
            logit = jnp.where(adj > 0, logit, -1e30)
            attn = jax.nn.softmax(logit, axis=-1)
            heads.append(attn @ xp)
        gat_all.append(jnp.maximum(jnp.concatenate(heads, axis=-1) + bgat, 0.0))
    nodes_times = jnp.stack(gat_all, axis=2)                   # (N, GAT_OUT, T)
    concat_x = jnp.concatenate([x, nodes_times], axis=1)       # (N, RNN_IN, T)
    seq = jnp.transpose(concat_x, (0, 2, 1))                   # (N, T, RNN_IN)
    h = jnp.zeros((N, HID), jnp.float32)
    outs = []
    for t in range(T):
        xt = seq[:, t, :]
        gi = xt @ w_ih.T + b_ih
        gh = h @ w_hh.T + b_hh
        r = jax.nn.sigmoid(gi[:, :HID] + gh[:, :HID])
        z = jax.nn.sigmoid(gi[:, HID:2 * HID] + gh[:, HID:2 * HID])
        n = jnp.tanh(gi[:, 2 * HID:] + r * gh[:, 2 * HID:])
        h = (1 - z) * n + z * h
        outs.append(h)
    return jnp.stack(outs, axis=1), h


if __name__ == "__main__":
    key = jax.random.PRNGKey(0)
    ks = jax.random.split(key, 9)
    params = {
        "wgat": 0.3 * jax.random.normal(ks[0], (IN_CH, GAT_OUT), jnp.float32),     # GATConv linear (no bias)
        "asrc": 0.3 * jax.random.normal(ks[1], (N_HEADS, C_GC), jnp.float32),      # att_src
        "adst": 0.3 * jax.random.normal(ks[2], (N_HEADS, C_GC), jnp.float32),      # att_dst
        "bgat": 0.1 * jax.random.normal(ks[3], (GAT_OUT,), jnp.float32),           # GATConv output bias
        "w_ih": 0.3 * jax.random.normal(ks[4], (3 * HID, RNN_IN), jnp.float32),    # GRU weight_ih_l0
        "w_hh": 0.3 * jax.random.normal(ks[5], (3 * HID, HID), jnp.float32),       # GRU weight_hh_l0
        "b_ih": 0.1 * jax.random.normal(ks[6], (3 * HID,), jnp.float32),
        "b_hh": 0.1 * jax.random.normal(ks[7], (3 * HID,), jnp.float32),
    }
    x = jax.random.normal(ks[8], (N_NODES, IN_CH, SEQ_LEN), jnp.float32)           # data.x

    # ring-graph edge_index + self loops, densified to adj[dst, src]
    adj_np = np.zeros((N_NODES, N_NODES), np.float32)
    for i in range(N_NODES):
        j = (i + 1) % N_NODES
        adj_np[j, i] = 1.0
        adj_np[i, j] = 1.0
        adj_np[i, i] = 1.0
    adj = jnp.asarray(adj_np)
    # TODO(synk): data.edge_attr is accepted but unused — GATConv with default edge_dim=None ignores it.

    rnn_out, hid = jax.jit(st_block_forward)(x, adj, params)
    jax.block_until_ready((rnn_out, hid))

    # Gold reference computed at 'highest' matmul precision; the kernel uses the default
    # (bf16-pass) MXU path + approx reciprocal, hence the ~1e-2-class tolerance.
    with jax.default_matmul_precision("highest"):
        ref_rnn, ref_hid = jax.jit(reference_forward)(x, adj, params)
        jax.block_until_ready((ref_rnn, ref_hid))

    np.testing.assert_allclose(np.asarray(rnn_out), np.asarray(ref_rnn), rtol=2e-2, atol=2e-2)
    np.testing.assert_allclose(np.asarray(hid), np.asarray(ref_hid), rtol=2e-2, atol=2e-2)
    print("KERNEL_OK")
</pallas_src>

<mosaic_0001>
module attributes {stable_mosaic.version = 11 : i64} {
  func.func @st_block_kernel(%arg0: i32, %arg1: memref<128x5xf32, #tpu.memory_space<vmem>>, %arg2: memref<4x128xf32, #tpu.memory_space<vmem>>, %arg3: memref<128x128xf32, #tpu.memory_space<vmem>>, %arg4: memref<5x128xf32, #tpu.memory_space<vmem>>, %arg5: memref<52x96xf32, #tpu.memory_space<vmem>>, %arg6: memref<16x256xf32, #tpu.memory_space<vmem>>, %arg7: memref<128x16xf32, #tpu.memory_space<vmem>>) attributes {dimension_semantics = [#tpu.dimension_semantics<arbitrary>], iteration_bounds = array<i64: 1>, scalar_prefetch = 0 : i64, scratch_operands = 1 : i64, tpu.core_type = #tpu.core_type<tc>, window_params = [{pipeline_mode = #tpu.pipeline_mode<synchronous>, transform_indices = @transform_0, window_bounds = array<i64: 128, 5>}, {pipeline_mode = #tpu.pipeline_mode<synchronous>, transform_indices = @transform_1, window_bounds = array<i64: 4, 128>}, {pipeline_mode = #tpu.pipeline_mode<synchronous>, transform_indices = @transform_2, window_bounds = array<i64: 128, 128>}, {pipeline_mode = #tpu.pipeline_mode<synchronous>, transform_indices = @transform_3, window_bounds = array<i64: 5, 128>}, {pipeline_mode = #tpu.pipeline_mode<synchronous>, transform_indices = @transform_4, window_bounds = array<i64: 52, 96>}, {pipeline_mode = #tpu.pipeline_mode<synchronous>, transform_indices = @transform_5, window_bounds = array<i64: 16, 256>}]} {
    %c0 = arith.constant 0 : index
    %c0_0 = arith.constant 0 : index
    %0 = vector.load %arg1[%c0, %c0_0] : memref<128x5xf32, #tpu.memory_space<vmem>>, vector<128x5xf32>
    %c0_1 = arith.constant 0 : index
    %c0_2 = arith.constant 0 : index
    %1 = vector.load %arg4[%c0_1, %c0_2] : memref<5x128xf32, #tpu.memory_space<vmem>>, vector<5x128xf32>
    %cst = arith.constant dense<0.000000e+00> : vector<128x128xf32>
    %2 = tpu.matmul %0, %1, %cst {dimension_numbers = #tpu.dot_dimension_numbers<[1], [0], [0], [1], [0, 0, 1, 1], [], []>} : vector<128x5xf32>, vector<5x128xf32>, vector<128x128xf32> -> vector<128x128xf32>
    %c50 = arith.constant 50 : index
    %c0_3 = arith.constant 0 : index
    %3 = vector.load %arg5[%c50, %c0_3] : memref<52x96xf32, #tpu.memory_space<vmem>>, vector<2x4xf32>
    %c0_4 = arith.constant 0 : index
    %c0_5 = arith.constant 0 : index
    %4 = vector.load %arg2[%c0_4, %c0_5] : memref<4x128xf32, #tpu.memory_space<vmem>>, vector<4x128xf32>
    %cst_6 = arith.constant dense<0.000000e+00> : vector<2x128xf32>
    %5 = tpu.matmul %3, %4, %cst_6 {dimension_numbers = #tpu.dot_dimension_numbers<[1], [0], [0], [1], [0, 0, 1, 1], [], []>} : vector<2x4xf32>, vector<4x128xf32>, vector<2x128xf32> -> vector<2x128xf32>
    %6 = vector.extract_strided_slice %2 {offsets = [0, 112], sizes = [128, 1], strides = [1, 1]} : vector<128x128xf32> to vector<128x1xf32>
    %7 = vector.extract_strided_slice %5 {offsets = [0, 0], sizes = [1, 128], strides = [1, 1]} : vector<2x128xf32> to vector<1x128xf32>
    %8 = vector.broadcast %6 : vector<128x1xf32> to vector<128x128xf32>
    %9 = vector.broadcast %7 : vector<1x128xf32> to vector<128x128xf32>
    %10 = arith.addf %8, %9 : vector<128x128xf32>
    %cst_7 = arith.constant 2.000000e-01 : f32
    %11 = vector.broadcast %cst_7 : f32 to vector<128x128xf32>
    %12 = arith.mulf %11, %10 : vector<128x128xf32>
    %13 = arith.maximumf %10, %12 : vector<128x128xf32>
    %c0_8 = arith.constant 0 : index
    %c0_9 = arith.constant 0 : index
    %14 = vector.load %arg3[%c0_8, %c0_9] : memref<128x128xf32, #tpu.memory_space<vmem>>, vector<128x128xf32>
    %15 = arith.addf %13, %14 : vector<128x128xf32>
    %cst_10 = arith.constant dense<0xFF800000> : vector<128xf32>
    %16 = vector.multi_reduction <maximumf>, %15, %cst_10 [1] : vector<128x128xf32> to vector<128xf32>
    %17 = vector.shape_cast %16 : vector<128xf32> to vector<128x1xf32>
    %18 = vector.broadcast %17 : vector<128x1xf32> to vector<128x128xf32>
    %19 = arith.subf %15, %18 : vector<128x128xf32>
    %20 = math.exp %19 : vector<128x128xf32>
    %cst_11 = arith.constant dense<0.000000e+00> : vector<128xf32>
    %21 = vector.multi_reduction <add>, %20, %cst_11 [1] : vector<128x128xf32> to vector<128xf32>
    %22 = vector.shape_cast %21 : vector<128xf32> to vector<128x1xf32>
    %23 = tpu.reciprocal %22 {approx = true} : vector<128x1xf32> -> vector<128x1xf32>
    %24 = vector.broadcast %23 : vector<128x1xf32> to vector<128x128xf32>
    %25 = arith.mulf %20, %24 : vector<128x128xf32>
    %26 = vector.extract_strided_slice %2 {offsets = [0, 96], sizes = [128, 8], strides = [1, 1]} : vector<128x128xf32> to vector<128x8xf32>
    %cst_12 = arith.constant dense<0.000000e+00> : vector<128x8xf32>
    %27 = tpu.matmul %25, %26, %cst_12 {dimension_numbers = #tpu.dot_dimension_numbers<[1], [0], [0], [1], [0, 0, 1, 1], [], []>} : vector<128x128xf32>, vector<128x8xf32>, vector<128x8xf32> -> vector<128x8xf32>
    %c49 = arith.constant 49 : index
    %c0_13 = arith.constant 0 : index
    %28 = vector.load %arg5[%c49, %c0_13] : memref<52x96xf32, #tpu.memory_space<vmem>>, vector<1x8xf32>
    %29 = vector.broadcast %28 : vector<1x8xf32> to vector<128x8xf32>
    %30 = arith.addf %27, %29 : vector<128x8xf32>
    %cst_14 = arith.constant 0.000000e+00 : f32
    %31 = vector.broadcast %cst_14 : f32 to vector<128x8xf32>
    %32 = arith.maximumf %30, %31 : vector<128x8xf32>
    %c0_15 = arith.constant 0 : index
    %c0_16 = arith.constant 0 : index
    %33 = vector.load %arg7[%c0_15, %c0_16] : memref<128x16xf32, #tpu.memory_space<vmem>>, vector<128x8xf32>
    tpu.vector_store %arg7[%c0_15, %c0_16], %32 {strides = array<i32>} : memref<128x16xf32, #tpu.memory_space<vmem>>, vector<128x8xf32>,
    %34 = vector.extract_strided_slice %2 {offsets = [0, 113], sizes = [128, 1], strides = [1, 1]} : vector<128x128xf32> to vector<128x1xf32>
    %35 = vector.extract_strided_slice %5 {offsets = [1, 0], sizes = [1, 128], strides = [1, 1]} : vector<2x128xf32> to vector<1x128xf32>
    %36 = vector.broadcast %34 : vector<128x1xf32> to vector<128x128xf32>
    %37 = vector.broadcast %35 : vector<1x128xf32> to vector<128x128xf32>
    %38 = arith.addf %36, %37 : vector<128x128xf32>
    %cst_17 = arith.constant 2.000000e-01 : f32
    %39 = vector.broadcast %cst_17 : f32 to vector<128x128xf32>
    %40 = arith.mulf %39, %38 : vector<128x128xf32>
    %41 = arith.maximumf %38, %40 : vector<128x128xf32>
    %c0_18 = arith.constant 0 : index
    %c0_19 = arith.constant 0 : index
    %42 = vector.load %arg3[%c0_18, %c0_19] : memref<128x128xf32, #tpu.memory_space<vmem>>, vector<128x128xf32>
    %43 = arith.addf %41, %42 : vector<128x128xf32>
    %cst_20 = arith.constant dense<0xFF800000> : vector<128xf32>
    %44 = vector.multi_reduction <maximumf>, %43, %cst_20 [1] : vector<128x128xf32> to vector<128xf32>
    %45 = vector.shape_cast %44 : vector<128xf32> to vector<128x1xf32>
    %46 = vector.broadcast %45 : vector<128x1xf32> to vector<128x128xf32>
    %47 = arith.subf %43, %46 : vector<128x128xf32>
    %48 = math.exp %47 : vector<128x128xf32>
    %cst_21 = arith.constant dense<0.000000e+00> : vector<128xf32>
    %49 = vector.multi_reduction <add>, %48, %cst_21 [1] : vector<128x128xf32> to vector<128xf32>
    %50 = vector.shape_cast %49 : vector<128xf32> to vector<128x1xf32>
    %51 = tpu.reciprocal %50 {approx = true} : vector<128x1xf32> -> vector<128x1xf32>
    %52 = vector.broadcast %51 : vector<128x1xf32> to vector<128x128xf32>
    %53 = arith.mulf %48, %52 : vector<128x128xf32>
    %54 = vector.extract_strided_slice %2 {offsets = [0, 104], sizes = [128, 8], strides = [1, 1]} : vector<128x128xf32> to vector<128x8xf32>
    %cst_22 = arith.constant dense<0.000000e+00> : vector<128x8xf32>
    %55 = tpu.matmul %53, %54, %cst_22 {dimension_numbers = #tpu.dot_dimension_numbers<[1], [0], [0], [1], [0, 0, 1, 1], [], []>} : vector<128x128xf32>, vector<128x8xf32>, vector<128x8xf32> -> vector<128x8xf32>
    %c49_23 = arith.constant 49 : index
    %c8 = arith.constant 8 : index
    %56 = vector.load %arg5[%c49_23, %c8] : memref<52x96xf32, #tpu.memory_space<vmem>>, vector<1x8xf32>
    %57 = vector.broadcast %56 : vector<1x8xf32> to vector<128x8xf32>
    %58 = arith.addf %55, %57 : vector<128x8xf32>
    %cst_24 = arith.constant 0.000000e+00 : f32
    %59 = vector.broadcast %cst_24 : f32 to vector<128x8xf32>
    %60 = arith.maximumf %58, %59 : vector<128x8xf32>
    %c0_25 = arith.constant 0 : index
    %c8_26 = arith.constant 8 : index
    %61 = vector.load %arg7[%c0_25, %c8_26] : memref<128x16xf32, #tpu.memory_space<vmem>>, vector<128x8xf32>
    tpu.vector_store %arg7[%c0_25, %c8_26], %60 {strides = array<i32>} : memref<128x16xf32, #tpu.memory_space<vmem>>, vector<128x8xf32>,
    %62 = vector.extract_strided_slice %2 {offsets = [0, 0], sizes = [128, 96], strides = [1, 1]} : vector<128x128xf32> to vector<128x96xf32>
    %c0_27 = arith.constant 0 : index
    %c0_28 = arith.constant 0 : index
    %63 = vector.load %arg7[%c0_27, %c0_28] : memref<128x16xf32, #tpu.memory_space<vmem>>, vector<128x16xf32>
    %c0_29 = arith.constant 0 : index
    %c0_30 = arith.constant 0 : index
    %64 = vector.load %arg5[%c0_29, %c0_30] : memref<52x96xf32, #tpu.memory_space<vmem>>, vector<16x96xf32>
    %cst_31 = arith.constant dense<0.000000e+00> : vector<128x96xf32>
    %65 = tpu.matmul %63, %64, %cst_31 {dimension_numbers = #tpu.dot_dimension_numbers<[1], [0], [0], [1], [0, 0, 1, 1], [], []>} : vector<128x16xf32>, vector<16x96xf32>, vector<128x96xf32> -> vector<128x96xf32>
    %66 = arith.addf %62, %65 : vector<128x96xf32>
    %c16 = arith.constant 16 : index
    %c0_32 = arith.constant 0 : index
    %67 = vector.load %arg5[%c16, %c0_32] : memref<52x96xf32, #tpu.memory_space<vmem>>, vector<32x96xf32>
    %c48 = arith.constant 48 : index
    %c0_33 = arith.constant 0 : index
    %68 = vector.load %arg5[%c48, %c0_33] : memref<52x96xf32, #tpu.memory_space<vmem>>, vector<1x96xf32>
    %cst_34 = arith.constant 0.000000e+00 : f32
    %69 = vector.broadcast %cst_34 : f32 to vector<16x32xf32>
    %70 = vector.extract_strided_slice %66 {offsets = [0, 0], sizes = [16, 96], strides = [1, 1]} : vector<128x96xf32> to vector<16x96xf32>
    %cst_35 = arith.constant dense<0.000000e+00> : vector<16x96xf32>
    %71 = tpu.matmul %69, %67, %cst_35 {dimension_numbers = #tpu.dot_dimension_numbers<[1], [0], [0], [1], [0, 0, 1, 1], [], []>} : vector<16x32xf32>, vector<32x96xf32>, vector<16x96xf32> -> vector<16x96xf32>
    %72 = vector.broadcast %68 : vector<1x96xf32> to vector<16x96xf32>
    %73 = arith.addf %71, %72 : vector<16x96xf32>
    %74 = vector.extract_strided_slice %70 {offsets = [0, 0], sizes = [16, 32], strides = [1, 1]} : vector<16x96xf32> to vector<16x32xf32>
    %75 = vector.extract_strided_slice %73 {offsets = [0, 0], sizes = [16, 32], strides = [1, 1]} : vector<16x96xf32> to vector<16x32xf32>
    %76 = arith.addf %74, %75 : vector<16x32xf32>
    %77 = arith.negf %76 : vector<16x32xf32>
    %78 = math.exp %77 : vector<16x32xf32>
    %cst_36 = arith.constant 1.000000e+00 : f32
    %79 = vector.broadcast %cst_36 : f32 to vector<16x32xf32>
    %80 = arith.addf %79, %78 : vector<16x32xf32>
    %81 = arith.divf %79, %80 : vector<16x32xf32>
    %82 = vector.extract_strided_slice %70 {offsets = [0, 32], sizes = [16, 32], strides = [1, 1]} : vector<16x96xf32> to vector<16x32xf32>
    %83 = vector.extract_strided_slice %73 {offsets = [0, 32], sizes = [16, 32], strides = [1, 1]} : vector<16x96xf32> to vector<16x32xf32>
    %84 = arith.addf %82, %83 : vector<16x32xf32>
    %85 = arith.negf %84 : vector<16x32xf32>
    %86 = math.exp %85 : vector<16x32xf32>
    %cst_37 = arith.constant 1.000000e+00 : f32
    %87 = vector.broadcast %cst_37 : f32 to vector<16x32xf32>
    %88 = arith.addf %87, %86 : vector<16x32xf32>
    %89 = arith.divf %87, %88 : vector<16x32xf32>
    %90 = vector.extract_strided_slice %70 {offsets = [0, 64], sizes = [16, 32], strides = [1, 1]} : vector<16x96xf32> to vector<16x32xf32>
    %91 = vector.extract_strided_slice %73 {offsets = [0, 64], sizes = [16, 32], strides = [1, 1]} : vector<16x96xf32> to vector<16x32xf32>
    %92 = arith.mulf %81, %91 : vector<16x32xf32>
    %93 = arith.addf %90, %92 : vector<16x32xf32>
    %94 = math.tanh %93 : vector<16x32xf32>
    %cst_38 = arith.constant 1.000000e+00 : f32
    %95 = vector.broadcast %cst_38 : f32 to vector<16x32xf32>
    %96 = arith.subf %95, %89 : vector<16x32xf32>
    %97 = arith.mulf %96, %94 : vector<16x32xf32>
    %98 = arith.mulf %89, %69 : vector<16x32xf32>
    %99 = arith.addf %97, %98 : vector<16x32xf32>
    %100 = vector.extract_strided_slice %66 {offsets = [16, 0], sizes = [16, 96], strides = [1, 1]} : vector<128x96xf32> to vector<16x96xf32>
    %cst_39 = arith.constant dense<0.000000e+00> : vector<16x96xf32>
    %101 = tpu.matmul %99, %67, %cst_39 {dimension_numbers = #tpu.dot_dimension_numbers<[1], [0], [0], [1], [0, 0, 1, 1], [], []>} : vector<16x32xf32>, vector<32x96xf32>, vector<16x96xf32> -> vector<16x96xf32>
    %102 = vector.broadcast %68 : vector<1x96xf32> to vector<16x96xf32>
    %103 = arith.addf %101, %102 : vector<16x96xf32>
    %104 = vector.extract_strided_slice %100 {offsets = [0, 0], sizes = [16, 32], strides = [1, 1]} : vector<16x96xf32> to vector<16x32xf32>
    %105 = vector.extract_strided_slice %103 {offsets = [0, 0], sizes = [16, 32], strides = [1, 1]} : vector<16x96xf32> to vector<16x32xf32>
    %106 = arith.addf %104, %105 : vector<16x32xf32>
    %107 = arith.negf %106 : vector<16x32xf32>
    %108 = math.exp %107 : vector<16x32xf32>
    %cst_40 = arith.constant 1.000000e+00 : f32
    %109 = vector.broadcast %cst_40 : f32 to vector<16x32xf32>
    %110 = arith.addf %109, %108 : vector<16x32xf32>
    %111 = arith.divf %109, %110 : vector<16x32xf32>
    %112 = vector.extract_strided_slice %100 {offsets = [0, 32], sizes = [16, 32], strides = [1, 1]} : vector<16x96xf32> to vector<16x32xf32>
    %113 = vector.extract_strided_slice %103 {offsets = [0, 32], sizes = [16, 32], strides = [1, 1]} : vector<16x96xf32> to vector<16x32xf32>
    %114 = arith.addf %112, %113 : vector<16x32xf32>
    %115 = arith.negf %114 : vector<16x32xf32>
    %116 = math.exp %115 : vector<16x32xf32>
    %cst_41 = arith.constant 1.000000e+00 : f32
    %117 = vector.broadcast %cst_41 : f32 to vector<16x32xf32>
    %118 = arith.addf %117, %116 : vector<16x32xf32>
    %119 = arith.divf %117, %118 : vector<16x32xf32>
    %120 = vector.extract_strided_slice %100 {offsets = [0, 64], sizes = [16, 32], strides = [1, 1]} : vector<16x96xf32> to vector<16x32xf32>
    %121 = vector.extract_strided_slice %103 {offsets = [0, 64], sizes = [16, 32], strides = [1, 1]} : vector<16x96xf32> to vector<16x32xf32>
    %122 = arith.mulf %111, %121 : vector<16x32xf32>
    %123 = arith.addf %120, %122 : vector<16x32xf32>
    %124 = math.tanh %123 : vector<16x32xf32>
    %cst_42 = arith.constant 1.000000e+00 : f32
    %125 = vector.broadcast %cst_42 : f32 to vector<16x32xf32>
    %126 = arith.subf %125, %119 : vector<16x32xf32>
    %127 = arith.mulf %126, %124 : vector<16x32xf32>
    %128 = arith.mulf %119, %99 : vector<16x32xf32>
    %129 = arith.addf %127, %128 : vector<16x32xf32>
    %130 = vector.extract_strided_slice %66 {offsets = [32, 0], sizes = [16, 96], strides = [1, 1]} : vector<128x96xf32> to vector<16x96xf32>
    %cst_43 = arith.constant dense<0.000000e+00> : vector<16x96xf32>
    %131 = tpu.matmul %129, %67, %cst_43 {dimension_numbers = #tpu.dot_dimension_numbers<[1], [0], [0], [1], [0, 0, 1, 1], [], []>} : vector<16x32xf32>, vector<32x96xf32>, vector<16x96xf32> -> vector<16x96xf32>
    %132 = vector.broadcast %68 : vector<1x96xf32> to vector<16x96xf32>
    %133 = arith.addf %131, %132 : vector<16x96xf32>
    %134 = vector.extract_strided_slice %130 {offsets = [0, 0], sizes = [16, 32], strides = [1, 1]} : vector<16x96xf32> to vector<16x32xf32>
    %135 = vector.extract_strided_slice %133 {offsets = [0, 0], sizes = [16, 32], strides = [1, 1]} : vector<16x96xf32> to vector<16x32xf32>
    %136 = arith.addf %134, %135 : vector<16x32xf32>
    %137 = arith.negf %136 : vector<16x32xf32>
    %138 = math.exp %137 : vector<16x32xf32>
    %cst_44 = arith.constant 1.000000e+00 : f32
    %139 = vector.broadcast %cst_44 : f32 to vector<16x32xf32>
    %140 = arith.addf %139, %138 : vector<16x32xf32>
    %141 = arith.divf %139, %140 : vector<16x32xf32>
    %142 = vector.extract_strided_slice %130 {offsets = [0, 32], sizes = [16, 32], strides = [1, 1]} : vector<16x96xf32> to vector<16x32xf32>
    %143 = vector.extract_strided_slice %133 {offsets = [0, 32], sizes = [16, 32], strides = [1, 1]} : vector<16x96xf32> to vector<16x32xf32>
    %144 = arith.addf %142, %143 : vector<16x32xf32>
    %145 = arith.negf %144 : vector<16x32xf32>
    %146 = math.exp %145 : vector<16x32xf32>
    %cst_45 = arith.constant 1.000000e+00 : f32
    %147 = vector.broadcast %cst_45 : f32 to vector<16x32xf32>
    %148 = arith.addf %147, %146 : vector<16x32xf32>
    %149 = arith.divf %147, %148 : vector<16x32xf32>
    %150 = vector.extract_strided_slice %130 {offsets = [0, 64], sizes = [16, 32], strides = [1, 1]} : vector<16x96xf32> to vector<16x32xf32>
    %151 = vector.extract_strided_slice %133 {offsets = [0, 64], sizes = [16, 32], strides = [1, 1]} : vector<16x96xf32> to vector<16x32xf32>
    %152 = arith.mulf %141, %151 : vector<16x32xf32>
    %153 = arith.addf %150, %152 : vector<16x32xf32>
    %154 = math.tanh %153 : vector<16x32xf32>
    %cst_46 = arith.constant 1.000000e+00 : f32
    %155 = vector.broadcast %cst_46 : f32 to vector<16x32xf32>
    %156 = arith.subf %155, %149 : vector<16x32xf32>
    %157 = arith.mulf %156, %154 : vector<16x32xf32>
    %158 = arith.mulf %149, %129 : vector<16x32xf32>
    %159 = arith.addf %157, %158 : vector<16x32xf32>
    %160 = vector.extract_strided_slice %66 {offsets = [48, 0], sizes = [16, 96], strides = [1, 1]} : vector<128x96xf32> to vector<16x96xf32>
    %cst_47 = arith.constant dense<0.000000e+00> : vector<16x96xf32>
    %161 = tpu.matmul %159, %67, %cst_47 {dimension_numbers = #tpu.dot_dimension_numbers<[1], [0], [0], [1], [0, 0, 1, 1], [], []>} : vector<16x32xf32>, vector<32x96xf32>, vector<16x96xf32> -> vector<16x96xf32>
    %162 = vector.broadcast %68 : vector<1x96xf32> to vector<16x96xf32>
    %163 = arith.addf %161, %162 : vector<16x96xf32>
    %164 = vector.extract_strided_slice %160 {offsets = [0, 0], sizes = [16, 32], strides = [1, 1]} : vector<16x96xf32> to vector<16x32xf32>
    %165 = vector.extract_strided_slice %163 {offsets = [0, 0], sizes = [16, 32], strides = [1, 1]} : vector<16x96xf32> to vector<16x32xf32>
    %166 = arith.addf %164, %165 : vector<16x32xf32>
    %167 = arith.negf %166 : vector<16x32xf32>
    %168 = math.exp %167 : vector<16x32xf32>
    %cst_48 = arith.constant 1.000000e+00 : f32
    %169 = vector.broadcast %cst_48 : f32 to vector<16x32xf32>
    %170 = arith.addf %169, %168 : vector<16x32xf32>
    %171 = arith.divf %169, %170 : vector<16x32xf32>
    %172 = vector.extract_strided_slice %160 {offsets = [0, 32], sizes = [16, 32], strides = [1, 1]} : vector<16x96xf32> to vector<16x32xf32>
    %173 = vector.extract_strided_slice %163 {offsets = [0, 32], sizes = [16, 32], strides = [1, 1]} : vector<16x96xf32> to vector<16x32xf32>
    %174 = arith.addf %172, %173 : vector<16x32xf32>
    %175 = arith.negf %174 : vector<16x32xf32>
    %176 = math.exp %175 : vector<16x32xf32>
    %cst_49 = arith.constant 1.000000e+00 : f32
    %177 = vector.broadcast %cst_49 : f32 to vector<16x32xf32>
    %178 = arith.addf %177, %176 : vector<16x32xf32>
    %179 = arith.divf %177, %178 : vector<16x32xf32>
    %180 = vector.extract_strided_slice %160 {offsets = [0, 64], sizes = [16, 32], strides = [1, 1]} : vector<16x96xf32> to vector<16x32xf32>
    %181 = vector.extract_strided_slice %163 {offsets = [0, 64], sizes = [16, 32], strides = [1, 1]} : vector<16x96xf32> to vector<16x32xf32>
    %182 = arith.mulf %171, %181 : vector<16x32xf32>
    %183 = arith.addf %180, %182 : vector<16x32xf32>
    %184 = math.tanh %183 : vector<16x32xf32>
    %cst_50 = arith.constant 1.000000e+00 : f32
    %185 = vector.broadcast %cst_50 : f32 to vector<16x32xf32>
    %186 = arith.subf %185, %179 : vector<16x32xf32>
    %187 = arith.mulf %186, %184 : vector<16x32xf32>
    %188 = arith.mulf %179, %159 : vector<16x32xf32>
    %189 = arith.addf %187, %188 : vector<16x32xf32>
    %190 = vector.extract_strided_slice %66 {offsets = [64, 0], sizes = [16, 96], strides = [1, 1]} : vector<128x96xf32> to vector<16x96xf32>
    %cst_51 = arith.constant dense<0.000000e+00> : vector<16x96xf32>
    %191 = tpu.matmul %189, %67, %cst_51 {dimension_numbers = #tpu.dot_dimension_numbers<[1], [0], [0], [1], [0, 0, 1, 1], [], []>} : vector<16x32xf32>, vector<32x96xf32>, vector<16x96xf32> -> vector<16x96xf32>
    %192 = vector.broadcast %68 : vector<1x96xf32> to vector<16x96xf32>
    %193 = arith.addf %191, %192 : vector<16x96xf32>
    %194 = vector.extract_strided_slice %190 {offsets = [0, 0], sizes = [16, 32], strides = [1, 1]} : vector<16x96xf32> to vector<16x32xf32>
    %195 = vector.extract_strided_slice %193 {offsets = [0, 0], sizes = [16, 32], strides = [1, 1]} : vector<16x96xf32> to vector<16x32xf32>
    %196 = arith.addf %194, %195 : vector<16x32xf32>
    %197 = arith.negf %196 : vector<16x32xf32>
    %198 = math.exp %197 : vector<16x32xf32>
    %cst_52 = arith.constant 1.000000e+00 : f32
    %199 = vector.broadcast %cst_52 : f32 to vector<16x32xf32>
    %200 = arith.addf %199, %198 : vector<16x32xf32>
    %201 = arith.divf %199, %200 : vector<16x32xf32>
    %202 = vector.extract_strided_slice %190 {offsets = [0, 32], sizes = [16, 32], strides = [1, 1]} : vector<16x96xf32> to vector<16x32xf32>
    %203 = vector.extract_strided_slice %193 {offsets = [0, 32], sizes = [16, 32], strides = [1, 1]} : vector<16x96xf32> to vector<16x32xf32>
    %204 = arith.addf %202, %203 : vector<16x32xf32>
    %205 = arith.negf %204 : vector<16x32xf32>
    %206 = math.exp %205 : vector<16x32xf32>
    %cst_53 = arith.constant 1.000000e+00 : f32
    %207 = vector.broadcast %cst_53 : f32 to vector<16x32xf32>
    %208 = arith.addf %207, %206 : vector<16x32xf32>
    %209 = arith.divf %207, %208 : vector<16x32xf32>
    %210 = vector.extract_strided_slice %190 {offsets = [0, 64], sizes = [16, 32], strides = [1, 1]} : vector<16x96xf32> to vector<16x32xf32>
    %211 = vector.extract_strided_slice %193 {offsets = [0, 64], sizes = [16, 32], strides = [1, 1]} : vector<16x96xf32> to vector<16x32xf32>
    %212 = arith.mulf %201, %211 : vector<16x32xf32>
    %213 = arith.addf %210, %212 : vector<16x32xf32>
    %214 = math.tanh %213 : vector<16x32xf32>
    %cst_54 = arith.constant 1.000000e+00 : f32
    %215 = vector.broadcast %cst_54 : f32 to vector<16x32xf32>
    %216 = arith.subf %215, %209 : vector<16x32xf32>
    %217 = arith.mulf %216, %214 : vector<16x32xf32>
    %218 = arith.mulf %209, %189 : vector<16x32xf32>
    %219 = arith.addf %217, %218 : vector<16x32xf32>
    %220 = vector.extract_strided_slice %66 {offsets = [80, 0], sizes = [16, 96], strides = [1, 1]} : vector<128x96xf32> to vector<16x96xf32>
    %cst_55 = arith.constant dense<0.000000e+00> : vector<16x96xf32>
    %221 = tpu.matmul %219, %67, %cst_55 {dimension_numbers = #tpu.dot_dimension_numbers<[1], [0], [0], [1], [0, 0, 1, 1], [], []>} : vector<16x32xf32>, vector<32x96xf32>, vector<16x96xf32> -> vector<16x96xf32>
    %222 = vector.broadcast %68 : vector<1x96xf32> to vector<16x96xf32>
    %223 = arith.addf %221, %222 : vector<16x96xf32>
    %224 = vector.extract_strided_slice %220 {offsets = [0, 0], sizes = [16, 32], strides = [1, 1]} : vector<16x96xf32> to vector<16x32xf32>
    %225 = vector.extract_strided_slice %223 {offsets = [0, 0], sizes = [16, 32], strides = [1, 1]} : vector<16x96xf32> to vector<16x32xf32>
    %226 = arith.addf %224, %225 : vector<16x32xf32>
    %227 = arith.negf %226 : vector<16x32xf32>
    %228 = math.exp %227 : vector<16x32xf32>
    %cst_56 = arith.constant 1.000000e+00 : f32
    %229 = vector.broadcast %cst_56 : f32 to vector<16x32xf32>
    %230 = arith.addf %229, %228 : vector<16x32xf32>
    %231 = arith.divf %229, %230 : vector<16x32xf32>
    %232 = vector.extract_strided_slice %220 {offsets = [0, 32], sizes = [16, 32], strides = [1, 1]} : vector<16x96xf32> to vector<16x32xf32>
    %233 = vector.extract_strided_slice %223 {offsets = [0, 32], sizes = [16, 32], strides = [1, 1]} : vector<16x96xf32> to vector<16x32xf32>
    %234 = arith.addf %232, %233 : vector<16x32xf32>
    %235 = arith.negf %234 : vector<16x32xf32>
    %236 = math.exp %235 : vector<16x32xf32>
    %cst_57 = arith.constant 1.000000e+00 : f32
    %237 = vector.broadcast %cst_57 : f32 to vector<16x32xf32>
    %238 = arith.addf %237, %236 : vector<16x32xf32>
    %239 = arith.divf %237, %238 : vector<16x32xf32>
    %240 = vector.extract_strided_slice %220 {offsets = [0, 64], sizes = [16, 32], strides = [1, 1]} : vector<16x96xf32> to vector<16x32xf32>
    %241 = vector.extract_strided_slice %223 {offsets = [0, 64], sizes = [16, 32], strides = [1, 1]} : vector<16x96xf32> to vector<16x32xf32>
    %242 = arith.mulf %231, %241 : vector<16x32xf32>
    %243 = arith.addf %240, %242 : vector<16x32xf32>
    %244 = math.tanh %243 : vector<16x32xf32>
    %cst_58 = arith.constant 1.000000e+00 : f32
    %245 = vector.broadcast %cst_58 : f32 to vector<16x32xf32>
    %246 = arith.subf %245, %239 : vector<16x32xf32>
    %247 = arith.mulf %246, %244 : vector<16x32xf32>
    %248 = arith.mulf %239, %219 : vector<16x32xf32>
    %249 = arith.addf %247, %248 : vector<16x32xf32>
    %250 = vector.extract_strided_slice %66 {offsets = [96, 0], sizes = [16, 96], strides = [1, 1]} : vector<128x96xf32> to vector<16x96xf32>
    %cst_59 = arith.constant dense<0.000000e+00> : vector<16x96xf32>
    %251 = tpu.matmul %249, %67, %cst_59 {dimension_numbers = #tpu.dot_dimension_numbers<[1], [0], [0], [1], [0, 0, 1, 1], [], []>} : vector<16x32xf32>, vector<32x96xf32>, vector<16x96xf32> -> vector<16x96xf32>
    %252 = vector.broadcast %68 : vector<1x96xf32> to vector<16x96xf32>
    %253 = arith.addf %251, %252 : vector<16x96xf32>
    %254 = vector.extract_strided_slice %250 {offsets = [0, 0], sizes = [16, 32], strides = [1, 1]} : vector<16x96xf32> to vector<16x32xf32>
    %255 = vector.extract_strided_slice %253 {offsets = [0, 0], sizes = [16, 32], strides = [1, 1]} : vector<16x96xf32> to vector<16x32xf32>
    %256 = arith.addf %254, %255 : vector<16x32xf32>
    %257 = arith.negf %256 : vector<16x32xf32>
    %258 = math.exp %257 : vector<16x32xf32>
    %cst_60 = arith.constant 1.000000e+00 : f32
    %259 = vector.broadcast %cst_60 : f32 to vector<16x32xf32>
    %260 = arith.addf %259, %258 : vector<16x32xf32>
    %261 = arith.divf %259, %260 : vector<16x32xf32>
    %262 = vector.extract_strided_slice %250 {offsets = [0, 32], sizes = [16, 32], strides = [1, 1]} : vector<16x96xf32> to vector<16x32xf32>
    %263 = vector.extract_strided_slice %253 {offsets = [0, 32], sizes = [16, 32], strides = [1, 1]} : vector<16x96xf32> to vector<16x32xf32>
    %264 = arith.addf %262, %263 : vector<16x32xf32>
    %265 = arith.negf %264 : vector<16x32xf32>
    %266 = math.exp %265 : vector<16x32xf32>
    %cst_61 = arith.constant 1.000000e+00 : f32
    %267 = vector.broadcast %cst_61 : f32 to vector<16x32xf32>
    %268 = arith.addf %267, %266 : vector<16x32xf32>
    %269 = arith.divf %267, %268 : vector<16x32xf32>
    %270 = vector.extract_strided_slice %250 {offsets = [0, 64], sizes = [16, 32], strides = [1, 1]} : vector<16x96xf32> to vector<16x32xf32>
    %271 = vector.extract_strided_slice %253 {offsets = [0, 64], sizes = [16, 32], strides = [1, 1]} : vector<16x96xf32> to vector<16x32xf32>
    %272 = arith.mulf %261, %271 : vector<16x32xf32>
    %273 = arith.addf %270, %272 : vector<16x32xf32>
    %274 = math.tanh %273 : vector<16x32xf32>
    %cst_62 = arith.constant 1.000000e+00 : f32
    %275 = vector.broadcast %cst_62 : f32 to vector<16x32xf32>
    %276 = arith.subf %275, %269 : vector<16x32xf32>
    %277 = arith.mulf %276, %274 : vector<16x32xf32>
    %278 = arith.mulf %269, %249 : vector<16x32xf32>
    %279 = arith.addf %277, %278 : vector<16x32xf32>
    %280 = vector.extract_strided_slice %66 {offsets = [112, 0], sizes = [16, 96], strides = [1, 1]} : vector<128x96xf32> to vector<16x96xf32>
    %cst_63 = arith.constant dense<0.000000e+00> : vector<16x96xf32>
    %281 = tpu.matmul %279, %67, %cst_63 {dimension_numbers = #tpu.dot_dimension_numbers<[1], [0], [0], [1], [0, 0, 1, 1], [], []>} : vector<16x32xf32>, vector<32x96xf32>, vector<16x96xf32> -> vector<16x96xf32>
    %282 = vector.broadcast %68 : vector<1x96xf32> to vector<16x96xf32>
    %283 = arith.addf %281, %282 : vector<16x96xf32>
    %284 = vector.extract_strided_slice %280 {offsets = [0, 0], sizes = [16, 32], strides = [1, 1]} : vector<16x96xf32> to vector<16x32xf32>
    %285 = vector.extract_strided_slice %283 {offsets = [0, 0], sizes = [16, 32], strides = [1, 1]} : vector<16x96xf32> to vector<16x32xf32>
    %286 = arith.addf %284, %285 : vector<16x32xf32>
    %287 = arith.negf %286 : vector<16x32xf32>
    %288 = math.exp %287 : vector<16x32xf32>
    %cst_64 = arith.constant 1.000000e+00 : f32
    %289 = vector.broadcast %cst_64 : f32 to vector<16x32xf32>
    %290 = arith.addf %289, %288 : vector<16x32xf32>
    %291 = arith.divf %289, %290 : vector<16x32xf32>
    %292 = vector.extract_strided_slice %280 {offsets = [0, 32], sizes = [16, 32], strides = [1, 1]} : vector<16x96xf32> to vector<16x32xf32>
    %293 = vector.extract_strided_slice %283 {offsets = [0, 32], sizes = [16, 32], strides = [1, 1]} : vector<16x96xf32> to vector<16x32xf32>
    %294 = arith.addf %292, %293 : vector<16x32xf32>
    %295 = arith.negf %294 : vector<16x32xf32>
    %296 = math.exp %295 : vector<16x32xf32>
    %cst_65 = arith.constant 1.000000e+00 : f32
    %297 = vector.broadcast %cst_65 : f32 to vector<16x32xf32>
    %298 = arith.addf %297, %296 : vector<16x32xf32>
    %299 = arith.divf %297, %298 : vector<16x32xf32>
    %300 = vector.extract_strided_slice %280 {offsets = [0, 64], sizes = [16, 32], strides = [1, 1]} : vector<16x96xf32> to vector<16x32xf32>
    %301 = vector.extract_strided_slice %283 {offsets = [0, 64], sizes = [16, 32], strides = [1, 1]} : vector<16x96xf32> to vector<16x32xf32>
    %302 = arith.mulf %291, %301 : vector<16x32xf32>
    %303 = arith.addf %300, %302 : vector<16x32xf32>
    %304 = math.tanh %303 : vector<16x32xf32>
    %cst_66 = arith.constant 1.000000e+00 : f32
    %305 = vector.broadcast %cst_66 : f32 to vector<16x32xf32>
    %306 = arith.subf %305, %299 : vector<16x32xf32>
    %307 = arith.mulf %306, %304 : vector<16x32xf32>
    %308 = arith.mulf %299, %279 : vector<16x32xf32>
    %309 = arith.addf %307, %308 : vector<16x32xf32>
    %310 = tpu.concatenate %99, %129, %159, %189, %219, %249, %279, %309 in 1 : vector<16x32xf32>, vector<16x32xf32>, vector<16x32xf32>, vector<16x32xf32>, vector<16x32xf32>, vector<16x32xf32>, vector<16x32xf32>, vector<16x32xf32> -> vector<16x256xf32>
    %c0_67 = arith.constant 0 : index
    %c0_68 = arith.constant 0 : index
    %311 = vector.load %arg6[%c0_67, %c0_68] : memref<16x256xf32, #tpu.memory_space<vmem>>, vector<16x256xf32>
    tpu.vector_store %arg6[%c0_67, %c0_68], %310 {strides = array<i32>} : memref<16x256xf32, #tpu.memory_space<vmem>>, vector<16x256xf32>,
    return
  }
  func.func @transform_0(%arg0: i32) -> (i32, i32) {
    %c0_i32 = arith.constant 0 : i32
    %c0_i32_0 = arith.constant 0 : i32
    %c0_i32_1 = arith.constant 0 : i32
    return %c0_i32, %c0_i32_0 : i32, i32
  }
  func.func @transform_1(%arg0: i32) -> (i32, i32) {
    %c0_i32 = arith.constant 0 : i32
    %c0_i32_0 = arith.constant 0 : i32
    %c0_i32_1 = arith.constant 0 : i32
    return %c0_i32, %c0_i32_0 : i32, i32
  }
  func.func @transform_2(%arg0: i32) -> (i32, i32) {
    %c0_i32 = arith.constant 0 : i32
    %c0_i32_0 = arith.constant 0 : i32
    %c0_i32_1 = arith.constant 0 : i32
    return %c0_i32, %c0_i32_0 : i32, i32
  }
  func.func @transform_3(%arg0: i32) -> (i32, i32) {
    %c0_i32 = arith.constant 0 : i32
    %c0_i32_0 = arith.constant 0 : i32
    %c0_i32_1 = arith.constant 0 : i32
    return %c0_i32, %c0_i32_0 : i32, i32
  }
  func.func @transform_4(%arg0: i32) -> (i32, i32) {
    %c0_i32 = arith.constant 0 : i32
    %c0_i32_0 = arith.constant 0 : i32
    %c0_i32_1 = arith.constant 0 : i32
    return %c0_i32, %c0_i32_0 : i32, i32
  }
  func.func @transform_5(%arg0: i32) -> (i32, i32) {
    %c0_i32 = arith.constant 0 : i32
    %c0_i32_0 = arith.constant 0 : i32
    %c0_i32_1 = arith.constant 0 : i32
    return %c0_i32, %c0_i32_0 : i32, i32
  }
}

</mosaic_0001>

<llo_original>
// kernel: st_block_forward.1
$region0: #{st_block_forward.1}
  #allocation0 [shape = 'u32[]', space=smem, size = 0x4, offset = 0x4, fixed_abs, tag = 'smem constant byte address 0x4 - core index']
  #allocation1 [shape = 'u32[144,128]{1,0:T(1,128)}', space=vmem, size = 0x12000, scoped, tag = 'internal scratch']
  #allocation2 [shape = 'f32[128,16]{1,0:T(8,128)}', space=vmem, size = 0x10000, scoped, tag = 'scratch operand']
  %s0 = inlined_call_operand.vmem [shape: f32[128,5], index: 0, kind: input, shape index: {}]
  %s1 = inlined_call_operand.vmem [shape: f32[4,128], index: 1, kind: input, shape index: {}]
  %s2 = inlined_call_operand.vmem [shape: f32[128,128], index: 2, kind: input, shape index: {}]
  %s3 = inlined_call_operand.vmem [shape: f32[5,128], index: 3, kind: input, shape index: {}]
  %s4 = inlined_call_operand.vmem [shape: f32[52,96], index: 4, kind: input, shape index: {}]
  %s5 = inlined_call_operand.vmem [shape: f32[16,256], index: 5, kind: output, shape index: {}]
  %s6 = sld [smem:[#allocation0]]
  $region30: #{st_block_forward.1} parent=0
    _
  %s8 = ssub.s32 1, %s6
  %s9 = scalar_select 0, %s8, %s6
  // Predicated region
  $region2: #{st_block_forward.1} parent=0 // pred_check
    _
  $region3: #{st_block_forward.1} parent=0 // pred_check_branch
    %11 = sbr.rel (0) target = $region5
  $region4: #{st_block_forward.1} parent=0 // pred_region
    _
  $region5: #{st_block_forward.1} parent=0 // pred_fallthru
    _
  // Predicated region
  $region6: #{st_block_forward.1} parent=0 // pred_check
    _
  $region7: #{st_block_forward.1} parent=0 // pred_check_branch
    %13 = sbr.rel (0) target = $region9
  $region8: #{st_block_forward.1} parent=0 // pred_region
    _
  $region9: #{st_block_forward.1} parent=0 // pred_fallthru
    _
  // Predicated region
  $region10: #{st_block_forward.1} parent=0 // pred_check
    _
  $region11: #{st_block_forward.1} parent=0 // pred_check_branch
    %15 = sbr.rel (0) target = $region13
  $region12: #{st_block_forward.1} parent=0 // pred_region
    _
  $region13: #{st_block_forward.1} parent=0 // pred_fallthru
    _
  // Predicated region
  $region14: #{st_block_forward.1} parent=0 // pred_check
    _
  $region15: #{st_block_forward.1} parent=0 // pred_check_branch
    %17 = sbr.rel (0) target = $region17
  $region16: #{st_block_forward.1} parent=0 // pred_region
    _
  $region17: #{st_block_forward.1} parent=0 // pred_fallthru
    _
  // Predicated region
  $region18: #{st_block_forward.1} parent=0 // pred_check
    _
  $region19: #{st_block_forward.1} parent=0 // pred_check_branch
    %19 = sbr.rel (0) target = $region21
  $region20: #{st_block_forward.1} parent=0 // pred_region
    _
  $region21: #{st_block_forward.1} parent=0 // pred_fallthru
    _
  %v20 = vld [vmem:[%s0] sm:$0xff]
  %v21 = vld [vmem:[%s0 + $0x8] sm:$0xff]
  %v22 = vld [vmem:[%s0 + $0x10] sm:$0xff]
  %v23 = vld [vmem:[%s0 + $0x18] sm:$0xff]
  %v24 = vld [vmem:[%s0 + $0x20] sm:$0xff]
  %v25 = vld [vmem:[%s0 + $0x28] sm:$0xff]
  %v26 = vld [vmem:[%s0 + $0x30] sm:$0xff]
  %v27 = vld [vmem:[%s0 + $0x38] sm:$0xff]
  %v28 = vld [vmem:[%s0 + $0x40] sm:$0xff]
  %v29 = vld [vmem:[%s0 + $0x48] sm:$0xff]
  %v30 = vld [vmem:[%s0 + $0x50] sm:$0xff]
  %v31 = vld [vmem:[%s0 + $0x58] sm:$0xff]
  %v32 = vld [vmem:[%s0 + $0x60] sm:$0xff]
  %v33 = vld [vmem:[%s0 + $0x68] sm:$0xff]
  %v34 = vld [vmem:[%s0 + $0x70] sm:$0xff]
  %v35 = vld [vmem:[%s0 + $0x78] sm:$0xff]
  %v36 = vld [vmem:[%s3] sm:$0x1f]
  %vm37 = vcmask 39936
  %v39 = vsel %vm37, %v20, 0
  %v42 = vsel %vm37, %v21, 0
  %v45 = vsel %vm37, %v22, 0
  %v48 = vsel %vm37, %v23, 0
  %v51 = vsel %vm37, %v24, 0
  %v54 = vsel %vm37, %v25, 0
  %v57 = vsel %vm37, %v26, 0
  %v60 = vsel %vm37, %v27, 0
  %v63 = vsel %vm37, %v28, 0
  %v66 = vsel %vm37, %v29, 0
  %v69 = vsel %vm37, %v30, 0
  %v72 = vsel %vm37, %v31, 0
  %v75 = vsel %vm37, %v32, 0
  %v78 = vsel %vm37, %v33, 0
  %v81 = vsel %vm37, %v34, 0
  %v84 = vsel %vm37, %v35, 0
  %vm86 = vcmask 1044480
  %v88 = vsel %vm86, %v36, 0
  %90 = vmatprep.subr.mxu0 0.0
  %91 = vmatpush1.msra.mxu0 %v88
  %92 = vmatprep.subr.mxu0 0.0
  %93 = vmatpush1.msra.mxu0 0.0
  %94 = vmatprep.subr.mxu0 0.0
  %95 = vmatpush1.msra.mxu0 0.0
  %96 = vmatprep.subr.mxu0 0.0
  %97 = vmatpush1.msra.mxu0 0.0
  %98 = vmatprep.subr.mxu0 0.0
  %99 = vmatpush1.msra.mxu0 0.0
  %100 = vmatprep.subr.mxu0 0.0
  %101 = vmatpush1.msra.mxu0 0.0
  %102 = vmatprep.subr.mxu0 0.0
  %103 = vmatpush1.msra.mxu0 0.0
  %104 = vmatprep.subr.mxu0 0.0
  %105 = vmatpush1.msra.mxu0 0.0
  %106 = vmatprep.subr.mxu0 0.0
  %107 = vmatpush1.msra.mxu0 0.0
  %108 = vmatprep.subr.mxu0 0.0
  %109 = vmatpush1.msra.mxu0 0.0
  %110 = vmatprep.subr.mxu0 0.0
  %111 = vmatpush1.msra.mxu0 0.0
  %112 = vmatprep.subr.mxu0 0.0
  %113 = vmatpush1.msra.mxu0 0.0
  %114 = vmatprep.subr.mxu0 0.0
  %115 = vmatpush1.msra.mxu0 0.0
  %116 = vmatprep.subr.mxu0 0.0
  %117 = vmatpush1.msra.mxu0 0.0
  %118 = vmatprep.subr.mxu0 0.0
  %119 = vmatpush1.msra.mxu0 0.0
  %120 = vmatprep.subr.mxu0 0.0
  %121 = vmatpush1.msra.mxu0 0.0
  %122 = vmatprep.subr.mxu0 0.0
  %123 = vmatpush1.msra.mxu0 0.0
  %124 = vmatprep.subr.mxu0 0.0
  %125 = vmatpush1.msra.mxu0 0.0
  %126 = vmatprep.subr.mxu0 0.0
  %127 = vmatpush1.msra.mxu0 0.0
  %128 = vmatprep.subr.mxu0 0.0
  %129 = vmatpush1.msra.mxu0 0.0
  %130 = vmatprep.subr.mxu0 0.0
  %131 = vmatpush1.msra.mxu0 0.0
  %132 = vmatprep.subr.mxu0 0.0
  %133 = vmatpush1.msra.mxu0 0.0
  %134 = vmatprep.subr.mxu0 0.0
  %135 = vmatpush1.msra.mxu0 0.0
  %136 = vmatprep.subr.mxu0 0.0
  %137 = vmatpush1.msra.mxu0 0.0
  %138 = vmatprep.subr.mxu0 0.0
  %139 = vmatpush1.msra.mxu0 0.0
  %140 = vmatprep.subr.mxu0 0.0
  %141 = vmatpush1.msra.mxu0 0.0
  %142 = vmatprep.subr.mxu0 0.0
  %143 = vmatpush1.msra.mxu0 0.0
  %144 = vmatprep.subr.mxu0 0.0
  %145 = vmatpush1.msra.mxu0 0.0
  %146 = vmatprep.subr.mxu0 0.0
  %147 = vmatpush1.msra.mxu0 0.0
  %148 = vmatprep.subr.mxu0 0.0
  %149 = vmatpush1.msra.mxu0 0.0
  %150 = vmatprep.subr.mxu0 0.0
  %151 = vmatpush1.msra.mxu0 0.0
  %152 = vmatprep.subr.mxu0 0.0
  %153 = vmatpush1.msra.mxu0 0.0
  %154 = vmatprep.mubr.f32.mxu0 0.0
  %155 = vmatmul.mubr.f32.gmra.mrb[0].mxu0 %v39
  %v156 = vpop.f32.mrb[0].mxu0
  %v157 = vadd.f32 0.0, %v156
  %v158 = vpop.f32.mrb[0].mxu0
  %159 = vmatprep.mubr.f32.mxu0 0.0
  %160 = vmatmul.mubr.f32.gmra.mrb[0].mxu0 %v42
  %v161 = vpop.f32.mrb[0].mxu0
  %v162 = vadd.f32 0.0, %v161
  %v163 = vpop.f32.mrb[0].mxu0
  %164 = vmatprep.mubr.f32.mxu0 0.0
  %165 = vmatmul.mubr.f32.gmra.mrb[0].mxu0 %v45
  %v166 = vpop.f32.mrb[0].mxu0
  %v167 = vadd.f32 0.0, %v166
  %v168 = vpop.f32.mrb[0].mxu0
  %169 = vmatprep.mubr.f32.mxu0 0.0
  %170 = vmatmul.mubr.f32.gmra.mrb[0].mxu0 %v48
  %v171 = vpop.f32.mrb[0].mxu0
  %v172 = vadd.f32 0.0, %v171
  %v173 = vpop.f32.mrb[0].mxu0
  %174 = vmatprep.mubr.f32.mxu0 0.0
  %175 = vmatmul.mubr.f32.gmra.mrb[0].mxu0 %v51
  %v176 = vpop.f32.mrb[0].mxu0
  %v177 = vadd.f32 0.0, %v176
  %v178 = vpop.f32.mrb[0].mxu0
  %179 = vmatprep.mubr.f32.mxu0 0.0
  %180 = vmatmul.mubr.f32.gmra.mrb[0].mxu0 %v54
  %v181 = vpop.f32.mrb[0].mxu0
  %v182 = vadd.f32 0.0, %v181
  %v183 = vpop.f32.mrb[0].mxu0
  %184 = vmatprep.mubr.f32.mxu0 0.0
  %185 = vmatmul.mubr.f32.gmra.mrb[0].mxu0 %v57
  %v186 = vpop.f32.mrb[0].mxu0
  %v187 = vadd.f32 0.0, %v186
  %v188 = vpop.f32.mrb[0].mxu0
  %189 = vmatprep.mubr.f32.mxu0 0.0
  %190 = vmatmul.mubr.f32.gmra.mrb[0].mxu0 %v60
  %v191 = vpop.f32.mrb[0].mxu0
  %v192 = vadd.f32 0.0, %v191
  %v193 = vpop.f32.mrb[0].mxu0
  %194 = vmatprep.mubr.f32.mxu0 0.0
  %195 = vmatmul.mubr.f32.gmra.mrb[0].mxu0 %v63
  %v196 = vpop.f32.mrb[0].mxu0
  %v197 = vadd.f32 0.0, %v196
  %v198 = vpop.f32.mrb[0].mxu0
  %199 = vmatprep.mubr.f32.mxu0 0.0
  %200 = vmatmul.mubr.f32.gmra.mrb[0].mxu0 %v66
  %v201 = vpop.f32.mrb[0].mxu0
  %v202 = vadd.f32 0.0, %v201
  %v203 = vpop.f32.mrb[0].mxu0
  %204 = vmatprep.mubr.f32.mxu0 0.0
  %205 = vmatmul.mubr.f32.gmra.mrb[0].mxu0 %v69
  %v206 = vpop.f32.mrb[0].mxu0
  %v207 = vadd.f32 0.0, %v206
  %v208 = vpop.f32.mrb[0].mxu0
  %209 = vmatprep.mubr.f32.mxu0 0.0
  %210 = vmatmul.mubr.f32.gmra.mrb[0].mxu0 %v72
  %v211 = vpop.f32.mrb[0].mxu0
  %v212 = vadd.f32 0.0, %v211
  %v213 = vpop.f32.mrb[0].mxu0
  %214 = vmatprep.mubr.f32.mxu0 0.0
  %215 = vmatmul.mubr.f32.gmra.mrb[0].mxu0 %v75
  %v216 = vpop.f32.mrb[0].mxu0
  %v217 = vadd.f32 0.0, %v216
  %v218 = vpop.f32.mrb[0].mxu0
  %219 = vmatprep.mubr.f32.mxu0 0.0
  %220 = vmatmul.mubr.f32.gmra.mrb[0].mxu0 %v78
  %v221 = vpop.f32.mrb[0].mxu0
  %v222 = vadd.f32 0.0, %v221
  %v223 = vpop.f32.mrb[0].mxu0
  %224 = vmatprep.mubr.f32.mxu0 0.0
  %225 = vmatmul.mubr.f32.gmra.mrb[0].mxu0 %v81
  %v226 = vpop.f32.mrb[0].mxu0
  %v227 = vadd.f32 0.0, %v226
  %v228 = vpop.f32.mrb[0].mxu0
  %229 = vmatprep.mubr.f32.mxu0 0.0
  %230 = vmatmul.mubr.f32.gmra.mrb[0].mxu0 %v84
  %v231 = vpop.f32.mrb[0].mxu0
  %v232 = vadd.f32 0.0, %v231
  %v233 = vpop.f32.mrb[0].mxu0
  %234 = vdwg.mxu0
  %v235 = vld [vmem:[%s4 + $0x32] sm:$0x3]
  %v236 = vld [vmem:[%s1] sm:$0xf]
  %vm237 = vcmask 31744
  %v239 = vsel %vm237, %v235, 0
  %vm241 = vcmask 1043456
  %v243 = vsel %vm241, %v236, 0
  %245 = vmatprep.subr.mxu0 0.0
  %246 = vmatpush1.msra.mxu0 %v243
  %247 = vmatprep.subr.mxu0 0.0
  %248 = vmatpush1.msra.mxu0 0.0
  %249 = vmatprep.subr.mxu0 0.0
  %250 = vmatpush1.msra.mxu0 0.0
  %251 = vmatprep.subr.mxu0 0.0
  %252 = vmatpush1.msra.mxu0 0.0
  %253 = vmatprep.subr.mxu0 0.0
  %254 = vmatpush1.msra.mxu0 0.0
  %255 = vmatprep.subr.mxu0 0.0
  %256 = vmatpush1.msra.mxu0 0.0
  %257 = vmatprep.subr.mxu0 0.0
  %258 = vmatpush1.msra.mxu0 0.0
  %259 = vmatprep.subr.mxu0 0.0
  %260 = vmatpush1.msra.mxu0 0.0
  %261 = vmatprep.subr.mxu0 0.0
  %262 = vmatpush1.msra.mxu0 0.0
  %263 = vmatprep.subr.mxu0 0.0
  %264 = vmatpush1.msra.mxu0 0.0
  %265 = vmatprep.subr.mxu0 0.0
  %266 = vmatpush1.msra.mxu0 0.0
  %267 = vmatprep.subr.mxu0 0.0
  %268 = vmatpush1.msra.mxu0 0.0
  %269 = vmatprep.subr.mxu0 0.0
  %270 = vmatpush1.msra.mxu0 0.0
  %271 = vmatprep.subr.mxu0 0.0
  %272 = vmatpush1.msra.mxu0 0.0
  %273 = vmatprep.subr.mxu0 0.0
  %274 = vmatpush1.msra.mxu0 0.0
  %275 = vmatprep.subr.mxu0 0.0
  %276 = vmatpush1.msra.mxu0 0.0
  %277 = vmatprep.subr.mxu0 0.0
  %278 = vmatpush1.msra.mxu0 0.0
  %279 = vmatprep.subr.mxu0 0.0
  %280 = vmatpush1.msra.mxu0 0.0
  %281 = vmatprep.subr.mxu0 0.0
  %282 = vmatpush1.msra.mxu0 0.0
  %283 = vmatprep.subr.mxu0 0.0
  %284 = vmatpush1.msra.mxu0 0.0
  %285 = vmatprep.subr.mxu0 0.0
  %286 = vmatpush1.msra.mxu0 0.0
  %287 = vmatprep.subr.mxu0 0.0
  %288 = vmatpush1.msra.mxu0 0.0
  %289 = vmatprep.subr.mxu0 0.0
  %290 = vmatpush1.msra.mxu0 0.0
  %291 = vmatprep.subr.mxu0 0.0
  %292 = vmatpush1.msra.mxu0 0.0
  %293 = vmatprep.subr.mxu0 0.0
  %294 = vmatpush1.msra.mxu0 0.0
  %295 = vmatprep.subr.mxu0 0.0
  %296 = vmatpush1.msra.mxu0 0.0
  %297 = vmatprep.subr.mxu0 0.0
  %298 = vmatpush1.msra.mxu0 0.0
  %299 = vmatprep.subr.mxu0 0.0
  %300 = vmatpush1.msra.mxu0 0.0
  %301 = vmatprep.subr.mxu0 0.0
  %302 = vmatpush1.msra.mxu0 0.0
  %303 = vmatprep.subr.mxu0 0.0
  %304 = vmatpush1.msra.mxu0 0.0
  %305 = vmatprep.subr.mxu0 0.0
  %306 = vmatpush1.msra.mxu0 0.0
  %307 = vmatprep.subr.mxu0 0.0
  %308 = vmatpush1.msra.mxu0 0.0
  %309 = vmatprep.mubr.f32.mxu0 0.0
  %310 = vmatmul.mubr.f32.gmra.mrb[0].mxu0 %v239
  %v311 = vpop.f32.mrb[0].mxu0
  %v312 = vadd.f32 0.0, %v311
  %v313 = vpop.f32.mrb[0].mxu0
  %314 = vdwg.mxu0
  %316 = vset.pattern.permute.xlu0 112
  %317 = vperm.xlu0 %316, %v157
  %v318 = vpop.permute.xlu0 %317
  %321 = vset.pattern.permute.xlu0 112
  %322 = vperm.xlu0 %321, %v162
  %v323 = vpop.permute.xlu0 %322
  %326 = vset.pattern.permute.xlu0 112
  %327 = vperm.xlu0 %326, %v167
  %v328 = vpop.permute.xlu0 %327
  %331 = vset.pattern.permute.xlu0 112
  %332 = vperm.xlu0 %331, %v172
  %v333 = vpop.permute.xlu0 %332
  %336 = vset.pattern.permute.xlu0 112
  %337 = vperm.xlu0 %336, %v177
  %v338 = vpop.permute.xlu0 %337
  %341 = vset.pattern.permute.xlu0 112
  %342 = vperm.xlu0 %341, %v182
  %v343 = vpop.permute.xlu0 %342
  %346 = vset.pattern.permute.xlu0 112
  %347 = vperm.xlu0 %346, %v187
  %v348 = vpop.permute.xlu0 %347
  %351 = vset.pattern.permute.xlu0 112
  %352 = vperm.xlu0 %351, %v192
  %v353 = vpop.permute.xlu0 %352
  %356 = vset.pattern.permute.xlu0 112
  %357 = vperm.xlu0 %356, %v197
  %v358 = vpop.permute.xlu0 %357
  %361 = vset.pattern.permute.xlu0 112
  %362 = vperm.xlu0 %361, %v202
  %v363 = vpop.permute.xlu0 %362
  %366 = vset.pattern.permute.xlu0 112
  %367 = vperm.xlu0 %366, %v207
  %v368 = vpop.permute.xlu0 %367
  %371 = vset.pattern.permute.xlu0 112
  %372 = vperm.xlu0 %371, %v212
  %v373 = vpop.permute.xlu0 %372
  %376 = vset.pattern.permute.xlu0 112
  %377 = vperm.xlu0 %376, %v217
  %v378 = vpop.permute.xlu0 %377
  %381 = vset.pattern.permute.xlu0 112
  %382 = vperm.xlu0 %381, %v222
  %v383 = vpop.permute.xlu0 %382
  %386 = vset.pattern.permute.xlu0 112
  %387 = vperm.xlu0 %386, %v227
  %v388 = vpop.permute.xlu0 %387
  %391 = vset.pattern.permute.xlu0 112
  %392 = vperm.xlu0 %391, %v232
  %v393 = vpop.permute.xlu0 %392
  %v395 = vlaneseq
  %v396 = vshrl.u32 %v395, 7
  %v397 = vsub.s32 0, %v396
  %v398 = vrot.slane %v312, %v397
  %v399 = vadd.f32 %v318, %v398
  %v400 = vadd.f32 %v323, %v398
  %v401 = vadd.f32 %v328, %v398
  %v402 = vadd.f32 %v333, %v398
  %v403 = vadd.f32 %v338, %v398
  %v404 = vadd.f32 %v343, %v398
  %v405 = vadd.f32 %v348, %v398
  %v406 = vadd.f32 %v353, %v398
  %v407 = vadd.f32 %v358, %v398
  %v408 = vadd.f32 %v363, %v398
  %v409 = vadd.f32 %v368, %v398
  %v410 = vadd.f32 %v373, %v398
  %v411 = vadd.f32 %v378, %v398
  %v412 = vadd.f32 %v383, %v398
  %v413 = vadd.f32 %v388, %v398
  %v414 = vadd.f32 %v393, %v398
  %v415 = vmul.f32 %v399, 0.2
  %v416 = vmul.f32 %v400, 0.2
  %v417 = vmul.f32 %v401, 0.2
  %v418 = vmul.f32 %v402, 0.2
  %v419 = vmul.f32 %v403, 0.2
  %v420 = vmul.f32 %v404, 0.2
  %v421 = vmul.f32 %v405, 0.2
  %v422 = vmul.f32 %v406, 0.2
  %v423 = vmul.f32 %v407, 0.2
  %v424 = vmul.f32 %v408, 0.2
  %v425 = vmul.f32 %v409, 0.2
  %v426 = vmul.f32 %v410, 0.2
  %v427 = vmul.f32 %v411, 0.2
  %v428 = vmul.f32 %v412, 0.2
  %v429 = vmul.f32 %v413, 0.2
  %v430 = vmul.f32 %v414, 0.2
  %v431 = vmax.f32 %v399, %v415
  %v432 = vmax.f32 %v400, %v416
  %v433 = vmax.f32 %v401, %v417
  %v434 = vmax.f32 %v402, %v418
  %v435 = vmax.f32 %v403, %v419
  %v436 = vmax.f32 %v404, %v420
  %v437 = vmax.f32 %v405, %v421
  %v438 = vmax.f32 %v406, %v422
  %v439 = vmax.f32 %v407, %v423
  %v440 = vmax.f32 %v408, %v424
  %v441 = vmax.f32 %v409, %v425
  %v442 = vmax.f32 %v410, %v426
  %v443 = vmax.f32 %v411, %v427
  %v444 = vmax.f32 %v412, %v428
  %v445 = vmax.f32 %v413, %v429
  %v446 = vmax.f32 %v414, %v430
  %v447 = vld [vmem:[%s2] sm:$0xff]
  %v448 = vld [vmem:[%s2 + $0x8] sm:$0xff]
  %v449 = vld [vmem:[%s2 + $0x10] sm:$0xff]
  %v450 = vld [vmem:[%s2 + $0x18] sm:$0xff]
  %v451 = vld [vmem:[%s2 + $0x20] sm:$0xff]
  %v452 = vld [vmem:[%s2 + $0x28] sm:$0xff]
  %v453 = vld [vmem:[%s2 + $0x30] sm:$0xff]
  %v454 = vld [vmem:[%s2 + $0x38] sm:$0xff]
  %v455 = vld [vmem:[%s2 + $0x40] sm:$0xff]
  %v456 = vld [vmem:[%s2 + $0x48] sm:$0xff]
  %v457 = vld [vmem:[%s2 + $0x50] sm:$0xff]
  %v458 = vld [vmem:[%s2 + $0x58] sm:$0xff]
  %v459 = vld [vmem:[%s2 + $0x60] sm:$0xff]
  %v460 = vld [vmem:[%s2 + $0x68] sm:$0xff]
  %v461 = vld [vmem:[%s2 + $0x70] sm:$0xff]
  %v462 = vld [vmem:[%s2 + $0x78] sm:$0xff]
  %v463 = vadd.f32 %v431, %v447
  %v464 = vadd.f32 %v432, %v448
  %v465 = vadd.f32 %v433, %v449
  %v466 = vadd.f32 %v434, %v450
  %v467 = vadd.f32 %v435, %v451
  %v468 = vadd.f32 %v436, %v452
  %v469 = vadd.f32 %v437, %v453
  %v470 = vadd.f32 %v438, %v454
  %v471 = vadd.f32 %v439, %v455
  %v472 = vadd.f32 %v440, %v456
  %v473 = vadd.f32 %v441, %v457
  %v474 = vadd.f32 %v442, %v458
  %v475 = vadd.f32 %v443, %v459
  %v476 = vadd.f32 %v444, %v460
  %v477 = vadd.f32 %v445, %v461
  %v478 = vadd.f32 %v446, %v462
  %479 = vmax.xlane.f32.xlu0 %v463
  %v480 = vpop.xlane.xlu0 %479
  %481 = vmax.xlane.f32.xlu0 %v464
  %v482 = vpop.xlane.xlu0 %481
  %483 = vmax.xlane.f32.xlu0 %v465
  %v484 = vpop.xlane.xlu0 %483
  %485 = vmax.xlane.f32.xlu0 %v466
  %v486 = vpop.xlane.xlu0 %485
  %487 = vmax.xlane.f32.xlu0 %v467
  %v488 = vpop.xlane.xlu0 %487
  %489 = vmax.xlane.f32.xlu0 %v468
  %v490 = vpop.xlane.xlu0 %489
  %491 = vmax.xlane.f32.xlu0 %v469
  %v492 = vpop.xlane.xlu0 %491
  %493 = vmax.xlane.f32.xlu0 %v470
  %v494 = vpop.xlane.xlu0 %493
  %495 = vmax.xlane.f32.xlu0 %v471
  %v496 = vpop.xlane.xlu0 %495
  %497 = vmax.xlane.f32.xlu0 %v472
  %v498 = vpop.xlane.xlu0 %497
  %499 = vmax.xlane.f32.xlu0 %v473
  %v500 = vpop.xlane.xlu0 %499
  %501 = vmax.xlane.f32.xlu0 %v474
  %v502 = vpop.xlane.xlu0 %501
  %503 = vmax.xlane.f32.xlu0 %v475
  %v504 = vpop.xlane.xlu0 %503
  %505 = vmax.xlane.f32.xlu0 %v476
  %v506 = vpop.xlane.xlu0 %505
  %507 = vmax.xlane.f32.xlu0 %v477
  %v508 = vpop.xlane.xlu0 %507
  %509 = vmax.xlane.f32.xlu0 %v478
  %v510 = vpop.xlane.xlu0 %509
  %v511 = vsub.f32 %v463, %v480
  %v512 = vsub.f32 %v464, %v482
  %v513 = vsub.f32 %v465, %v484
  %v514 = vsub.f32 %v466, %v486
  %v515 = vsub.f32 %v467, %v488
  %v516 = vsub.f32 %v468, %v490
  %v517 = vsub.f32 %v469, %v492
  %v518 = vsub.f32 %v470, %v494
  %v519 = vsub.f32 %v471, %v496
  %v520 = vsub.f32 %v472, %v498
  %v521 = vsub.f32 %v473, %v500
  %v522 = vsub.f32 %v474, %v502
  %v523 = vsub.f32 %v475, %v504
  %v524 = vsub.f32 %v476, %v506
  %v525 = vsub.f32 %v477, %v508
  %v526 = vsub.f32 %v478, %v510
  %v527 = vmul.f32 %v511, 1.442695
  %v528 = vpow.pop %v527
  %v529 = vmul.f32 %v512, 1.442695
  %v530 = vpow.pop %v529
  %v531 = vmul.f32 %v513, 1.442695
  %v532 = vpow.pop %v531
  %v533 = vmul.f32 %v514, 1.442695
  %v534 = vpow.pop %v533
  %v535 = vmul.f32 %v515, 1.442695
  %v536 = vpow.pop %v535
  %v537 = vmul.f32 %v516, 1.442695
  %v538 = vpow.pop %v537
  %v539 = vmul.f32 %v517, 1.442695
  %v540 = vpow.pop %v539
  %v541 = vmul.f32 %v518, 1.442695
  %v542 = vpow.pop %v541
  %v543 = vmul.f32 %v519, 1.442695
  %v544 = vpow.pop %v543
  %v545 = vmul.f32 %v520, 1.442695
  %v546 = vpow.pop %v545
  %v547 = vmul.f32 %v521, 1.442695
  %v548 = vpow.pop %v547
  %v549 = vmul.f32 %v522, 1.442695
  %v550 = vpow.pop %v549
  %v551 = vmul.f32 %v523, 1.442695
  %v552 = vpow.pop %v551
  %v553 = vmul.f32 %v524, 1.442695
  %v554 = vpow.pop %v553
  %v555 = vmul.f32 %v525, 1.442695
  %v556 = vpow.pop %v555
  %v557 = vmul.f32 %v526, 1.442695
  %v558 = vpow.pop %v557
  %559 = vadd.xlane.f32.xlu0 %v528
  %v560 = vpop.xlane.xlu0 %559
  %561 = vadd.xlane.f32.xlu0 %v530
  %v562 = vpop.xlane.xlu0 %561
  %563 = vadd.xlane.f32.xlu0 %v532
  %v564 = vpop.xlane.xlu0 %563
  %565 = vadd.xlane.f32.xlu0 %v534
  %v566 = vpop.xlane.xlu0 %565
  %567 = vadd.xlane.f32.xlu0 %v536
  %v568 = vpop.xlane.xlu0 %567
  %569 = vadd.xlane.f32.xlu0 %v538
  %v570 = vpop.xlane.xlu0 %569
  %571 = vadd.xlane.f32.xlu0 %v540
  %v572 = vpop.xlane.xlu0 %571
  %573 = vadd.xlane.f32.xlu0 %v542
  %v574 = vpop.xlane.xlu0 %573
  %575 = vadd.xlane.f32.xlu0 %v544
  %v576 = vpop.xlane.xlu0 %575
  %577 = vadd.xlane.f32.xlu0 %v546
  %v578 = vpop.xlane.xlu0 %577
  %579 = vadd.xlane.f32.xlu0 %v548
  %v580 = vpop.xlane.xlu0 %579
  %581 = vadd.xlane.f32.xlu0 %v550
  %v582 = vpop.xlane.xlu0 %581
  %583 = vadd.xlane.f32.xlu0 %v552
  %v584 = vpop.xlane.xlu0 %583
  %585 = vadd.xlane.f32.xlu0 %v554
  %v586 = vpop.xlane.xlu0 %585
  %587 = vadd.xlane.f32.xlu0 %v556
  %v588 = vpop.xlane.xlu0 %587
  %589 = vadd.xlane.f32.xlu0 %v558
  %v590 = vpop.xlane.xlu0 %589
  %v591 = vrcp.pop %v560
  %v592 = vrcp.pop %v562
  %v593 = vrcp.pop %v564
  %v594 = vrcp.pop %v566
  %v595 = vrcp.pop %v568
  %v596 = vrcp.pop %v570
  %v597 = vrcp.pop %v572
  %v598 = vrcp.pop %v574
  %v599 = vrcp.pop %v576
  %v600 = vrcp.pop %v578
  %v601 = vrcp.pop %v580
  %v602 = vrcp.pop %v582
  %v603 = vrcp.pop %v584
  %v604 = vrcp.pop %v586
  %v605 = vrcp.pop %v588
  %v606 = vrcp.pop %v590
  %v607 = vmul.f32 %v528, %v591
  %v608 = vmul.f32 %v530, %v592
  %v609 = vmul.f32 %v532, %v593
  %v610 = vmul.f32 %v534, %v594
  %v611 = vmul.f32 %v536, %v595
  %v612 = vmul.f32 %v538, %v596
  %v613 = vmul.f32 %v540, %v597
  %v614 = vmul.f32 %v542, %v598
  %v615 = vmul.f32 %v544, %v599
  %v616 = vmul.f32 %v546, %v600
  %v617 = vmul.f32 %v548, %v601
  %v618 = vmul.f32 %v550, %v602
  %v619 = vmul.f32 %v552, %v603
  %v620 = vmul.f32 %v554, %v604
  %v621 = vmul.f32 %v556, %v605
  %v622 = vmul.f32 %v558, %v606
  %v623 = vld [vmem:[%s4 + $0x31] sm:$0x1]
  %v624 = vlaneseq
  %v625 = vshrl.u32 %v624, 7
  %v626 = vsub.s32 0, %v625
  %v627 = vrot.slane %v623, %v626
  %628 = vrot.lane.b32.xlu0 %v157, 32
  %v629 = vpop.permute.xlu0 %628
  %630 = vrot.lane.b32.xlu0 %v162, 32
  %v631 = vpop.permute.xlu0 %630
  %632 = vrot.lane.b32.xlu0 %v167, 32
  %v633 = vpop.permute.xlu0 %632
  %634 = vrot.lane.b32.xlu0 %v172, 32
  %v635 = vpop.permute.xlu0 %634
  %636 = vrot.lane.b32.xlu0 %v177, 32
  %v637 = vpop.permute.xlu0 %636
  %638 = vrot.lane.b32.xlu0 %v182, 32
  %v639 = vpop.permute.xlu0 %638
  %640 = vrot.lane.b32.xlu0 %v187, 32
  %v641 = vpop.permute.xlu0 %640
  %642 = vrot.lane.b32.xlu0 %v192, 32
  %v643 = vpop.permute.xlu0 %642
  %644 = vrot.lane.b32.xlu0 %v197, 32
  %v645 = vpop.permute.xlu0 %644
  %646 = vrot.lane.b32.xlu0 %v202, 32
  %v647 = vpop.permute.xlu0 %646
  %648 = vrot.lane.b32.xlu0 %v207, 32
  %v649 = vpop.permute.xlu0 %648
  %650 = vrot.lane.b32.xlu0 %v212, 32
  %v651 = vpop.permute.xlu0 %650
  %652 = vrot.lane.b32.xlu0 %v217, 32
  %v653 = vpop.permute.xlu0 %652
  %654 = vrot.lane.b32.xlu0 %v222, 32
  %v655 = vpop.permute.xlu0 %654
  %656 = vrot.lane.b32.xlu0 %v227, 32
  %v657 = vpop.permute.xlu0 %656
  %658 = vrot.lane.b32.xlu0 %v232, 32
  %v659 = vpop.permute.xlu0 %658
  %676 = vmatprep.subr.mxu0 0.0
  %677 = vmatpush1.msra.mxu0 %v629
  %678 = vmatprep.subr.mxu0 0.0
  %679 = vmatpush1.msra.mxu0 %v631
  %680 = vmatprep.subr.mxu0 0.0
  %681 = vmatpush1.msra.mxu0 %v633
  %682 = vmatprep.subr.mxu0 0.0
  %683 = vmatpush1.msra.mxu0 %v635
  %684 = vmatprep.subr.mxu0 0.0
  %685 = vmatpush1.msra.mxu0 %v637
  %686 = vmatprep.subr.mxu0 0.0
  %687 = vmatpush1.msra.mxu0 %v639
  %688 = vmatprep.subr.mxu0 0.0
  %689 = vmatpush1.msra.mxu0 %v641
  %690 = vmatprep.subr.mxu0 0.0
  %691 = vmatpush1.msra.mxu0 %v643
  %692 = vmatprep.subr.mxu0 0.0
  %693 = vmatpush1.msra.mxu0 %v645
  %694 = vmatprep.subr.mxu0 0.0
  %695 = vmatpush1.msra.mxu0 %v647
  %696 = vmatprep.subr.mxu0 0.0
  %697 = vmatpush1.msra.mxu0 %v649
  %698 = vmatprep.subr.mxu0 0.0
  %699 = vmatpush1.msra.mxu0 %v651
  %700 = vmatprep.subr.mxu0 0.0
  %701 = vmatpush1.msra.mxu0 %v653
  %702 = vmatprep.subr.mxu0 0.0
  %703 = vmatpush1.msra.mxu0 %v655
  %704 = vmatprep.subr.mxu0 0.0
  %705 = vmatpush1.msra.mxu0 %v657
  %706 = vmatprep.subr.mxu0 0.0
  %707 = vmatpush1.msra.mxu0 %v659
  %708 = vmatprep.subr.mxu0 0.0
  %709 = vmatpush1.msra.mxu0 0.0
  %710 = vmatprep.subr.mxu0 0.0
  %711 = vmatpush1.msra.mxu0 0.0
  %712 = vmatprep.subr.mxu0 0.0
  %713 = vmatpush1.msra.mxu0 0.0
  %714 = vmatprep.subr.mxu0 0.0
  %715 = vmatpush1.msra.mxu0 0.0
  %716 = vmatprep.subr.mxu0 0.0
  %717 = vmatpush1.msra.mxu0 0.0
  %718 = vmatprep.subr.mxu0 0.0
  %719 = vmatpush1.msra.mxu0 0.0
  %720 = vmatprep.subr.mxu0 0.0
  %721 = vmatpush1.msra.mxu0 0.0
  %722 = vmatprep.subr.mxu0 0.0
  %723 = vmatpush1.msra.mxu0 0.0
  %724 = vmatprep.subr.mxu0 0.0
  %725 = vmatpush1.msra.mxu0 0.0
  %726 = vmatprep.subr.mxu0 0.0
  %727 = vmatpush1.msra.mxu0 0.0
  %728 = vmatprep.subr.mxu0 0.0
  %729 = vmatpush1.msra.mxu0 0.0
  %730 = vmatprep.subr.mxu0 0.0
  %731 = vmatpush1.msra.mxu0 0.0
  %732 = vmatprep.subr.mxu0 0.0
  %733 = vmatpush1.msra.mxu0 0.0
  %734 = vmatprep.subr.mxu0 0.0
  %735 = vmatpush1.msra.mxu0 0.0
  %736 = vmatprep.subr.mxu0 0.0
  %737 = vmatpush1.msra.mxu0 0.0
  %738 = vmatprep.subr.mxu0 0.0
  %739 = vmatpush1.msra.mxu0 0.0
  %740 = vmatprep.mubr.f32.mxu0 0.0
  %741 = vmatmul.mubr.f32.gmra.mrb[0].mxu0 %v607
  %v742 = vpop.f32.mrb[0].mxu0
  %v743 = vadd.f32 %v627, %v742
  %v744 = vpop.f32.mrb[0].mxu0
  %745 = vmatprep.mubr.f32.mxu0 0.0
  %746 = vmatmul.mubr.f32.gmra.mrb[0].mxu0 %v608
  %v747 = vpop.f32.mrb[0].mxu0
  %v748 = vadd.f32 %v627, %v747
  %v749 = vpop.f32.mrb[0].mxu0
  %750 = vmatprep.mubr.f32.mxu0 0.0
  %751 = vmatmul.mubr.f32.gmra.mrb[0].mxu0 %v609
  %v752 = vpop.f32.mrb[0].mxu0
  %v753 = vadd.f32 %v627, %v752
  %v754 = vpop.f32.mrb[0].mxu0
  %755 = vmatprep.mubr.f32.mxu0 0.0
  %756 = vmatmul.mubr.f32.gmra.mrb[0].mxu0 %v610
  %v757 = vpop.f32.mrb[0].mxu0
  %v758 = vadd.f32 %v627, %v757
  %v759 = vpop.f32.mrb[0].mxu0
  %760 = vmatprep.mubr.f32.mxu0 0.0
  %761 = vmatmul.mubr.f32.gmra.mrb[0].mxu0 %v611
  %v762 = vpop.f32.mrb[0].mxu0
  %v763 = vadd.f32 %v627, %v762
  %v764 = vpop.f32.mrb[0].mxu0
  %765 = vmatprep.mubr.f32.mxu0 0.0
  %766 = vmatmul.mubr.f32.gmra.mrb[0].mxu0 %v612
  %v767 = vpop.f32.mrb[0].mxu0
  %v768 = vadd.f32 %v627, %v767
  %v769 = vpop.f32.mrb[0].mxu0
  %770 = vmatprep.mubr.f32.mxu0 0.0
  %771 = vmatmul.mubr.f32.gmra.mrb[0].mxu0 %v613
  %v772 = vpop.f32.mrb[0].mxu0
  %v773 = vadd.f32 %v627, %v772
  %v774 = vpop.f32.mrb[0].mxu0
  %775 = vmatprep.mubr.f32.mxu0 0.0
  %776 = vmatmul.mubr.f32.gmra.mrb[0].mxu0 %v614
  %v777 = vpop.f32.mrb[0].mxu0
  %v778 = vadd.f32 %v627, %v777
  %v779 = vpop.f32.mrb[0].mxu0
  %780 = vmatprep.mubr.f32.mxu0 0.0
  %781 = vmatmul.mubr.f32.gmra.mrb[0].mxu0 %v615
  %v782 = vpop.f32.mrb[0].mxu0
  %v783 = vadd.f32 %v627, %v782
  %v784 = vpop.f32.mrb[0].mxu0
  %785 = vmatprep.mubr.f32.mxu0 0.0
  %786 = vmatmul.mubr.f32.gmra.mrb[0].mxu0 %v616
  %v787 = vpop.f32.mrb[0].mxu0
  %v788 = vadd.f32 %v627, %v787
  %v789 = vpop.f32.mrb[0].mxu0
  %790 = vmatprep.mubr.f32.mxu0 0.0
  %791 = vmatmul.mubr.f32.gmra.mrb[0].mxu0 %v617
  %v792 = vpop.f32.mrb[0].mxu0
  %v793 = vadd.f32 %v627, %v792
  %v794 = vpop.f32.mrb[0].mxu0
  %795 = vmatprep.mubr.f32.mxu0 0.0
  %796 = vmatmul.mubr.f32.gmra.mrb[0].mxu0 %v618
  %v797 = vpop.f32.mrb[0].mxu0
  %v798 = vadd.f32 %v627, %v797
  %v799 = vpop.f32.mrb[0].mxu0
  %800 = vmatprep.mubr.f32.mxu0 0.0
  %801 = vmatmul.mubr.f32.gmra.mrb[0].mxu0 %v619
  %v802 = vpop.f32.mrb[0].mxu0
  %v803 = vadd.f32 %v627, %v802
  %v804 = vpop.f32.mrb[0].mxu0
  %805 = vmatprep.mubr.f32.mxu0 0.0
  %806 = vmatmul.mubr.f32.gmra.mrb[0].mxu0 %v620
  %v807 = vpop.f32.mrb[0].mxu0
  %v808 = vadd.f32 %v627, %v807
  %v809 = vpop.f32.mrb[0].mxu0
  %810 = vmatprep.mubr.f32.mxu0 0.0
  %811 = vmatmul.mubr.f32.gmra.mrb[0].mxu0 %v621
  %v812 = vpop.f32.mrb[0].mxu0
  %v813 = vadd.f32 %v627, %v812
  %v814 = vpop.f32.mrb[0].mxu0
  %815 = vmatprep.mubr.f32.mxu0 0.0
  %816 = vmatmul.mubr.f32.gmra.mrb[0].mxu0 %v622
  %v817 = vpop.f32.mrb[0].mxu0
  %v818 = vadd.f32 %v627, %v817
  %v819 = vpop.f32.mrb[0].mxu0
  %820 = vdwg.mxu0
  %v821 = vmax.f32 %v743, 0.0
  %v822 = vmax.f32 %v748, 0.0
  %v823 = vmax.f32 %v753, 0.0
  %v824 = vmax.f32 %v758, 0.0
  %v825 = vmax.f32 %v763, 0.0
  %v826 = vmax.f32 %v768, 0.0
  %v827 = vmax.f32 %v773, 0.0
  %v828 = vmax.f32 %v778, 0.0
  %v829 = vmax.f32 %v783, 0.0
  %v830 = vmax.f32 %v788, 0.0
  %v831 = vmax.f32 %v793, 0.0
  %v832 = vmax.f32 %v798, 0.0
  %v833 = vmax.f32 %v803, 0.0
  %v834 = vmax.f32 %v808, 0.0
  %v835 = vmax.f32 %v813, 0.0
  %v836 = vmax.f32 %v818, 0.0
  %vm837 = vcmask 64512
  %838 = vst.msk [vmem:[#allocation2] sm:$0xff] %vm837, %v821
  %839 = vst.msk [vmem:[#allocation2 + $0x8] sm:$0xff] %vm837, %v822
  %840 = vst.msk [vmem:[#allocation2 + $0x10] sm:$0xff] %vm837, %v823
  %841 = vst.msk [vmem:[#allocation2 + $0x18] sm:$0xff] %vm837, %v824
  %842 = vst.msk [vmem:[#allocation2 + $0x20] sm:$0xff] %vm837, %v825
  %843 = vst.msk [vmem:[#allocation2 + $0x28] sm:$0xff] %vm837, %v826
  %844 = vst.msk [vmem:[#allocation2 + $0x30] sm:$0xff] %vm837, %v827
  %845 = vst.msk [vmem:[#allocation2 + $0x38] sm:$0xff] %vm837, %v828
  %846 = vst.msk [vmem:[#allocation2 + $0x40] sm:$0xff] %vm837, %v829
  %847 = vst.msk [vmem:[#allocation2 + $0x48] sm:$0xff] %vm837, %v830
  %848 = vst.msk [vmem:[#allocation2 + $0x50] sm:$0xff] %vm837, %v831
  %849 = vst.msk [vmem:[#allocation2 + $0x58] sm:$0xff] %vm837, %v832
  %850 = vst.msk [vmem:[#allocation2 + $0x60] sm:$0xff] %vm837, %v833
  %851 = vst.msk [vmem:[#allocation2 + $0x68] sm:$0xff] %vm837, %v834
  %852 = vst.msk [vmem:[#allocation2 + $0x70] sm:$0xff] %vm837, %v835
  %853 = vst.msk [vmem:[#allocation2 + $0x78] sm:$0xff] %vm837, %v836
  %854 = vset.pattern.permute.xlu0 113
  %855 = vperm.xlu0 %854, %v157
  %v856 = vpop.permute.xlu0 %855
  %858 = vset.pattern.permute.xlu0 113
  %859 = vperm.xlu0 %858, %v162
  %v860 = vpop.permute.xlu0 %859
  %862 = vset.pattern.permute.xlu0 113
  %863 = vperm.xlu0 %862, %v167
  %v864 = vpop.permute.xlu0 %863
  %866 = vset.pattern.permute.xlu0 113
  %867 = vperm.xlu0 %866, %v172
  %v868 = vpop.permute.xlu0 %867
  %870 = vset.pattern.permute.xlu0 113
  %871 = vperm.xlu0 %870, %v177
  %v872 = vpop.permute.xlu0 %871
  %874 = vset.pattern.permute.xlu0 113
  %875 = vperm.xlu0 %874, %v182
  %v876 = vpop.permute.xlu0 %875
  %878 = vset.pattern.permute.xlu0 113
  %879 = vperm.xlu0 %878, %v187
  %v880 = vpop.permute.xlu0 %879
  %882 = vset.pattern.permute.xlu0 113
  %883 = vperm.xlu0 %882, %v192
  %v884 = vpop.permute.xlu0 %883
  %886 = vset.pattern.permute.xlu0 113
  %887 = vperm.xlu0 %886, %v197
  %v888 = vpop.permute.xlu0 %887
  %890 = vset.pattern.permute.xlu0 113
  %891 = vperm.xlu0 %890, %v202
  %v892 = vpop.permute.xlu0 %891
  %894 = vset.pattern.permute.xlu0 113
  %895 = vperm.xlu0 %894, %v207
  %v896 = vpop.permute.xlu0 %895
  %898 = vset.pattern.permute.xlu0 113
  %899 = vperm.xlu0 %898, %v212
  %v900 = vpop.permute.xlu0 %899
  %902 = vset.pattern.permute.xlu0 113
  %903 = vperm.xlu0 %902, %v217
  %v904 = vpop.permute.xlu0 %903
  %906 = vset.pattern.permute.xlu0 113
  %907 = vperm.xlu0 %906, %v222
  %v908 = vpop.permute.xlu0 %907
  %910 = vset.pattern.permute.xlu0 113
  %911 = vperm.xlu0 %910, %v227
  %v912 = vpop.permute.xlu0 %911
  %914 = vset.pattern.permute.xlu0 113
  %915 = vperm.xlu0 %914, %v232
  %v916 = vpop.permute.xlu0 %915
  %v918 = vlaneseq
  %v919 = vshrl.u32 %v918, 7
  %v920 = vsub.s32 1, %v919
  %v921 = vrot.slane %v312, %v920
  %v922 = vadd.f32 %v856, %v921
  %v923 = vadd.f32 %v860, %v921
  %v924 = vadd.f32 %v864, %v921
  %v925 = vadd.f32 %v868, %v921
  %v926 = vadd.f32 %v872, %v921
  %v927 = vadd.f32 %v876, %v921
  %v928 = vadd.f32 %v880, %v921
  %v929 = vadd.f32 %v884, %v921
  %v930 = vadd.f32 %v888, %v921
  %v931 = vadd.f32 %v892, %v921
  %v932 = vadd.f32 %v896, %v921
  %v933 = vadd.f32 %v900, %v921
  %v934 = vadd.f32 %v904, %v921
  %v935 = vadd.f32 %v908, %v921
  %v936 = vadd.f32 %v912, %v921
  %v937 = vadd.f32 %v916, %v921
  %v938 = vmul.f32 %v922, 0.2
  %v939 = vmul.f32 %v923, 0.2
  %v940 = vmul.f32 %v924, 0.2
  %v941 = vmul.f32 %v925, 0.2
  %v942 = vmul.f32 %v926, 0.2
  %v943 = vmul.f32 %v927, 0.2
  %v944 = vmul.f32 %v928, 0.2
  %v945 = vmul.f32 %v929, 0.2
  %v946 = vmul.f32 %v930, 0.2
  %v947 = vmul.f32 %v931, 0.2
  %v948 = vmul.f32 %v932, 0.2
  %v949 = vmul.f32 %v933, 0.2
  %v950 = vmul.f32 %v934, 0.2
  %v951 = vmul.f32 %v935, 0.2
  %v952 = vmul.f32 %v936, 0.2
  %v953 = vmul.f32 %v937, 0.2
  %v954 = vmax.f32 %v922, %v938
  %v955 = vmax.f32 %v923, %v939
  %v956 = vmax.f32 %v924, %v940
  %v957 = vmax.f32 %v925, %v941
  %v958 = vmax.f32 %v926, %v942
  %v959 = vmax.f32 %v927, %v943
  %v960 = vmax.f32 %v928, %v944
  %v961 = vmax.f32 %v929, %v945
  %v962 = vmax.f32 %v930, %v946
  %v963 = vmax.f32 %v931, %v947
  %v964 = vmax.f32 %v932, %v948
  %v965 = vmax.f32 %v933, %v949
  %v966 = vmax.f32 %v934, %v950
  %v967 = vmax.f32 %v935, %v951
  %v968 = vmax.f32 %v936, %v952
  %v969 = vmax.f32 %v937, %v953
  %v970 = vld [vmem:[%s2] sm:$0xff]
  %v971 = vld [vmem:[%s2 + $0x8] sm:$0xff]
  %v972 = vld [vmem:[%s2 + $0x10] sm:$0xff]
  %v973 = vld [vmem:[%s2 + $0x18] sm:$0xff]
  %v974 = vld [vmem:[%s2 + $0x20] sm:$0xff]
  %v975 = vld [vmem:[%s2 + $0x28] sm:$0xff]
  %v976 = vld [vmem:[%s2 + $0x30] sm:$0xff]
  %v977 = vld [vmem:[%s2 + $0x38] sm:$0xff]
  %v978 = vld [vmem:[%s2 + $0x40] sm:$0xff]
  %v979 = vld [vmem:[%s2 + $0x48] sm:$0xff]
  %v980 = vld [vmem:[%s2 + $0x50] sm:$0xff]
  %v981 = vld [vmem:[%s2 + $0x58] sm:$0xff]
  %v982 = vld [vmem:[%s2 + $0x60] sm:$0xff]
  %v983 = vld [vmem:[%s2 + $0x68] sm:$0xff]
  %v984 = vld [vmem:[%s2 + $0x70] sm:$0xff]
  %v985 = vld [vmem:[%s2 + $0x78] sm:$0xff]
  %v986 = vadd.f32 %v954, %v970
  %v987 = vadd.f32 %v955, %v971
  %v988 = vadd.f32 %v956, %v972
  %v989 = vadd.f32 %v957, %v973
  %v990 = vadd.f32 %v958, %v974
  %v991 = vadd.f32 %v959, %v975
  %v992 = vadd.f32 %v960, %v976
  %v993 = vadd.f32 %v961, %v977
  %v994 = vadd.f32 %v962, %v978
  %v995 = vadd.f32 %v963, %v979
  %v996 = vadd.f32 %v964, %v980
  %v997 = vadd.f32 %v965, %v981
  %v998 = vadd.f32 %v966, %v982
  %v999 = vadd.f32 %v967, %v983
  %v1000 = vadd.f32 %v968, %v984
  %v1001 = vadd.f32 %v969, %v985
  %1002 = vmax.xlane.f32.xlu0 %v986
  %v1003 = vpop.xlane.xlu0 %1002
  %1004 = vmax.xlane.f32.xlu0 %v987
  %v1005 = vpop.xlane.xlu0 %1004
  %1006 = vmax.xlane.f32.xlu0 %v988
  %v1007 = vpop.xlane.xlu0 %1006
  %1008 = vmax.xlane.f32.xlu0 %v989
  %v1009 = vpop.xlane.xlu0 %1008
  %1010 = vmax.xlane.f32.xlu0 %v990
  %v1011 = vpop.xlane.xlu0 %1010
  %1012 = vmax.xlane.f32.xlu0 %v991
  %v1013 = vpop.xlane.xlu0 %1012
  %1014 = vmax.xlane.f32.xlu0 %v992
  %v1015 = vpop.xlane.xlu0 %1014
  %1016 = vmax.xlane.f32.xlu0 %v993
  %v1017 = vpop.xlane.xlu0 %1016
  %1018 = vmax.xlane.f32.xlu0 %v994
  %v1019 = vpop.xlane.xlu0 %1018
  %1020 = vmax.xlane.f32.xlu0 %v995
  %v1021 = vpop.xlane.xlu0 %1020
  %1022 = vmax.xlane.f32.xlu0 %v996
  %v1023 = vpop.xlane.xlu0 %1022
  %1024 = vmax.xlane.f32.xlu0 %v997
  %v1025 = vpop.xlane.xlu0 %1024
  %1026 = vmax.xlane.f32.xlu0 %v998
  %v1027 = vpop.xlane.xlu0 %1026
  %1028 = vmax.xlane.f32.xlu0 %v999
  %v1029 = vpop.xlane.xlu0 %1028
  %1030 = vmax.xlane.f32.xlu0 %v1000
  %v1031 = vpop.xlane.xlu0 %1030
  %1032 = vmax.xlane.f32.xlu0 %v1001
  %v1033 = vpop.xlane.xlu0 %1032
  %v1034 = vsub.f32 %v986, %v1003
  %v1035 = vsub.f32 %v987, %v1005
  %v1036 = vsub.f32 %v988, %v1007
  %v1037 = vsub.f32 %v989, %v1009
  %v1038 = vsub.f32 %v990, %v1011
  %v1039 = vsub.f32 %v991, %v1013
  %v1040 = vsub.f32 %v992, %v1015
  %v1041 = vsub.f32 %v993, %v1017
  %v1042 = vsub.f32 %v994, %v1019
  %v1043 = vsub.f32 %v995, %v1021
  %v1044 = vsub.f32 %v996, %v1023
  %v1045 = vsub.f32 %v997, %v1025
  %v1046 = vsub.f32 %v998, %v1027
  %v1047 = vsub.f32 %v999, %v1029
  %v1048 = vsub.f32 %v1000, %v1031
  %v1049 = vsub.f32 %v1001, %v1033
  %v1050 = vmul.f32 %v1034, 1.442695
  %v1051 = vpow.pop %v1050
  %v1052 = vmul.f32 %v1035, 1.442695
  %v1053 = vpow.pop %v1052
  %v1054 = vmul.f32 %v1036, 1.442695
  %v1055 = vpow.pop %v1054
  %v1056 = vmul.f32 %v1037, 1.442695
  %v1057 = vpow.pop %v1056
  %v1058 = vmul.f32 %v1038, 1.442695
  %v1059 = vpow.pop %v1058
  %v1060 = vmul.f32 %v1039, 1.442695
  %v1061 = vpow.pop %v1060
  %v1062 = vmul.f32 %v1040, 1.442695
  %v1063 = vpow.pop %v1062
  %v1064 = vmul.f32 %v1041, 1.442695
  %v1065 = vpow.pop %v1064
  %v1066 = vmul.f32 %v1042, 1.442695
  %v1067 = vpow.pop %v1066
  %v1068 = vmul.f32 %v1043, 1.442695
  %v1069 = vpow.pop %v1068
  %v1070 = vmul.f32 %v1044, 1.442695
  %v1071 = vpow.pop %v1070
  %v1072 = vmul.f32 %v1045, 1.442695
  %v1073 = vpow.pop %v1072
  %v1074 = vmul.f32 %v1046, 1.442695
  %v1075 = vpow.pop %v1074
  %v1076 = vmul.f32 %v1047, 1.442695
  %v1077 = vpow.pop %v1076
  %v1078 = vmul.f32 %v1048, 1.442695
  %v1079 = vpow.pop %v1078
  %v1080 = vmul.f32 %v1049, 1.442695
  %v1081 = vpow.pop %v1080
  %1082 = vadd.xlane.f32.xlu0 %v1051
  %v1083 = vpop.xlane.xlu0 %1082
  %1084 = vadd.xlane.f32.xlu0 %v1053
  %v1085 = vpop.xlane.xlu0 %1084
  %1086 = vadd.xlane.f32.xlu0 %v1055
  %v1087 = vpop.xlane.xlu0 %1086
  %1088 = vadd.xlane.f32.xlu0 %v1057
  %v1089 = vpop.xlane.xlu0 %1088
  %1090 = vadd.xlane.f32.xlu0 %v1059
  %v1091 = vpop.xlane.xlu0 %1090
  %1092 = vadd.xlane.f32.xlu0 %v1061
  %v1093 = vpop.xlane.xlu0 %1092
  %1094 = vadd.xlane.f32.xlu0 %v1063
  %v1095 = vpop.xlane.xlu0 %1094
  %1096 = vadd.xlane.f32.xlu0 %v1065
  %v1097 = vpop.xlane.xlu0 %1096
  %1098 = vadd.xlane.f32.xlu0 %v1067
  %v1099 = vpop.xlane.xlu0 %1098
  %1100 = vadd.xlane.f32.xlu0 %v1069
  %v1101 = vpop.xlane.xlu0 %1100
  %1102 = vadd.xlane.f32.xlu0 %v1071
  %v1103 = vpop.xlane.xlu0 %1102
  %1104 = vadd.xlane.f32.xlu0 %v1073
  %v1105 = vpop.xlane.xlu0 %1104
  %1106 = vadd.xlane.f32.xlu0 %v1075
  %v1107 = vpop.xlane.xlu0 %1106
  %1108 = vadd.xlane.f32.xlu0 %v1077
  %v1109 = vpop.xlane.xlu0 %1108
  %1110 = vadd.xlane.f32.xlu0 %v1079
  %v1111 = vpop.xlane.xlu0 %1110
  %1112 = vadd.xlane.f32.xlu0 %v1081
  %v1113 = vpop.xlane.xlu0 %1112
  %v1114 = vrcp.pop %v1083
  %v1115 = vrcp.pop %v1085
  %v1116 = vrcp.pop %v1087
  %v1117 = vrcp.pop %v1089
  %v1118 = vrcp.pop %v1091
  %v1119 = vrcp.pop %v1093
  %v1120 = vrcp.pop %v1095
  %v1121 = vrcp.pop %v1097
  %v1122 = vrcp.pop %v1099
  %v1123 = vrcp.pop %v1101
  %v1124 = vrcp.pop %v1103
  %v1125 = vrcp.pop %v1105
  %v1126 = vrcp.pop %v1107
  %v1127 = vrcp.pop %v1109
  %v1128 = vrcp.pop %v1111
  %v1129 = vrcp.pop %v1113
  %v1130 = vmul.f32 %v1051, %v1114
  %v1131 = vmul.f32 %v1053, %v1115
  %v1132 = vmul.f32 %v1055, %v1116
  %v1133 = vmul.f32 %v1057, %v1117
  %v1134 = vmul.f32 %v1059, %v1118
  %v1135 = vmul.f32 %v1061, %v1119
  %v1136 = vmul.f32 %v1063, %v1120
  %v1137 = vmul.f32 %v1065, %v1121
  %v1138 = vmul.f32 %v1067, %v1122
  %v1139 = vmul.f32 %v1069, %v1123
  %v1140 = vmul.f32 %v1071, %v1124
  %v1141 = vmul.f32 %v1073, %v1125
  %v1142 = vmul.f32 %v1075, %v1126
  %v1143 = vmul.f32 %v1077, %v1127
  %v1144 = vmul.f32 %v1079, %v1128
  %v1145 = vmul.f32 %v1081, %v1129
  %v1146 = vld [vmem:[%s4 + $0x31] sm:$0x1]
  %v1147 = vlaneseq
  %v1148 = vshrl.u32 %v1147, 7
  %v1149 = vsub.s32 0, %v1148
  %v1150 = vrot.slane %v1146, %v1149
  %1151 = vrot.lane.b32.xlu0 %v157, 24
  %v1152 = vpop.permute.xlu0 %1151
  %1153 = vrot.lane.b32.xlu0 %v162, 24
  %v1154 = vpop.permute.xlu0 %1153
  %1155 = vrot.lane.b32.xlu0 %v167, 24
  %v1156 = vpop.permute.xlu0 %1155
  %1157 = vrot.lane.b32.xlu0 %v172, 24
  %v1158 = vpop.permute.xlu0 %1157
  %1159 = vrot.lane.b32.xlu0 %v177, 24
  %v1160 = vpop.permute.xlu0 %1159
  %1161 = vrot.lane.b32.xlu0 %v182, 24
  %v1162 = vpop.permute.xlu0 %1161
  %1163 = vrot.lane.b32.xlu0 %v187, 24
  %v1164 = vpop.permute.xlu0 %1163
  %1165 = vrot.lane.b32.xlu0 %v192, 24
  %v1166 = vpop.permute.xlu0 %1165
  %1167 = vrot.lane.b32.xlu0 %v197, 24
  %v1168 = vpop.permute.xlu0 %1167
  %1169 = vrot.lane.b32.xlu0 %v202, 24
  %v1170 = vpop.permute.xlu0 %1169
  %1171 = vrot.lane.b32.xlu0 %v207, 24
  %v1172 = vpop.permute.xlu0 %1171
  %1173 = vrot.lane.b32.xlu0 %v212, 24
  %v1174 = vpop.permute.xlu0 %1173
  %1175 = vrot.lane.b32.xlu0 %v217, 24
  %v1176 = vpop.permute.xlu0 %1175
  %1177 = vrot.lane.b32.xlu0 %v222, 24
  %v1178 = vpop.permute.xlu0 %1177
  %1179 = vrot.lane.b32.xlu0 %v227, 24
  %v1180 = vpop.permute.xlu0 %1179
  %1181 = vrot.lane.b32.xlu0 %v232, 24
  %v1182 = vpop.permute.xlu0 %1181
  %1200 = vrot.lane.b32.xlu0 %v1150, 120
  %v1201 = vpop.permute.xlu0 %1200
  %1203 = vmatprep.subr.mxu0 0.0
  %1204 = vmatpush1.msra.mxu0 %v1152
  %1205 = vmatprep.subr.mxu0 0.0
  %1206 = vmatpush1.msra.mxu0 %v1154
  %1207 = vmatprep.subr.mxu0 0.0
  %1208 = vmatpush1.msra.mxu0 %v1156
  %1209 = vmatprep.subr.mxu0 0.0
  %1210 = vmatpush1.msra.mxu0 %v1158
  %1211 = vmatprep.subr.mxu0 0.0
  %1212 = vmatpush1.msra.mxu0 %v1160
  %1213 = vmatprep.subr.mxu0 0.0
  %1214 = vmatpush1.msra.mxu0 %v1162
  %1215 = vmatprep.subr.mxu0 0.0
  %1216 = vmatpush1.msra.mxu0 %v1164
  %1217 = vmatprep.subr.mxu0 0.0
  %1218 = vmatpush1.msra.mxu0 %v1166
  %1219 = vmatprep.subr.mxu0 0.0
  %1220 = vmatpush1.msra.mxu0 %v1168
  %1221 = vmatprep.subr.mxu0 0.0
  %1222 = vmatpush1.msra.mxu0 %v1170
  %1223 = vmatprep.subr.mxu0 0.0
  %1224 = vmatpush1.msra.mxu0 %v1172
  %1225 = vmatprep.subr.mxu0 0.0
  %1226 = vmatpush1.msra.mxu0 %v1174
  %1227 = vmatprep.subr.mxu0 0.0
  %1228 = vmatpush1.msra.mxu0 %v1176
  %1229 = vmatprep.subr.mxu0 0.0
  %1230 = vmatpush1.msra.mxu0 %v1178
  %1231 = vmatprep.subr.mxu0 0.0
  %1232 = vmatpush1.msra.mxu0 %v1180
  %1233 = vmatprep.subr.mxu0 0.0
  %1234 = vmatpush1.msra.mxu0 %v1182
  %1235 = vmatprep.subr.mxu0 0.0
  %1236 = vmatpush1.msra.mxu0 0.0
  %1237 = vmatprep.subr.mxu0 0.0
  %1238 = vmatpush1.msra.mxu0 0.0
  %1239 = vmatprep.subr.mxu0 0.0
  %1240 = vmatpush1.msra.mxu0 0.0
  %1241 = vmatprep.subr.mxu0 0.0
  %1242 = vmatpush1.msra.mxu0 0.0
  %1243 = vmatprep.subr.mxu0 0.0
  %1244 = vmatpush1.msra.mxu0 0.0
  %1245 = vmatprep.subr.mxu0 0.0
  %1246 = vmatpush1.msra.mxu0 0.0
  %1247 = vmatprep.subr.mxu0 0.0
  %1248 = vmatpush1.msra.mxu0 0.0
  %1249 = vmatprep.subr.mxu0 0.0
  %1250 = vmatpush1.msra.mxu0 0.0
  %1251 = vmatprep.subr.mxu0 0.0
  %1252 = vmatpush1.msra.mxu0 0.0
  %1253 = vmatprep.subr.mxu0 0.0
  %1254 = vmatpush1.msra.mxu0 0.0
  %1255 = vmatprep.subr.mxu0 0.0
  %1256 = vmatpush1.msra.mxu0 0.0
  %1257 = vmatprep.subr.mxu0 0.0
  %1258 = vmatpush1.msra.mxu0 0.0
  %1259 = vmatprep.subr.mxu0 0.0
  %1260 = vmatpush1.msra.mxu0 0.0
  %1261 = vmatprep.subr.mxu0 0.0
  %1262 = vmatpush1.msra.mxu0 0.0
  %1263 = vmatprep.subr.mxu0 0.0
  %1264 = vmatpush1.msra.mxu0 0.0
  %1265 = vmatprep.subr.mxu0 0.0
  %1266 = vmatpush1.msra.mxu0 0.0
  %1267 = vmatprep.mubr.f32.mxu0 0.0
  %1268 = vmatmul.mubr.f32.gmra.mrb[0].mxu0 %v1130
  %v1269 = vpop.f32.mrb[0].mxu0
  %v1270 = vadd.f32 %v1201, %v1269
  %v1271 = vpop.f32.mrb[0].mxu0
  %1272 = vmatprep.mubr.f32.mxu0 0.0
  %1273 = vmatmul.mubr.f32.gmra.mrb[0].mxu0 %v1131
  %v1274 = vpop.f32.mrb[0].mxu0
  %v1275 = vadd.f32 %v1201, %v1274
  %v1276 = vpop.f32.mrb[0].mxu0
  %1277 = vmatprep.mubr.f32.mxu0 0.0
  %1278 = vmatmul.mubr.f32.gmra.mrb[0].mxu0 %v1132
  %v1279 = vpop.f32.mrb[0].mxu0
  %v1280 = vadd.f32 %v1201, %v1279
  %v1281 = vpop.f32.mrb[0].mxu0
  %1282 = vmatprep.mubr.f32.mxu0 0.0
  %1283 = vmatmul.mubr.f32.gmra.mrb[0].mxu0 %v1133
  %v1284 = vpop.f32.mrb[0].mxu0
  %v1285 = vadd.f32 %v1201, %v1284
  %v1286 = vpop.f32.mrb[0].mxu0
  %1287 = vmatprep.mubr.f32.mxu0 0.0
  %1288 = vmatmul.mubr.f32.gmra.mrb[0].mxu0 %v1134
  %v1289 = vpop.f32.mrb[0].mxu0
  %v1290 = vadd.f32 %v1201, %v1289
  %v1291 = vpop.f32.mrb[0].mxu0
  %1292 = vmatprep.mubr.f32.mxu0 0.0
  %1293 = vmatmul.mubr.f32.gmra.mrb[0].mxu0 %v1135
  %v1294 = vpop.f32.mrb[0].mxu0
  %v1295 = vadd.f32 %v1201, %v1294
  %v1296 = vpop.f32.mrb[0].mxu0
  %1297 = vmatprep.mubr.f32.mxu0 0.0
  %1298 = vmatmul.mubr.f32.gmra.mrb[0].mxu0 %v1136
  %v1299 = vpop.f32.mrb[0].mxu0
  %v1300 = vadd.f32 %v1201, %v1299
  %v1301 = vpop.f32.mrb[0].mxu0
  %1302 = vmatprep.mubr.f32.mxu0 0.0
  %1303 = vmatmul.mubr.f32.gmra.mrb[0].mxu0 %v1137
  %v1304 = vpop.f32.mrb[0].mxu0
  %v1305 = vadd.f32 %v1201, %v1304
  %v1306 = vpop.f32.mrb[0].mxu0
  %1307 = vmatprep.mubr.f32.mxu0 0.0
  %1308 = vmatmul.mubr.f32.gmra.mrb[0].mxu0 %v1138
  %v1309 = vpop.f32.mrb[0].mxu0
  %v1310 = vadd.f32 %v1201, %v1309
  %v1311 = vpop.f32.mrb[0].mxu0
  %1312 = vmatprep.mubr.f32.mxu0 0.0
  %1313 = vmatmul.mubr.f32.gmra.mrb[0].mxu0 %v1139
  %v1314 = vpop.f32.mrb[0].mxu0
  %v1315 = vadd.f32 %v1201, %v1314
  %v1316 = vpop.f32.mrb[0].mxu0
  %1317 = vmatprep.mubr.f32.mxu0 0.0
  %1318 = vmatmul.mubr.f32.gmra.mrb[0].mxu0 %v1140
  %v1319 = vpop.f32.mrb[0].mxu0
  %v1320 = vadd.f32 %v1201, %v1319
  %v1321 = vpop.f32.mrb[0].mxu0
  %1322 = vmatprep.mubr.f32.mxu0 0.0
  %1323 = vmatmul.mubr.f32.gmra.mrb[0].mxu0 %v1141
  %v1324 = vpop.f32.mrb[0].mxu0
  %v1325 = vadd.f32 %v1201, %v1324
  %v1326 = vpop.f32.mrb[0].mxu0
  %1327 = vmatprep.mubr.f32.mxu0 0.0
  %1328 = vmatmul.mubr.f32.gmra.mrb[0].mxu0 %v1142
  %v1329 = vpop.f32.mrb[0].mxu0
  %v1330 = vadd.f32 %v1201, %v1329
  %v1331 = vpop.f32.mrb[0].mxu0
  %1332 = vmatprep.mubr.f32.mxu0 0.0
  %1333 = vmatmul.mubr.f32.gmra.mrb[0].mxu0 %v1143
  %v1334 = vpop.f32.mrb[0].mxu0
  %v1335 = vadd.f32 %v1201, %v1334
  %v1336 = vpop.f32.mrb[0].mxu0
  %1337 = vmatprep.mubr.f32.mxu0 0.0
  %1338 = vmatmul.mubr.f32.gmra.mrb[0].mxu0 %v1144
  %v1339 = vpop.f32.mrb[0].mxu0
  %v1340 = vadd.f32 %v1201, %v1339
  %v1341 = vpop.f32.mrb[0].mxu0
  %1342 = vmatprep.mubr.f32.mxu0 0.0
  %1343 = vmatmul.mubr.f32.gmra.mrb[0].mxu0 %v1145
  %v1344 = vpop.f32.mrb[0].mxu0
  %v1345 = vadd.f32 %v1201, %v1344
  %v1346 = vpop.f32.mrb[0].mxu0
  %1347 = vdwg.mxu0
  %v1348 = vmax.f32 %v1270, 0.0
  %v1349 = vmax.f32 %v1275, 0.0
  %v1350 = vmax.f32 %v1280, 0.0
  %v1351 = vmax.f32 %v1285, 0.0
  %v1352 = vmax.f32 %v1290, 0.0
  %v1353 = vmax.f32 %v1295, 0.0
  %v1354 = vmax.f32 %v1300, 0.0
  %v1355 = vmax.f32 %v1305, 0.0
  %v1356 = vmax.f32 %v1310, 0.0
  %v1357 = vmax.f32 %v1315, 0.0
  %v1358 = vmax.f32 %v1320, 0.0
  %v1359 = vmax.f32 %v1325, 0.0
  %v1360 = vmax.f32 %v1330, 0.0
  %v1361 = vmax.f32 %v1335, 0.0
  %v1362 = vmax.f32 %v1340, 0.0
  %v1363 = vmax.f32 %v1345, 0.0
  %1380 = vrot.lane.b32.xlu0 %v1348, 8
  %v1381 = vpop.permute.xlu0 %1380
  %1382 = vrot.lane.b32.xlu0 %v1349, 8
  %v1383 = vpop.permute.xlu0 %1382
  %1384 = vrot.lane.b32.xlu0 %v1350, 8
  %v1385 = vpop.permute.xlu0 %1384
  %1386 = vrot.lane.b32.xlu0 %v1351, 8
  %v1387 = vpop.permute.xlu0 %1386
  %1388 = vrot.lane.b32.xlu0 %v1352, 8
  %v1389 = vpop.permute.xlu0 %1388
  %1390 = vrot.lane.b32.xlu0 %v1353, 8
  %v1391 = vpop.permute.xlu0 %1390
  %1392 = vrot.lane.b32.xlu0 %v1354, 8
  %v1393 = vpop.permute.xlu0 %1392
  %1394 = vrot.lane.b32.xlu0 %v1355, 8
  %v1395 = vpop.permute.xlu0 %1394
  %1396 = vrot.lane.b32.xlu0 %v1356, 8
  %v1397 = vpop.permute.xlu0 %1396
  %1398 = vrot.lane.b32.xlu0 %v1357, 8
  %v1399 = vpop.permute.xlu0 %1398
  %1400 = vrot.lane.b32.xlu0 %v1358, 8
  %v1401 = vpop.permute.xlu0 %1400
  %1402 = vrot.lane.b32.xlu0 %v1359, 8
  %v1403 = vpop.permute.xlu0 %1402
  %1404 = vrot.lane.b32.xlu0 %v1360, 8
  %v1405 = vpop.permute.xlu0 %1404
  %1406 = vrot.lane.b32.xlu0 %v1361, 8
  %v1407 = vpop.permute.xlu0 %1406
  %1408 = vrot.lane.b32.xlu0 %v1362, 8
  %v1409 = vpop.permute.xlu0 %1408
  %1410 = vrot.lane.b32.xlu0 %v1363, 8
  %v1411 = vpop.permute.xlu0 %1410
  %vm1428 = vcmask 130112
  %1429 = vst.msk [vmem:[#allocation2] sm:$0xff] %vm1428, %v1381
  %1430 = vst.msk [vmem:[#allocation2 + $0x8] sm:$0xff] %vm1428, %v1383
  %1431 = vst.msk [vmem:[#allocation2 + $0x10] sm:$0xff] %vm1428, %v1385
  %1432 = vst.msk [vmem:[#allocation2 + $0x18] sm:$0xff] %vm1428, %v1387
  %1433 = vst.msk [vmem:[#allocation2 + $0x20] sm:$0xff] %vm1428, %v1389
  %1434 = vst.msk [vmem:[#allocation2 + $0x28] sm:$0xff] %vm1428, %v1391
  %1435 = vst.msk [vmem:[#allocation2 + $0x30] sm:$0xff] %vm1428, %v1393
  %1436 = vst.msk [vmem:[#allocation2 + $0x38] sm:$0xff] %vm1428, %v1395
  %1437 = vst.msk [vmem:[#allocation2 + $0x40] sm:$0xff] %vm1428, %v1397
  %1438 = vst.msk [vmem:[#allocation2 + $0x48] sm:$0xff] %vm1428, %v1399
  %1439 = vst.msk [vmem:[#allocation2 + $0x50] sm:$0xff] %vm1428, %v1401
  %1440 = vst.msk [vmem:[#allocation2 + $0x58] sm:$0xff] %vm1428, %v1403
  %1441 = vst.msk [vmem:[#allocation2 + $0x60] sm:$0xff] %vm1428, %v1405
  %1442 = vst.msk [vmem:[#allocation2 + $0x68] sm:$0xff] %vm1428, %v1407
  %1443 = vst.msk [vmem:[#allocation2 + $0x70] sm:$0xff] %vm1428, %v1409
  %1444 = vst.msk [vmem:[#allocation2 + $0x78] sm:$0xff] %vm1428, %v1411
  %v1445 = vld [vmem:[#allocation2] sm:$0xff]
  %v1446 = vld [vmem:[#allocation2 + $0x8] sm:$0xff]
  %v1447 = vld [vmem:[#allocation2 + $0x10] sm:$0xff]
  %v1448 = vld [vmem:[#allocation2 + $0x18] sm:$0xff]
  %v1449 = vld [vmem:[#allocation2 + $0x20] sm:$0xff]
  %v1450 = vld [vmem:[#allocation2 + $0x28] sm:$0xff]
  %v1451 = vld [vmem:[#allocation2 + $0x30] sm:$0xff]
  %v1452 = vld [vmem:[#allocation2 + $0x38] sm:$0xff]
  %v1453 = vld [vmem:[#allocation2 + $0x40] sm:$0xff]
  %v1454 = vld [vmem:[#allocation2 + $0x48] sm:$0xff]
  %v1455 = vld [vmem:[#allocation2 + $0x50] sm:$0xff]
  %v1456 = vld [vmem:[#allocation2 + $0x58] sm:$0xff]
  %v1457 = vld [vmem:[#allocation2 + $0x60] sm:$0xff]
  %v1458 = vld [vmem:[#allocation2 + $0x68] sm:$0xff]
  %v1459 = vld [vmem:[#allocation2 + $0x70] sm:$0xff]
  %v1460 = vld [vmem:[#allocation2 + $0x78] sm:$0xff]
  %v1461 = vld [vmem:[%s4] sm:$0xff]
  %v1462 = vld [vmem:[%s4 + $0x8] sm:$0xff]
  %vm1463 = vcmask 130048
  %v1465 = vsel %vm1463, %v1445, 0
  %v1468 = vsel %vm1463, %v1446, 0
  %v1471 = vsel %vm1463, %v1447, 0
  %v1474 = vsel %vm1463, %v1448, 0
  %v1477 = vsel %vm1463, %v1449, 0
  %v1480 = vsel %vm1463, %v1450, 0
  %v1483 = vsel %vm1463, %v1451, 0
  %v1486 = vsel %vm1463, %v1452, 0
  %v1489 = vsel %vm1463, %v1453, 0
  %v1492 = vsel %vm1463, %v1454, 0
  %v1495 = vsel %vm1463, %v1455, 0
  %v1498 = vsel %vm1463, %v1456, 0
  %v1501 = vsel %vm1463, %v1457, 0
  %v1504 = vsel %vm1463, %v1458, 0
  %v1507 = vsel %vm1463, %v1459, 0
  %v1510 = vsel %vm1463, %v1460, 0
  %1512 = vmatprep.subr.mxu0 0.0
  %1513 = vmatpush1.msra.mxu0 %v1461
  %1514 = vmatprep.subr.mxu0 0.0
  %1515 = vmatpush1.msra.mxu0 %v1462
  %1516 = vmatprep.subr.mxu0 0.0
  %1517 = vmatpush1.msra.mxu0 0.0
  %1518 = vmatprep.subr.mxu0 0.0
  %1519 = vmatpush1.msra.mxu0 0.0
  %1520 = vmatprep.subr.mxu0 0.0
  %1521 = vmatpush1.msra.mxu0 0.0
  %1522 = vmatprep.subr.mxu0 0.0
  %1523 = vmatpush1.msra.mxu0 0.0
  %1524 = vmatprep.subr.mxu0 0.0
  %1525 = vmatpush1.msra.mxu0 0.0
  %1526 = vmatprep.subr.mxu0 0.0
  %1527 = vmatpush1.msra.mxu0 0.0
  %1528 = vmatprep.subr.mxu0 0.0
  %1529 = vmatpush1.msra.mxu0 0.0
  %1530 = vmatprep.subr.mxu0 0.0
  %1531 = vmatpush1.msra.mxu0 0.0
  %1532 = vmatprep.subr.mxu0 0.0
  %1533 = vmatpush1.msra.mxu0 0.0
  %1534 = vmatprep.subr.mxu0 0.0
  %1535 = vmatpush1.msra.mxu0 0.0
  %1536 = vmatprep.subr.mxu0 0.0
  %1537 = vmatpush1.msra.mxu0 0.0
  %1538 = vmatprep.subr.mxu0 0.0
  %1539 = vmatpush1.msra.mxu0 0.0
  %1540 = vmatprep.subr.mxu0 0.0
  %1541 = vmatpush1.msra.mxu0 0.0
  %1542 = vmatprep.subr.mxu0 0.0
  %1543 = vmatpush1.msra.mxu0 0.0
  %1544 = vmatprep.subr.mxu0 0.0
  %1545 = vmatpush1.msra.mxu0 0.0
  %1546 = vmatprep.subr.mxu0 0.0
  %1547 = vmatpush1.msra.mxu0 0.0
  %1548 = vmatprep.subr.mxu0 0.0
  %1549 = vmatpush1.msra.mxu0 0.0
  %1550 = vmatprep.subr.mxu0 0.0
  %1551 = vmatpush1.msra.mxu0 0.0
  %1552 = vmatprep.subr.mxu0 0.0
  %1553 = vmatpush1.msra.mxu0 0.0
  %1554 = vmatprep.subr.mxu0 0.0
  %1555 = vmatpush1.msra.mxu0 0.0
  %1556 = vmatprep.subr.mxu0 0.0
  %1557 = vmatpush1.msra.mxu0 0.0
  %1558 = vmatprep.subr.mxu0 0.0
  %1559 = vmatpush1.msra.mxu0 0.0
  %1560 = vmatprep.subr.mxu0 0.0
  %1561 = vmatpush1.msra.mxu0 0.0
  %1562 = vmatprep.subr.mxu0 0.0
  %1563 = vmatpush1.msra.mxu0 0.0
  %1564 = vmatprep.subr.mxu0 0.0
  %1565 = vmatpush1.msra.mxu0 0.0
  %1566 = vmatprep.subr.mxu0 0.0
  %1567 = vmatpush1.msra.mxu0 0.0
  %1568 = vmatprep.subr.mxu0 0.0
  %1569 = vmatpush1.msra.mxu0 0.0
  %1570 = vmatprep.subr.mxu0 0.0
  %1571 = vmatpush1.msra.mxu0 0.0
  %1572 = vmatprep.subr.mxu0 0.0
  %1573 = vmatpush1.msra.mxu0 0.0
  %1574 = vmatprep.subr.mxu0 0.0
  %1575 = vmatpush1.msra.mxu0 0.0
  %1576 = vmatprep.mubr.f32.mxu0 0.0
  %1577 = vmatmul.mubr.f32.gmra.mrb[0].mxu0 %v1465
  %v1578 = vpop.f32.mrb[0].mxu0
  %v1579 = vadd.f32 0.0, %v1578
  %v1580 = vpop.f32.mrb[0].mxu0
  %1581 = vmatprep.mubr.f32.mxu0 0.0
  %1582 = vmatmul.mubr.f32.gmra.mrb[0].mxu0 %v1468
  %v1583 = vpop.f32.mrb[0].mxu0
  %v1584 = vadd.f32 0.0, %v1583
  %v1585 = vpop.f32.mrb[0].mxu0
  %1586 = vmatprep.mubr.f32.mxu0 0.0
  %1587 = vmatmul.mubr.f32.gmra.mrb[0].mxu0 %v1471
  %v1588 = vpop.f32.mrb[0].mxu0
  %v1589 = vadd.f32 0.0, %v1588
  %v1590 = vpop.f32.mrb[0].mxu0
  %1591 = vmatprep.mubr.f32.mxu0 0.0
  %1592 = vmatmul.mubr.f32.gmra.mrb[0].mxu0 %v1474
  %v1593 = vpop.f32.mrb[0].mxu0
  %v1594 = vadd.f32 0.0, %v1593
  %v1595 = vpop.f32.mrb[0].mxu0
  %1596 = vmatprep.mubr.f32.mxu0 0.0
  %1597 = vmatmul.mubr.f32.gmra.mrb[0].mxu0 %v1477
  %v1598 = vpop.f32.mrb[0].mxu0
  %v1599 = vadd.f32 0.0, %v1598
  %v1600 = vpop.f32.mrb[0].mxu0
  %1601 = vmatprep.mubr.f32.mxu0 0.0
  %1602 = vmatmul.mubr.f32.gmra.mrb[0].mxu0 %v1480
  %v1603 = vpop.f32.mrb[0].mxu0
  %v1604 = vadd.f32 0.0, %v1603
  %v1605 = vpop.f32.mrb[0].mxu0
  %1606 = vmatprep.mubr.f32.mxu0 0.0
  %1607 = vmatmul.mubr.f32.gmra.mrb[0].mxu0 %v1483
  %v1608 = vpop.f32.mrb[0].mxu0
  %v1609 = vadd.f32 0.0, %v1608
  %v1610 = vpop.f32.mrb[0].mxu0
  %1611 = vmatprep.mubr.f32.mxu0 0.0
  %1612 = vmatmul.mubr.f32.gmra.mrb[0].mxu0 %v1486
  %v1613 = vpop.f32.mrb[0].mxu0
  %v1614 = vadd.f32 0.0, %v1613
  %v1615 = vpop.f32.mrb[0].mxu0
  %1616 = vmatprep.mubr.f32.mxu0 0.0
  %1617 = vmatmul.mubr.f32.gmra.mrb[0].mxu0 %v1489
  %v1618 = vpop.f32.mrb[0].mxu0
  %v1619 = vadd.f32 0.0, %v1618
  %v1620 = vpop.f32.mrb[0].mxu0
  %1621 = vmatprep.mubr.f32.mxu0 0.0
  %1622 = vmatmul.mubr.f32.gmra.mrb[0].mxu0 %v1492
  %v1623 = vpop.f32.mrb[0].mxu0
  %v1624 = vadd.f32 0.0, %v1623
  %v1625 = vpop.f32.mrb[0].mxu0
  %1626 = vmatprep.mubr.f32.mxu0 0.0
  %1627 = vmatmul.mubr.f32.gmra.mrb[0].mxu0 %v1495
  %v1628 = vpop.f32.mrb[0].mxu0
  %v1629 = vadd.f32 0.0, %v1628
  %v1630 = vpop.f32.mrb[0].mxu0
  %1631 = vmatprep.mubr.f32.mxu0 0.0
  %1632 = vmatmul.mubr.f32.gmra.mrb[0].mxu0 %v1498
  %v1633 = vpop.f32.mrb[0].mxu0
  %v1634 = vadd.f32 0.0, %v1633
  %v1635 = vpop.f32.mrb[0].mxu0
  %1636 = vmatprep.mubr.f32.mxu0 0.0
  %1637 = vmatmul.mubr.f32.gmra.mrb[0].mxu0 %v1501
  %v1638 = vpop.f32.mrb[0].mxu0
  %v1639 = vadd.f32 0.0, %v1638
  %v1640 = vpop.f32.mrb[0].mxu0
  %1641 = vmatprep.mubr.f32.mxu0 0.0
  %1642 = vmatmul.mubr.f32.gmra.mrb[0].mxu0 %v1504
  %v1643 = vpop.f32.mrb[0].mxu0
  %v1644 = vadd.f32 0.0, %v1643
  %v1645 = vpop.f32.mrb[0].mxu0
  %1646 = vmatprep.mubr.f32.mxu0 0.0
  %1647 = vmatmul.mubr.f32.gmra.mrb[0].mxu0 %v1507
  %v1648 = vpop.f32.mrb[0].mxu0
  %v1649 = vadd.f32 0.0, %v1648
  %v1650 = vpop.f32.mrb[0].mxu0
  %1651 = vmatprep.mubr.f32.mxu0 0.0
  %1652 = vmatmul.mubr.f32.gmra.mrb[0].mxu0 %v1510
  %v1653 = vpop.f32.mrb[0].mxu0
  %v1654 = vadd.f32 0.0, %v1653
  %v1655 = vpop.f32.mrb[0].mxu0
  %1656 = vdwg.mxu0
  %v1657 = vadd.f32 %v157, %v1579
  %v1658 = vadd.f32 %v162, %v1584
  %v1659 = vadd.f32 %v167, %v1589
  %v1660 = vadd.f32 %v172, %v1594
  %v1661 = vadd.f32 %v177, %v1599
  %v1662 = vadd.f32 %v182, %v1604
  %v1663 = vadd.f32 %v187, %v1609
  %v1664 = vadd.f32 %v192, %v1614
  %v1665 = vadd.f32 %v197, %v1619
  %v1666 = vadd.f32 %v202, %v1624
  %v1667 = vadd.f32 %v207, %v1629
  %v1668 = vadd.f32 %v212, %v1634
  %v1669 = vadd.f32 %v217, %v1639
  %v1670 = vadd.f32 %v222, %v1644
  %v1671 = vadd.f32 %v227, %v1649
  %v1672 = vadd.f32 %v232, %v1654
  %v1673 = vld [vmem:[%s4 + $0x10] sm:$0xff]
  %v1674 = vld [vmem:[%s4 + $0x18] sm:$0xff]
  %v1675 = vld [vmem:[%s4 + $0x20] sm:$0xff]
  %v1676 = vld [vmem:[%s4 + $0x28] sm:$0xff]
  %v1677 = vld [vmem:[%s4 + $0x30] sm:$0x1]
  %v1678 = vlaneseq
  %v1679 = vshrl.u32 %v1678, 7
  %v1680 = vsub.s32 0, %v1679
  %v1681 = vrot.slane %v1677, %v1680
  %vm1682 = vcmask 261120
  %v1684 = vsel %vm1682, 0.0, 0
  %1686 = vmatprep.subr.mxu0 0.0
  %1687 = vmatpush1.msra.mxu0 %v1673
  %1688 = vmatprep.subr.mxu0 0.0
  %1689 = vmatpush1.msra.mxu0 %v1674
  %1690 = vmatprep.subr.mxu0 0.0
  %1691 = vmatpush1.msra.mxu0 %v1675
  %1692 = vmatprep.subr.mxu0 0.0
  %1693 = vmatpush1.msra.mxu0 %v1676
  %1694 = vmatprep.subr.mxu0 0.0
  %1695 = vmatpush1.msra.mxu0 0.0
  %1696 = vmatprep.subr.mxu0 0.0
  %1697 = vmatpush1.msra.mxu0 0.0
  %1698 = vmatprep.subr.mxu0 0.0
  %1699 = vmatpush1.msra.mxu0 0.0
  %1700 = vmatprep.subr.mxu0 0.0
  %1701 = vmatpush1.msra.mxu0 0.0
  %1702 = vmatprep.subr.mxu0 0.0
  %1703 = vmatpush1.msra.mxu0 0.0
  %1704 = vmatprep.subr.mxu0 0.0
  %1705 = vmatpush1.msra.mxu0 0.0
  %1706 = vmatprep.subr.mxu0 0.0
  %1707 = vmatpush1.msra.mxu0 0.0
  %1708 = vmatprep.subr.mxu0 0.0
  %1709 = vmatpush1.msra.mxu0 0.0
  %1710 = vmatprep.subr.mxu0 0.0
  %1711 = vmatpush1.msra.mxu0 0.0
  %1712 = vmatprep.subr.mxu0 0.0
  %1713 = vmatpush1.msra.mxu0 0.0
  %1714 = vmatprep.subr.mxu0 0.0
  %1715 = vmatpush1.msra.mxu0 0.0
  %1716 = vmatprep.subr.mxu0 0.0
  %1717 = vmatpush1.msra.mxu0 0.0
  %1718 = vmatprep.subr.mxu0 0.0
  %1719 = vmatpush1.msra.mxu0 0.0
  %1720 = vmatprep.subr.mxu0 0.0
  %1721 = vmatpush1.msra.mxu0 0.0
  %1722 = vmatprep.subr.mxu0 0.0
  %1723 = vmatpush1.msra.mxu0 0.0
  %1724 = vmatprep.subr.mxu0 0.0
  %1725 = vmatpush1.msra.mxu0 0.0
  %1726 = vmatprep.subr.mxu0 0.0
  %1727 = vmatpush1.msra.mxu0 0.0
  %1728 = vmatprep.subr.mxu0 0.0
  %1729 = vmatpush1.msra.mxu0 0.0
  %1730 = vmatprep.subr.mxu0 0.0
  %1731 = vmatpush1.msra.mxu0 0.0
  %1732 = vmatprep.subr.mxu0 0.0
  %1733 = vmatpush1.msra.mxu0 0.0
  %1734 = vmatprep.subr.mxu0 0.0
  %1735 = vmatpush1.msra.mxu0 0.0
  %1736 = vmatprep.subr.mxu0 0.0
  %1737 = vmatpush1.msra.mxu0 0.0
  %1738 = vmatprep.subr.mxu0 0.0
  %1739 = vmatpush1.msra.mxu0 0.0
  %1740 = vmatprep.subr.mxu0 0.0
  %1741 = vmatpush1.msra.mxu0 0.0
  %1742 = vmatprep.subr.mxu0 0.0
  %1743 = vmatpush1.msra.mxu0 0.0
  %1744 = vmatprep.subr.mxu0 0.0
  %1745 = vmatpush1.msra.mxu0 0.0
  %1746 = vmatprep.subr.mxu0 0.0
  %1747 = vmatpush1.msra.mxu0 0.0
  %1748 = vmatprep.subr.mxu0 0.0
  %1749 = vmatpush1.msra.mxu0 0.0
  %1750 = vmatprep.mubr.f32.mxu0 0.0
  %1751 = vmatmul.mubr.f32.gmra.mrb[0].mxu0 %v1684
  %v1752 = vpop.f32.mrb[0].mxu0
  %v1753 = vadd.f32 %v1681, %v1752
  %v1754 = vpop.f32.mrb[0].mxu0
  %1755 = vmatprep.mubr.f32.mxu0 0.0
  %1756 = vmatmul.mubr.f32.gmra.mrb[0].mxu0 %v1684
  %v1757 = vpop.f32.mrb[0].mxu0
  %v1758 = vadd.f32 %v1681, %v1757
  %v1759 = vpop.f32.mrb[0].mxu0
  %1760 = vdwg.mxu0
  %v1761 = vadd.f32 %v1657, %v1753
  %v1762 = vadd.f32 %v1658, %v1758
  %v1763 = vxor.u32 %v1761, 2147483648
  %v1764 = vxor.u32 %v1762, 2147483648
  %v1765 = vmul.f32 %v1763, 1.442695
  %v1766 = vpow.pop %v1765
  %v1767 = vmul.f32 %v1764, 1.442695
  %v1768 = vpow.pop %v1767
  %v1769 = vadd.f32 %v1766, 1.0
  %v1770 = vadd.f32 %v1768, 1.0
  %v1771 = vrcp.pop %v1769
  %v1772 = vmul.f32 1.0, %v1771
  %v1773 = vrcp.pop %v1770
  %v1774 = vmul.f32 1.0, %v1773
  %1777 = vrot.lane.b32.xlu0 %v1753, 64
  %v1778 = vpop.permute.xlu0 %1777
  %1779 = vrot.lane.b32.xlu0 %v1758, 64
  %v1780 = vpop.permute.xlu0 %1779
  %v1783 = vmul.f32 %v1772, %v1778
  %v1784 = vmul.f32 %v1774, %v1780
  %1787 = vrot.lane.b32.xlu0 %v1783, 64
  %v1788 = vpop.permute.xlu0 %1787
  %1789 = vrot.lane.b32.xlu0 %v1784, 64
  %v1790 = vpop.permute.xlu0 %1789
  %v1793 = vadd.f32 %v1657, %v1788
  %v1794 = vadd.f32 %v1658, %v1790
  %v1795 = vtanh.pop %v1793
  %v1796 = vtanh.pop %v1794
  %v1797 = vsub.f32 1.0, %v1772
  %v1798 = vsub.f32 1.0, %v1774
  %1801 = vrot.lane.b32.xlu0 %v1795, 96
  %v1802 = vpop.permute.xlu0 %1801
  %1803 = vrot.lane.b32.xlu0 %v1796, 96
  %v1804 = vpop.permute.xlu0 %1803
  %v1807 = vmul.f32 %v1797, %v1802
  %v1808 = vmul.f32 %v1798, %v1804
  %v1809 = vmul.f32 %v1772, 0.0
  %v1810 = vmul.f32 %v1774, 0.0
  %v1811 = vadd.f32 %v1807, %v1809
  %v1812 = vadd.f32 %v1808, %v1810
  %1815 = vrot.lane.b32.xlu0 %v1811, 96
  %v1816 = vpop.permute.xlu0 %1815
  %1817 = vrot.lane.b32.xlu0 %v1812, 96
  %v1818 = vpop.permute.xlu0 %1817
  %v1819 = vsel %vm1682, %v1816, 0
  %v1821 = vsel %vm1682, %v1818, 0
  %1823 = vmatprep.subr.mxu0 0.0
  %1824 = vmatpush1.msra.mxu0 %v1673
  %1825 = vmatprep.subr.mxu0 0.0
  %1826 = vmatpush1.msra.mxu0 %v1674
  %1827 = vmatprep.subr.mxu0 0.0
  %1828 = vmatpush1.msra.mxu0 %v1675
  %1829 = vmatprep.subr.mxu0 0.0
  %1830 = vmatpush1.msra.mxu0 %v1676
  %1831 = vmatprep.subr.mxu0 0.0
  %1832 = vmatpush1.msra.mxu0 0.0
  %1833 = vmatprep.subr.mxu0 0.0
  %1834 = vmatpush1.msra.mxu0 0.0
  %1835 = vmatprep.subr.mxu0 0.0
  %1836 = vmatpush1.msra.mxu0 0.0
  %1837 = vmatprep.subr.mxu0 0.0
  %1838 = vmatpush1.msra.mxu0 0.0
  %1839 = vmatprep.subr.mxu0 0.0
  %1840 = vmatpush1.msra.mxu0 0.0
  %1841 = vmatprep.subr.mxu0 0.0
  %1842 = vmatpush1.msra.mxu0 0.0
  %1843 = vmatprep.subr.mxu0 0.0
  %1844 = vmatpush1.msra.mxu0 0.0
  %1845 = vmatprep.subr.mxu0 0.0
  %1846 = vmatpush1.msra.mxu0 0.0
  %1847 = vmatprep.subr.mxu0 0.0
  %1848 = vmatpush1.msra.mxu0 0.0
  %1849 = vmatprep.subr.mxu0 0.0
  %1850 = vmatpush1.msra.mxu0 0.0
  %1851 = vmatprep.subr.mxu0 0.0
  %1852 = vmatpush1.msra.mxu0 0.0
  %1853 = vmatprep.subr.mxu0 0.0
  %1854 = vmatpush1.msra.mxu0 0.0
  %1855 = vmatprep.subr.mxu0 0.0
  %1856 = vmatpush1.msra.mxu0 0.0
  %1857 = vmatprep.subr.mxu0 0.0
  %1858 = vmatpush1.msra.mxu0 0.0
  %1859 = vmatprep.subr.mxu0 0.0
  %1860 = vmatpush1.msra.mxu0 0.0
  %1861 = vmatprep.subr.mxu0 0.0
  %1862 = vmatpush1.msra.mxu0 0.0
  %1863 = vmatprep.subr.mxu0 0.0
  %1864 = vmatpush1.msra.mxu0 0.0
  %1865 = vmatprep.subr.mxu0 0.0
  %1866 = vmatpush1.msra.mxu0 0.0
  %1867 = vmatprep.subr.mxu0 0.0
  %1868 = vmatpush1.msra.mxu0 0.0
  %1869 = vmatprep.subr.mxu0 0.0
  %1870 = vmatpush1.msra.mxu0 0.0
  %1871 = vmatprep.subr.mxu0 0.0
  %1872 = vmatpush1.msra.mxu0 0.0
  %1873 = vmatprep.subr.mxu0 0.0
  %1874 = vmatpush1.msra.mxu0 0.0
  %1875 = vmatprep.subr.mxu0 0.0
  %1876 = vmatpush1.msra.mxu0 0.0
  %1877 = vmatprep.subr.mxu0 0.0
  %1878 = vmatpush1.msra.mxu0 0.0
  %1879 = vmatprep.subr.mxu0 0.0
  %1880 = vmatpush1.msra.mxu0 0.0
  %1881 = vmatprep.subr.mxu0 0.0
  %1882 = vmatpush1.msra.mxu0 0.0
  %1883 = vmatprep.subr.mxu0 0.0
  %1884 = vmatpush1.msra.mxu0 0.0
  %1885 = vmatprep.subr.mxu0 0.0
  %1886 = vmatpush1.msra.mxu0 0.0
  %1887 = vmatprep.mubr.f32.mxu0 0.0
  %1888 = vmatmul.mubr.f32.gmra.mrb[0].mxu0 %v1819
  %v1889 = vpop.f32.mrb[0].mxu0
  %v1890 = vadd.f32 %v1681, %v1889
  %v1891 = vpop.f32.mrb[0].mxu0
  %1892 = vmatprep.mubr.f32.mxu0 0.0
  %1893 = vmatmul.mubr.f32.gmra.mrb[0].mxu0 %v1821
  %v1894 = vpop.f32.mrb[0].mxu0
  %v1895 = vadd.f32 %v1681, %v1894
  %v1896 = vpop.f32.mrb[0].mxu0
  %1897 = vdwg.mxu0
  %v1898 = vadd.f32 %v1659, %v1890
  %v1899 = vadd.f32 %v1660, %v1895
  %v1900 = vxor.u32 %v1898, 2147483648
  %v1901 = vxor.u32 %v1899, 2147483648
  %v1902 = vmul.f32 %v1900, 1.442695
  %v1903 = vpow.pop %v1902
  %v1904 = vmul.f32 %v1901, 1.442695
  %v1905 = vpow.pop %v1904
  %v1906 = vadd.f32 %v1903, 1.0
  %v1907 = vadd.f32 %v1905, 1.0
  %v1908 = vrcp.pop %v1906
  %v1909 = vmul.f32 1.0, %v1908
  %v1910 = vrcp.pop %v1907
  %v1911 = vmul.f32 1.0, %v1910
  %1914 = vrot.lane.b32.xlu0 %v1890, 64
  %v1915 = vpop.permute.xlu0 %1914
  %1916 = vrot.lane.b32.xlu0 %v1895, 64
  %v1917 = vpop.permute.xlu0 %1916
  %v1920 = vmul.f32 %v1909, %v1915
  %v1921 = vmul.f32 %v1911, %v1917
  %1924 = vrot.lane.b32.xlu0 %v1920, 64
  %v1925 = vpop.permute.xlu0 %1924
  %1926 = vrot.lane.b32.xlu0 %v1921, 64
  %v1927 = vpop.permute.xlu0 %1926
  %v1930 = vadd.f32 %v1659, %v1925
  %v1931 = vadd.f32 %v1660, %v1927
  %v1932 = vtanh.pop %v1930
  %v1933 = vtanh.pop %v1931
  %v1934 = vsub.f32 1.0, %v1909
  %v1935 = vsub.f32 1.0, %v1911
  %1938 = vrot.lane.b32.xlu0 %v1932, 96
  %v1939 = vpop.permute.xlu0 %1938
  %1940 = vrot.lane.b32.xlu0 %v1933, 96
  %v1941 = vpop.permute.xlu0 %1940
  %v1944 = vmul.f32 %v1934, %v1939
  %v1945 = vmul.f32 %v1935, %v1941
  %v1946 = vmul.f32 %v1909, %v1811
  %v1947 = vmul.f32 %v1911, %v1812
  %v1948 = vadd.f32 %v1944, %v1946
  %v1949 = vadd.f32 %v1945, %v1947
  %1952 = vrot.lane.b32.xlu0 %v1948, 96
  %v1953 = vpop.permute.xlu0 %1952
  %1954 = vrot.lane.b32.xlu0 %v1949, 96
  %v1955 = vpop.permute.xlu0 %1954
  %v1956 = vsel %vm1682, %v1953, 0
  %v1958 = vsel %vm1682, %v1955, 0
  %1960 = vmatprep.subr.mxu0 0.0
  %1961 = vmatpush1.msra.mxu0 %v1673
  %1962 = vmatprep.subr.mxu0 0.0
  %1963 = vmatpush1.msra.mxu0 %v1674
  %1964 = vmatprep.subr.mxu0 0.0
  %1965 = vmatpush1.msra.mxu0 %v1675
  %1966 = vmatprep.subr.mxu0 0.0
  %1967 = vmatpush1.msra.mxu0 %v1676
  %1968 = vmatprep.subr.mxu0 0.0
  %1969 = vmatpush1.msra.mxu0 0.0
  %1970 = vmatprep.subr.mxu0 0.0
  %1971 = vmatpush1.msra.mxu0 0.0
  %1972 = vmatprep.subr.mxu0 0.0
  %1973 = vmatpush1.msra.mxu0 0.0
  %1974 = vmatprep.subr.mxu0 0.0
  %1975 = vmatpush1.msra.mxu0 0.0
  %1976 = vmatprep.subr.mxu0 0.0
  %1977 = vmatpush1.msra.mxu0 0.0
  %1978 = vmatprep.subr.mxu0 0.0
  %1979 = vmatpush1.msra.mxu0 0.0
  %1980 = vmatprep.subr.mxu0 0.0
  %1981 = vmatpush1.msra.mxu0 0.0
  %1982 = vmatprep.subr.mxu0 0.0
  %1983 = vmatpush1.msra.mxu0 0.0
  %1984 = vmatprep.subr.mxu0 0.0
  %1985 = vmatpush1.msra.mxu0 0.0
  %1986 = vmatprep.subr.mxu0 0.0
  %1987 = vmatpush1.msra.mxu0 0.0
  %1988 = vmatprep.subr.mxu0 0.0
  %1989 = vmatpush1.msra.mxu0 0.0
  %1990 = vmatprep.subr.mxu0 0.0
  %1991 = vmatpush1.msra.mxu0 0.0
  %1992 = vmatprep.subr.mxu0 0.0
  %1993 = vmatpush1.msra.mxu0 0.0
  %1994 = vmatprep.subr.mxu0 0.0
  %1995 = vmatpush1.msra.mxu0 0.0
  %1996 = vmatprep.subr.mxu0 0.0
  %1997 = vmatpush1.msra.mxu0 0.0
  %1998 = vmatprep.subr.mxu0 0.0
  %1999 = vmatpush1.msra.mxu0 0.0
  %2000 = vmatprep.subr.mxu0 0.0
  %2001 = vmatpush1.msra.mxu0 0.0
  %2002 = vmatprep.subr.mxu0 0.0
  %2003 = vmatpush1.msra.mxu0 0.0
  %2004 = vmatprep.subr.mxu0 0.0
  %2005 = vmatpush1.msra.mxu0 0.0
  %2006 = vmatprep.subr.mxu0 0.0
  %2007 = vmatpush1.msra.mxu0 0.0
  %2008 = vmatprep.subr.mxu0 0.0
  %2009 = vmatpush1.msra.mxu0 0.0
  %2010 = vmatprep.subr.mxu0 0.0
  %2011 = vmatpush1.msra.mxu0 0.0
  %2012 = vmatprep.subr.mxu0 0.0
  %2013 = vmatpush1.msra.mxu0 0.0
  %2014 = vmatprep.subr.mxu0 0.0
  %2015 = vmatpush1.msra.mxu0 0.0
  %2016 = vmatprep.subr.mxu0 0.0
  %2017 = vmatpush1.msra.mxu0 0.0
  %2018 = vmatprep.subr.mxu0 0.0
  %2019 = vmatpush1.msra.mxu0 0.0
  %2020 = vmatprep.subr.mxu0 0.0
  %2021 = vmatpush1.msra.mxu0 0.0
  %2022 = vmatprep.subr.mxu0 0.0
  %2023 = vmatpush1.msra.mxu0 0.0
  %2024 = vmatprep.mubr.f32.mxu0 0.0
  %2025 = vmatmul.mubr.f32.gmra.mrb[0].mxu0 %v1956
  %v2026 = vpop.f32.mrb[0].mxu0
  %v2027 = vadd.f32 %v1681, %v2026
  %v2028 = vpop.f32.mrb[0].mxu0
  %2029 = vmatprep.mubr.f32.mxu0 0.0
  %2030 = vmatmul.mubr.f32.gmra.mrb[0].mxu0 %v1958
  %v2031 = vpop.f32.mrb[0].mxu0
  %v2032 = vadd.f32 %v1681, %v2031
  %v2033 = vpop.f32.mrb[0].mxu0
  %2034 = vdwg.mxu0
  %v2035 = vadd.f32 %v1661, %v2027
  %v2036 = vadd.f32 %v1662, %v2032
  %v2037 = vxor.u32 %v2035, 2147483648
  %v2038 = vxor.u32 %v2036, 2147483648
  %v2039 = vmul.f32 %v2037, 1.442695
  %v2040 = vpow.pop %v2039
  %v2041 = vmul.f32 %v2038, 1.442695
  %v2042 = vpow.pop %v2041
  %v2043 = vadd.f32 %v2040, 1.0
  %v2044 = vadd.f32 %v2042, 1.0
  %v2045 = vrcp.pop %v2043
  %v2046 = vmul.f32 1.0, %v2045
  %v2047 = vrcp.pop %v2044
  %v2048 = vmul.f32 1.0, %v2047
  %2051 = vrot.lane.b32.xlu0 %v2027, 64
  %v2052 = vpop.permute.xlu0 %2051
  %2053 = vrot.lane.b32.xlu0 %v2032, 64
  %v2054 = vpop.permute.xlu0 %2053
  %v2057 = vmul.f32 %v2046, %v2052
  %v2058 = vmul.f32 %v2048, %v2054
  %2061 = vrot.lane.b32.xlu0 %v2057, 64
  %v2062 = vpop.permute.xlu0 %2061
  %2063 = vrot.lane.b32.xlu0 %v2058, 64
  %v2064 = vpop.permute.xlu0 %2063
  %v2067 = vadd.f32 %v1661, %v2062
  %v2068 = vadd.f32 %v1662, %v2064
  %v2069 = vtanh.pop %v2067
  %v2070 = vtanh.pop %v2068
  %v2071 = vsub.f32 1.0, %v2046
  %v2072 = vsub.f32 1.0, %v2048
  %2075 = vrot.lane.b32.xlu0 %v2069, 96
  %v2076 = vpop.permute.xlu0 %2075
  %2077 = vrot.lane.b32.xlu0 %v2070, 96
  %v2078 = vpop.permute.xlu0 %2077
  %v2081 = vmul.f32 %v2071, %v2076
  %v2082 = vmul.f32 %v2072, %v2078
  %v2083 = vmul.f32 %v2046, %v1948
  %v2084 = vmul.f32 %v2048, %v1949
  %v2085 = vadd.f32 %v2081, %v2083
  %v2086 = vadd.f32 %v2082, %v2084
  %2089 = vrot.lane.b32.xlu0 %v2085, 96
  %v2090 = vpop.permute.xlu0 %2089
  %2091 = vrot.lane.b32.xlu0 %v2086, 96
  %v2092 = vpop.permute.xlu0 %2091
  %v2093 = vsel %vm1682, %v2090, 0
  %v2095 = vsel %vm1682, %v2092, 0
  %2097 = vmatprep.subr.mxu0 0.0
  %2098 = vmatpush1.msra.mxu0 %v1673
  %2099 = vmatprep.subr.mxu0 0.0
  %2100 = vmatpush1.msra.mxu0 %v1674
  %2101 = vmatprep.subr.mxu0 0.0
  %2102 = vmatpush1.msra.mxu0 %v1675
  %2103 = vmatprep.subr.mxu0 0.0
  %2104 = vmatpush1.msra.mxu0 %v1676
  %2105 = vmatprep.subr.mxu0 0.0
  %2106 = vmatpush1.msra.mxu0 0.0
  %2107 = vmatprep.subr.mxu0 0.0
  %2108 = vmatpush1.msra.mxu0 0.0
  %2109 = vmatprep.subr.mxu0 0.0
  %2110 = vmatpush1.msra.mxu0 0.0
  %2111 = vmatprep.subr.mxu0 0.0
  %2112 = vmatpush1.msra.mxu0 0.0
  %2113 = vmatprep.subr.mxu0 0.0
  %2114 = vmatpush1.msra.mxu0 0.0
  %2115 = vmatprep.subr.mxu0 0.0
  %2116 = vmatpush1.msra.mxu0 0.0
  %2117 = vmatprep.subr.mxu0 0.0
  %2118 = vmatpush1.msra.mxu0 0.0
  %2119 = vmatprep.subr.mxu0 0.0
  %2120 = vmatpush1.msra.mxu0 0.0
  %2121 = vmatprep.subr.mxu0 0.0
  %2122 = vmatpush1.msra.mxu0 0.0
  %2123 = vmatprep.subr.mxu0 0.0
  %2124 = vmatpush1.msra.mxu0 0.0
  %2125 = vmatprep.subr.mxu0 0.0
  %2126 = vmatpush1.msra.mxu0 0.0
  %2127 = vmatprep.subr.mxu0 0.0
  %2128 = vmatpush1.msra.mxu0 0.0
  %2129 = vmatprep.subr.mxu0 0.0
  %2130 = vmatpush1.msra.mxu0 0.0
  %2131 = vmatprep.subr.mxu0 0.0
  %2132 = vmatpush1.msra.mxu0 0.0
  %2133 = vmatprep.subr.mxu0 0.0
  %2134 = vmatpush1.msra.mxu0 0.0
  %2135 = vmatprep.subr.mxu0 0.0
  %2136 = vmatpush1.msra.mxu0 0.0
  %2137 = vmatprep.subr.mxu0 0.0
  %2138 = vmatpush1.msra.mxu0 0.0
  %2139 = vmatprep.subr.mxu0 0.0
  %2140 = vmatpush1.msra.mxu0 0.0
  %2141 = vmatprep.subr.mxu0 0.0
  %2142 = vmatpush1.msra.mxu0 0.0
  %2143 = vmatprep.subr.mxu0 0.0
  %2144 = vmatpush1.msra.mxu0 0.0
  %2145 = vmatprep.subr.mxu0 0.0
  %2146 = vmatpush1.msra.mxu0 0.0
  %2147 = vmatprep.subr.mxu0 0.0
  %2148 = vmatpush1.msra.mxu0 0.0
  %2149 = vmatprep.subr.mxu0 0.0
  %2150 = vmatpush1.msra.mxu0 0.0
  %2151 = vmatprep.subr.mxu0 0.0
  %2152 = vmatpush1.msra.mxu0 0.0
  %2153 = vmatprep.subr.mxu0 0.0
  %2154 = vmatpush1.msra.mxu0 0.0
  %2155 = vmatprep.subr.mxu0 0.0
  %2156 = vmatpush1.msra.mxu0 0.0
  %2157 = vmatprep.subr.mxu0 0.0
  %2158 = vmatpush1.msra.mxu0 0.0
  %2159 = vmatprep.subr.mxu0 0.0
  %2160 = vmatpush1.msra.mxu0 0.0
  %2161 = vmatprep.mubr.f32.mxu0 0.0
  %2162 = vmatmul.mubr.f32.gmra.mrb[0].mxu0 %v2093
  %v2163 = vpop.f32.mrb[0].mxu0
  %v2164 = vadd.f32 %v1681, %v2163
  %v2165 = vpop.f32.mrb[0].mxu0
  %2166 = vmatprep.mubr.f32.mxu0 0.0
  %2167 = vmatmul.mubr.f32.gmra.mrb[0].mxu0 %v2095
  %v2168 = vpop.f32.mrb[0].mxu0
  %v2169 = vadd.f32 %v1681, %v2168
  %v2170 = vpop.f32.mrb[0].mxu0
  %2171 = vdwg.mxu0
  %v2172 = vadd.f32 %v1663, %v2164
  %v2173 = vadd.f32 %v1664, %v2169
  %v2174 = vxor.u32 %v2172, 2147483648
  %v2175 = vxor.u32 %v2173, 2147483648
  %v2176 = vmul.f32 %v2174, 1.442695
  %v2177 = vpow.pop %v2176
  %v2178 = vmul.f32 %v2175, 1.442695
  %v2179 = vpow.pop %v2178
  %v2180 = vadd.f32 %v2177, 1.0
  %v2181 = vadd.f32 %v2179, 1.0
  %v2182 = vrcp.pop %v2180
  %v2183 = vmul.f32 1.0, %v2182
  %v2184 = vrcp.pop %v2181
  %v2185 = vmul.f32 1.0, %v2184
  %2188 = vrot.lane.b32.xlu0 %v2164, 64
  %v2189 = vpop.permute.xlu0 %2188
  %2190 = vrot.lane.b32.xlu0 %v2169, 64
  %v2191 = vpop.permute.xlu0 %2190
  %v2194 = vmul.f32 %v2183, %v2189
  %v2195 = vmul.f32 %v2185, %v2191
  %2198 = vrot.lane.b32.xlu0 %v2194, 64
  %v2199 = vpop.permute.xlu0 %2198
  %2200 = vrot.lane.b32.xlu0 %v2195, 64
  %v2201 = vpop.permute.xlu0 %2200
  %v2204 = vadd.f32 %v1663, %v2199
  %v2205 = vadd.f32 %v1664, %v2201
  %v2206 = vtanh.pop %v2204
  %v2207 = vtanh.pop %v2205
  %v2208 = vsub.f32 1.0, %v2183
  %v2209 = vsub.f32 1.0, %v2185
  %2212 = vrot.lane.b32.xlu0 %v2206, 96
  %v2213 = vpop.permute.xlu0 %2212
  %2214 = vrot.lane.b32.xlu0 %v2207, 96
  %v2215 = vpop.permute.xlu0 %2214
  %v2218 = vmul.f32 %v2208, %v2213
  %v2219 = vmul.f32 %v2209, %v2215
  %v2220 = vmul.f32 %v2183, %v2085
  %v2221 = vmul.f32 %v2185, %v2086
  %v2222 = vadd.f32 %v2218, %v2220
  %v2223 = vadd.f32 %v2219, %v2221
  %2226 = vrot.lane.b32.xlu0 %v2222, 96
  %v2227 = vpop.permute.xlu0 %2226
  %2228 = vrot.lane.b32.xlu0 %v2223, 96
  %v2229 = vpop.permute.xlu0 %2228
  %v2230 = vsel %vm1682, %v2227, 0
  %v2232 = vsel %vm1682, %v2229, 0
  %2234 = vmatprep.subr.mxu0 0.0
  %2235 = vmatpush1.msra.mxu0 %v1673
  %2236 = vmatprep.subr.mxu0 0.0
  %2237 = vmatpush1.msra.mxu0 %v1674
  %2238 = vmatprep.subr.mxu0 0.0
  %2239 = vmatpush1.msra.mxu0 %v1675
  %2240 = vmatprep.subr.mxu0 0.0
  %2241 = vmatpush1.msra.mxu0 %v1676
  %2242 = vmatprep.subr.mxu0 0.0
  %2243 = vmatpush1.msra.mxu0 0.0
  %2244 = vmatprep.subr.mxu0 0.0
  %2245 = vmatpush1.msra.mxu0 0.0
  %2246 = vmatprep.subr.mxu0 0.0
  %2247 = vmatpush1.msra.mxu0 0.0
  %2248 = vmatprep.subr.mxu0 0.0
  %2249 = vmatpush1.msra.mxu0 0.0
  %2250 = vmatprep.subr.mxu0 0.0
  %2251 = vmatpush1.msra.mxu0 0.0
  %2252 = vmatprep.subr.mxu0 0.0
  %2253 = vmatpush1.msra.mxu0 0.0
  %2254 = vmatprep.subr.mxu0 0.0
  %2255 = vmatpush1.msra.mxu0 0.0
  %2256 = vmatprep.subr.mxu0 0.0
  %2257 = vmatpush1.msra.mxu0 0.0
  %2258 = vmatprep.subr.mxu0 0.0
  %2259 = vmatpush1.msra.mxu0 0.0
  %2260 = vmatprep.subr.mxu0 0.0
  %2261 = vmatpush1.msra.mxu0 0.0
  %2262 = vmatprep.subr.mxu0 0.0
  %2263 = vmatpush1.msra.mxu0 0.0
  %2264 = vmatprep.subr.mxu0 0.0
  %2265 = vmatpush1.msra.mxu0 0.0
  %2266 = vmatprep.subr.mxu0 0.0
  %2267 = vmatpush1.msra.mxu0 0.0
  %2268 = vmatprep.subr.mxu0 0.0
  %2269 = vmatpush1.msra.mxu0 0.0
  %2270 = vmatprep.subr.mxu0 0.0
  %2271 = vmatpush1.msra.mxu0 0.0
  %2272 = vmatprep.subr.mxu0 0.0
  %2273 = vmatpush1.msra.mxu0 0.0
  %2274 = vmatprep.subr.mxu0 0.0
  %2275 = vmatpush1.msra.mxu0 0.0
  %2276 = vmatprep.subr.mxu0 0.0
  %2277 = vmatpush1.msra.mxu0 0.0
  %2278 = vmatprep.subr.mxu0 0.0
  %2279 = vmatpush1.msra.mxu0 0.0
  %2280 = vmatprep.subr.mxu0 0.0
  %2281 = vmatpush1.msra.mxu0 0.0
  %2282 = vmatprep.subr.mxu0 0.0
  %2283 = vmatpush1.msra.mxu0 0.0
  %2284 = vmatprep.subr.mxu0 0.0
  %2285 = vmatpush1.msra.mxu0 0.0
  %2286 = vmatprep.subr.mxu0 0.0
  %2287 = vmatpush1.msra.mxu0 0.0
  %2288 = vmatprep.subr.mxu0 0.0
  %2289 = vmatpush1.msra.mxu0 0.0
  %2290 = vmatprep.subr.mxu0 0.0
  %2291 = vmatpush1.msra.mxu0 0.0
  %2292 = vmatprep.subr.mxu0 0.0
  %2293 = vmatpush1.msra.mxu0 0.0
  %2294 = vmatprep.subr.mxu0 0.0
  %2295 = vmatpush1.msra.mxu0 0.0
  %2296 = vmatprep.subr.mxu0 0.0
  %2297 = vmatpush1.msra.mxu0 0.0
  %2298 = vmatprep.mubr.f32.mxu0 0.0
  %2299 = vmatmul.mubr.f32.gmra.mrb[0].mxu0 %v2230
  %v2300 = vpop.f32.mrb[0].mxu0
  %v2301 = vadd.f32 %v1681, %v2300
  %v2302 = vpop.f32.mrb[0].mxu0
  %2303 = vmatprep.mubr.f32.mxu0 0.0
  %2304 = vmatmul.mubr.f32.gmra.mrb[0].mxu0 %v2232
  %v2305 = vpop.f32.mrb[0].mxu0
  %v2306 = vadd.f32 %v1681, %v2305
  %v2307 = vpop.f32.mrb[0].mxu0
  %2308 = vdwg.mxu0
  %v2309 = vadd.f32 %v1665, %v2301
  %v2310 = vadd.f32 %v1666, %v2306
  %v2311 = vxor.u32 %v2309, 2147483648
  %v2312 = vxor.u32 %v2310, 2147483648
  %v2313 = vmul.f32 %v2311, 1.442695
  %v2314 = vpow.pop %v2313
  %v2315 = vmul.f32 %v2312, 1.442695
  %v2316 = vpow.pop %v2315
  %v2317 = vadd.f32 %v2314, 1.0
  %v2318 = vadd.f32 %v2316, 1.0
  %v2319 = vrcp.pop %v2317
  %v2320 = vmul.f32 1.0, %v2319
  %v2321 = vrcp.pop %v2318
  %v2322 = vmul.f32 1.0, %v2321
  %2325 = vrot.lane.b32.xlu0 %v2301, 64
  %v2326 = vpop.permute.xlu0 %2325
  %2327 = vrot.lane.b32.xlu0 %v2306, 64
  %v2328 = vpop.permute.xlu0 %2327
  %v2331 = vmul.f32 %v2320, %v2326
  %v2332 = vmul.f32 %v2322, %v2328
  %2335 = vrot.lane.b32.xlu0 %v2331, 64
  %v2336 = vpop.permute.xlu0 %2335
  %2337 = vrot.lane.b32.xlu0 %v2332, 64
  %v2338 = vpop.permute.xlu0 %2337
  %v2341 = vadd.f32 %v1665, %v2336
  %v2342 = vadd.f32 %v1666, %v2338
  %v2343 = vtanh.pop %v2341
  %v2344 = vtanh.pop %v2342
  %v2345 = vsub.f32 1.0, %v2320
  %v2346 = vsub.f32 1.0, %v2322
  %2349 = vrot.lane.b32.xlu0 %v2343, 96
  %v2350 = vpop.permute.xlu0 %2349
  %2351 = vrot.lane.b32.xlu0 %v2344, 96
  %v2352 = vpop.permute.xlu0 %2351
  %v2355 = vmul.f32 %v2345, %v2350
  %v2356 = vmul.f32 %v2346, %v2352
  %v2357 = vmul.f32 %v2320, %v2222
  %v2358 = vmul.f32 %v2322, %v2223
  %v2359 = vadd.f32 %v2355, %v2357
  %v2360 = vadd.f32 %v2356, %v2358
  %2363 = vrot.lane.b32.xlu0 %v2359, 96
  %v2364 = vpop.permute.xlu0 %2363
  %2365 = vrot.lane.b32.xlu0 %v2360, 96
  %v2366 = vpop.permute.xlu0 %2365
  %v2367 = vsel %vm1682, %v2364, 0
  %v2369 = vsel %vm1682, %v2366, 0
  %2371 = vmatprep.subr.mxu0 0.0
  %2372 = vmatpush1.msra.mxu0 %v1673
  %2373 = vmatprep.subr.mxu0 0.0
  %2374 = vmatpush1.msra.mxu0 %v1674
  %2375 = vmatprep.subr.mxu0 0.0
  %2376 = vmatpush1.msra.mxu0 %v1675
  %2377 = vmatprep.subr.mxu0 0.0
  %2378 = vmatpush1.msra.mxu0 %v1676
  %2379 = vmatprep.subr.mxu0 0.0
  %2380 = vmatpush1.msra.mxu0 0.0
  %2381 = vmatprep.subr.mxu0 0.0
  %2382 = vmatpush1.msra.mxu0 0.0
  %2383 = vmatprep.subr.mxu0 0.0
  %2384 = vmatpush1.msra.mxu0 0.0
  %2385 = vmatprep.subr.mxu0 0.0
  %2386 = vmatpush1.msra.mxu0 0.0
  %2387 = vmatprep.subr.mxu0 0.0
  %2388 = vmatpush1.msra.mxu0 0.0
  %2389 = vmatprep.subr.mxu0 0.0
  %2390 = vmatpush1.msra.mxu0 0.0
  %2391 = vmatprep.subr.mxu0 0.0
  %2392 = vmatpush1.msra.mxu0 0.0
  %2393 = vmatprep.subr.mxu0 0.0
  %2394 = vmatpush1.msra.mxu0 0.0
  %2395 = vmatprep.subr.mxu0 0.0
  %2396 = vmatpush1.msra.mxu0 0.0
  %2397 = vmatprep.subr.mxu0 0.0
  %2398 = vmatpush1.msra.mxu0 0.0
  %2399 = vmatprep.subr.mxu0 0.0
  %2400 = vmatpush1.msra.mxu0 0.0
  %2401 = vmatprep.subr.mxu0 0.0
  %2402 = vmatpush1.msra.mxu0 0.0
  %2403 = vmatprep.subr.mxu0 0.0
  %2404 = vmatpush1.msra.mxu0 0.0
  %2405 = vmatprep.subr.mxu0 0.0
  %2406 = vmatpush1.msra.mxu0 0.0
  %2407 = vmatprep.subr.mxu0 0.0
  %2408 = vmatpush1.msra.mxu0 0.0
  %2409 = vmatprep.subr.mxu0 0.0
  %2410 = vmatpush1.msra.mxu0 0.0
  %2411 = vmatprep.subr.mxu0 0.0
  %2412 = vmatpush1.msra.mxu0 0.0
  %2413 = vmatprep.subr.mxu0 0.0
  %2414 = vmatpush1.msra.mxu0 0.0
  %2415 = vmatprep.subr.mxu0 0.0
  %2416 = vmatpush1.msra.mxu0 0.0
  %2417 = vmatprep.subr.mxu0 0.0
  %2418 = vmatpush1.msra.mxu0 0.0
  %2419 = vmatprep.subr.mxu0 0.0
  %2420 = vmatpush1.msra.mxu0 0.0
  %2421 = vmatprep.subr.mxu0 0.0
  %2422 = vmatpush1.msra.mxu0 0.0
  %2423 = vmatprep.subr.mxu0 0.0
  %2424 = vmatpush1.msra.mxu0 0.0
  %2425 = vmatprep.subr.mxu0 0.0
  %2426 = vmatpush1.msra.mxu0 0.0
  %2427 = vmatprep.subr.mxu0 0.0
  %2428 = vmatpush1.msra.mxu0 0.0
  %2429 = vmatprep.subr.mxu0 0.0
  %2430 = vmatpush1.msra.mxu0 0.0
  %2431 = vmatprep.subr.mxu0 0.0
  %2432 = vmatpush1.msra.mxu0 0.0
  %2433 = vmatprep.subr.mxu0 0.0
  %2434 = vmatpush1.msra.mxu0 0.0
  %2435 = vmatprep.mubr.f32.mxu0 0.0
  %2436 = vmatmul.mubr.f32.gmra.mrb[0].mxu0 %v2367
  %v2437 = vpop.f32.mrb[0].mxu0
  %v2438 = vadd.f32 %v1681, %v2437
  %v2439 = vpop.f32.mrb[0].mxu0
  %2440 = vmatprep.mubr.f32.mxu0 0.0
  %2441 = vmatmul.mubr.f32.gmra.mrb[0].mxu0 %v2369
  %v2442 = vpop.f32.mrb[0].mxu0
  %v2443 = vadd.f32 %v1681, %v2442
  %v2444 = vpop.f32.mrb[0].mxu0
  %2445 = vdwg.mxu0
  %v2446 = vadd.f32 %v1667, %v2438
  %v2447 = vadd.f32 %v1668, %v2443
  %v2448 = vxor.u32 %v2446, 2147483648
  %v2449 = vxor.u32 %v2447, 2147483648
  %v2450 = vmul.f32 %v2448, 1.442695
  %v2451 = vpow.pop %v2450
  %v2452 = vmul.f32 %v2449, 1.442695
  %v2453 = vpow.pop %v2452
  %v2454 = vadd.f32 %v2451, 1.0
  %v2455 = vadd.f32 %v2453, 1.0
  %v2456 = vrcp.pop %v2454
  %v2457 = vmul.f32 1.0, %v2456
  %v2458 = vrcp.pop %v2455
  %v2459 = vmul.f32 1.0, %v2458
  %2462 = vrot.lane.b32.xlu0 %v2438, 64
  %v2463 = vpop.permute.xlu0 %2462
  %2464 = vrot.lane.b32.xlu0 %v2443, 64
  %v2465 = vpop.permute.xlu0 %2464
  %v2468 = vmul.f32 %v2457, %v2463
  %v2469 = vmul.f32 %v2459, %v2465
  %2472 = vrot.lane.b32.xlu0 %v2468, 64
  %v2473 = vpop.permute.xlu0 %2472
  %2474 = vrot.lane.b32.xlu0 %v2469, 64
  %v2475 = vpop.permute.xlu0 %2474
  %v2478 = vadd.f32 %v1667, %v2473
  %v2479 = vadd.f32 %v1668, %v2475
  %v2480 = vtanh.pop %v2478
  %v2481 = vtanh.pop %v2479
  %v2482 = vsub.f32 1.0, %v2457
  %v2483 = vsub.f32 1.0, %v2459
  %2486 = vrot.lane.b32.xlu0 %v2480, 96
  %v2487 = vpop.permute.xlu0 %2486
  %2488 = vrot.lane.b32.xlu0 %v2481, 96
  %v2489 = vpop.permute.xlu0 %2488
  %v2492 = vmul.f32 %v2482, %v2487
  %v2493 = vmul.f32 %v2483, %v2489
  %v2494 = vmul.f32 %v2457, %v2359
  %v2495 = vmul.f32 %v2459, %v2360
  %v2496 = vadd.f32 %v2492, %v2494
  %v2497 = vadd.f32 %v2493, %v2495
  %2500 = vrot.lane.b32.xlu0 %v2496, 96
  %v2501 = vpop.permute.xlu0 %2500
  %2502 = vrot.lane.b32.xlu0 %v2497, 96
  %v2503 = vpop.permute.xlu0 %2502
  %v2504 = vsel %vm1682, %v2501, 0
  %v2506 = vsel %vm1682, %v2503, 0
  %2508 = vmatprep.subr.mxu0 0.0
  %2509 = vmatpush1.msra.mxu0 %v1673
  %2510 = vmatprep.subr.mxu0 0.0
  %2511 = vmatpush1.msra.mxu0 %v1674
  %2512 = vmatprep.subr.mxu0 0.0
  %2513 = vmatpush1.msra.mxu0 %v1675
  %2514 = vmatprep.subr.mxu0 0.0
  %2515 = vmatpush1.msra.mxu0 %v1676
  %2516 = vmatprep.subr.mxu0 0.0
  %2517 = vmatpush1.msra.mxu0 0.0
  %2518 = vmatprep.subr.mxu0 0.0
  %2519 = vmatpush1.msra.mxu0 0.0
  %2520 = vmatprep.subr.mxu0 0.0
  %2521 = vmatpush1.msra.mxu0 0.0
  %2522 = vmatprep.subr.mxu0 0.0
  %2523 = vmatpush1.msra.mxu0 0.0
  %2524 = vmatprep.subr.mxu0 0.0
  %2525 = vmatpush1.msra.mxu0 0.0
  %2526 = vmatprep.subr.mxu0 0.0
  %2527 = vmatpush1.msra.mxu0 0.0
  %2528 = vmatprep.subr.mxu0 0.0
  %2529 = vmatpush1.msra.mxu0 0.0
  %2530 = vmatprep.subr.mxu0 0.0
  %2531 = vmatpush1.msra.mxu0 0.0
  %2532 = vmatprep.subr.mxu0 0.0
  %2533 = vmatpush1.msra.mxu0 0.0
  %2534 = vmatprep.subr.mxu0 0.0
  %2535 = vmatpush1.msra.mxu0 0.0
  %2536 = vmatprep.subr.mxu0 0.0
  %2537 = vmatpush1.msra.mxu0 0.0
  %2538 = vmatprep.subr.mxu0 0.0
  %2539 = vmatpush1.msra.mxu0 0.0
  %2540 = vmatprep.subr.mxu0 0.0
  %2541 = vmatpush1.msra.mxu0 0.0
  %2542 = vmatprep.subr.mxu0 0.0
  %2543 = vmatpush1.msra.mxu0 0.0
  %2544 = vmatprep.subr.mxu0 0.0
  %2545 = vmatpush1.msra.mxu0 0.0
  %2546 = vmatprep.subr.mxu0 0.0
  %2547 = vmatpush1.msra.mxu0 0.0
  %2548 = vmatprep.subr.mxu0 0.0
  %2549 = vmatpush1.msra.mxu0 0.0
  %2550 = vmatprep.subr.mxu0 0.0
  %2551 = vmatpush1.msra.mxu0 0.0
  %2552 = vmatprep.subr.mxu0 0.0
  %2553 = vmatpush1.msra.mxu0 0.0
  %2554 = vmatprep.subr.mxu0 0.0
  %2555 = vmatpush1.msra.mxu0 0.0
  %2556 = vmatprep.subr.mxu0 0.0
  %2557 = vmatpush1.msra.mxu0 0.0
  %2558 = vmatprep.subr.mxu0 0.0
  %2559 = vmatpush1.msra.mxu0 0.0
  %2560 = vmatprep.subr.mxu0 0.0
  %2561 = vmatpush1.msra.mxu0 0.0
  %2562 = vmatprep.subr.mxu0 0.0
  %2563 = vmatpush1.msra.mxu0 0.0
  %2564 = vmatprep.subr.mxu0 0.0
  %2565 = vmatpush1.msra.mxu0 0.0
  %2566 = vmatprep.subr.mxu0 0.0
  %2567 = vmatpush1.msra.mxu0 0.0
  %2568 = vmatprep.subr.mxu0 0.0
  %2569 = vmatpush1.msra.mxu0 0.0
  %2570 = vmatprep.subr.mxu0 0.0
  %2571 = vmatpush1.msra.mxu0 0.0
  %2572 = vmatprep.mubr.f32.mxu0 0.0
  %2573 = vmatmul.mubr.f32.gmra.mrb[0].mxu0 %v2504
  %v2574 = vpop.f32.mrb[0].mxu0
  %v2575 = vadd.f32 %v1681, %v2574
  %v2576 = vpop.f32.mrb[0].mxu0
  %2577 = vmatprep.mubr.f32.mxu0 0.0
  %2578 = vmatmul.mubr.f32.gmra.mrb[0].mxu0 %v2506
  %v2579 = vpop.f32.mrb[0].mxu0
  %v2580 = vadd.f32 %v1681, %v2579
  %v2581 = vpop.f32.mrb[0].mxu0
  %2582 = vdwg.mxu0
  %v2583 = vadd.f32 %v1669, %v2575
  %v2584 = vadd.f32 %v1670, %v2580
  %v2585 = vxor.u32 %v2583, 2147483648
  %v2586 = vxor.u32 %v2584, 2147483648
  %v2587 = vmul.f32 %v2585, 1.442695
  %v2588 = vpow.pop %v2587
  %v2589 = vmul.f32 %v2586, 1.442695
  %v2590 = vpow.pop %v2589
  %v2591 = vadd.f32 %v2588, 1.0
  %v2592 = vadd.f32 %v2590, 1.0
  %v2593 = vrcp.pop %v2591
  %v2594 = vmul.f32 1.0, %v2593
  %v2595 = vrcp.pop %v2592
  %v2596 = vmul.f32 1.0, %v2595
  %2599 = vrot.lane.b32.xlu0 %v2575, 64
  %v2600 = vpop.permute.xlu0 %2599
  %2601 = vrot.lane.b32.xlu0 %v2580, 64
  %v2602 = vpop.permute.xlu0 %2601
  %v2605 = vmul.f32 %v2594, %v2600
  %v2606 = vmul.f32 %v2596, %v2602
  %2609 = vrot.lane.b32.xlu0 %v2605, 64
  %v2610 = vpop.permute.xlu0 %2609
  %2611 = vrot.lane.b32.xlu0 %v2606, 64
  %v2612 = vpop.permute.xlu0 %2611
  %v2615 = vadd.f32 %v1669, %v2610
  %v2616 = vadd.f32 %v1670, %v2612
  %v2617 = vtanh.pop %v2615
  %v2618 = vtanh.pop %v2616
  %v2619 = vsub.f32 1.0, %v2594
  %v2620 = vsub.f32 1.0, %v2596
  %2623 = vrot.lane.b32.xlu0 %v2617, 96
  %v2624 = vpop.permute.xlu0 %2623
  %2625 = vrot.lane.b32.xlu0 %v2618, 96
  %v2626 = vpop.permute.xlu0 %2625
  %v2629 = vmul.f32 %v2619, %v2624
  %v2630 = vmul.f32 %v2620, %v2626
  %v2631 = vmul.f32 %v2594, %v2496
  %v2632 = vmul.f32 %v2596, %v2497
  %v2633 = vadd.f32 %v2629, %v2631
  %v2634 = vadd.f32 %v2630, %v2632
  %2637 = vrot.lane.b32.xlu0 %v2633, 96
  %v2638 = vpop.permute.xlu0 %2637
  %2639 = vrot.lane.b32.xlu0 %v2634, 96
  %v2640 = vpop.permute.xlu0 %2639
  %v2641 = vsel %vm1682, %v2638, 0
  %v2643 = vsel %vm1682, %v2640, 0
  %2645 = vmatprep.subr.mxu0 0.0
  %2646 = vmatpush1.msra.mxu0 %v1673
  %2647 = vmatprep.subr.mxu0 0.0
  %2648 = vmatpush1.msra.mxu0 %v1674
  %2649 = vmatprep.subr.mxu0 0.0
  %2650 = vmatpush1.msra.mxu0 %v1675
  %2651 = vmatprep.subr.mxu0 0.0
  %2652 = vmatpush1.msra.mxu0 %v1676
  %2653 = vmatprep.subr.mxu0 0.0
  %2654 = vmatpush1.msra.mxu0 0.0
  %2655 = vmatprep.subr.mxu0 0.0
  %2656 = vmatpush1.msra.mxu0 0.0
  %2657 = vmatprep.subr.mxu0 0.0
  %2658 = vmatpush1.msra.mxu0 0.0
  %2659 = vmatprep.subr.mxu0 0.0
  %2660 = vmatpush1.msra.mxu0 0.0
  %2661 = vmatprep.subr.mxu0 0.0
  %2662 = vmatpush1.msra.mxu0 0.0
  %2663 = vmatprep.subr.mxu0 0.0
  %2664 = vmatpush1.msra.mxu0 0.0
  %2665 = vmatprep.subr.mxu0 0.0
  %2666 = vmatpush1.msra.mxu0 0.0
  %2667 = vmatprep.subr.mxu0 0.0
  %2668 = vmatpush1.msra.mxu0 0.0
  %2669 = vmatprep.subr.mxu0 0.0
  %2670 = vmatpush1.msra.mxu0 0.0
  %2671 = vmatprep.subr.mxu0 0.0
  %2672 = vmatpush1.msra.mxu0 0.0
  %2673 = vmatprep.subr.mxu0 0.0
  %2674 = vmatpush1.msra.mxu0 0.0
  %2675 = vmatprep.subr.mxu0 0.0
  %2676 = vmatpush1.msra.mxu0 0.0
  %2677 = vmatprep.subr.mxu0 0.0
  %2678 = vmatpush1.msra.mxu0 0.0
  %2679 = vmatprep.subr.mxu0 0.0
  %2680 = vmatpush1.msra.mxu0 0.0
  %2681 = vmatprep.subr.mxu0 0.0
  %2682 = vmatpush1.msra.mxu0 0.0
  %2683 = vmatprep.subr.mxu0 0.0
  %2684 = vmatpush1.msra.mxu0 0.0
  %2685 = vmatprep.subr.mxu0 0.0
  %2686 = vmatpush1.msra.mxu0 0.0
  %2687 = vmatprep.subr.mxu0 0.0
  %2688 = vmatpush1.msra.mxu0 0.0
  %2689 = vmatprep.subr.mxu0 0.0
  %2690 = vmatpush1.msra.mxu0 0.0
  %2691 = vmatprep.subr.mxu0 0.0
  %2692 = vmatpush1.msra.mxu0 0.0
  %2693 = vmatprep.subr.mxu0 0.0
  %2694 = vmatpush1.msra.mxu0 0.0
  %2695 = vmatprep.subr.mxu0 0.0
  %2696 = vmatpush1.msra.mxu0 0.0
  %2697 = vmatprep.subr.mxu0 0.0
  %2698 = vmatpush1.msra.mxu0 0.0
  %2699 = vmatprep.subr.mxu0 0.0
  %2700 = vmatpush1.msra.mxu0 0.0
  %2701 = vmatprep.subr.mxu0 0.0
  %2702 = vmatpush1.msra.mxu0 0.0
  %2703 = vmatprep.subr.mxu0 0.0
  %2704 = vmatpush1.msra.mxu0 0.0
  %2705 = vmatprep.subr.mxu0 0.0
  %2706 = vmatpush1.msra.mxu0 0.0
  %2707 = vmatprep.subr.mxu0 0.0
  %2708 = vmatpush1.msra.mxu0 0.0
  %2709 = vmatprep.mubr.f32.mxu0 0.0
  %2710 = vmatmul.mubr.f32.gmra.mrb[0].mxu0 %v2641
  %v2711 = vpop.f32.mrb[0].mxu0
  %v2712 = vadd.f32 %v1681, %v2711
  %v2713 = vpop.f32.mrb[0].mxu0
  %2714 = vmatprep.mubr.f32.mxu0 0.0
  %2715 = vmatmul.mubr.f32.gmra.mrb[0].mxu0 %v2643
  %v2716 = vpop.f32.mrb[0].mxu0
  %v2717 = vadd.f32 %v1681, %v2716
  %v2718 = vpop.f32.mrb[0].mxu0
  %2719 = vdwg.mxu0
  %v2720 = vadd.f32 %v1671, %v2712
  %v2721 = vadd.f32 %v1672, %v2717
  %v2722 = vxor.u32 %v2720, 2147483648
  %v2723 = vxor.u32 %v2721, 2147483648
  %v2724 = vmul.f32 %v2722, 1.442695
  %v2725 = vpow.pop %v2724
  %v2726 = vmul.f32 %v2723, 1.442695
  %v2727 = vpow.pop %v2726
  %v2728 = vadd.f32 %v2725, 1.0
  %v2729 = vadd.f32 %v2727, 1.0
  %v2730 = vrcp.pop %v2728
  %v2731 = vmul.f32 1.0, %v2730
  %v2732 = vrcp.pop %v2729
  %v2733 = vmul.f32 1.0, %v2732
  %2736 = vrot.lane.b32.xlu0 %v2712, 64
  %v2737 = vpop.permute.xlu0 %2736
  %2738 = vrot.lane.b32.xlu0 %v2717, 64
  %v2739 = vpop.permute.xlu0 %2738
  %v2742 = vmul.f32 %v2731, %v2737
  %v2743 = vmul.f32 %v2733, %v2739
  %2746 = vrot.lane.b32.xlu0 %v2742, 64
  %v2747 = vpop.permute.xlu0 %2746
  %2748 = vrot.lane.b32.xlu0 %v2743, 64
  %v2749 = vpop.permute.xlu0 %2748
  %v2752 = vadd.f32 %v1671, %v2747
  %v2753 = vadd.f32 %v1672, %v2749
  %v2754 = vtanh.pop %v2752
  %v2755 = vtanh.pop %v2753
  %v2756 = vsub.f32 1.0, %v2731
  %v2757 = vsub.f32 1.0, %v2733
  %2760 = vrot.lane.b32.xlu0 %v2754, 96
  %v2761 = vpop.permute.xlu0 %2760
  %2762 = vrot.lane.b32.xlu0 %v2755, 96
  %v2763 = vpop.permute.xlu0 %2762
  %v2766 = vmul.f32 %v2756, %v2761
  %v2767 = vmul.f32 %v2757, %v2763
  %v2768 = vmul.f32 %v2731, %v2633
  %v2769 = vmul.f32 %v2733, %v2634
  %v2770 = vadd.f32 %v2766, %v2768
  %v2771 = vadd.f32 %v2767, %v2769
  %2774 = vrot.lane.b32.xlu0 %v2085, 32
  %v2775 = vpop.permute.xlu0 %2774
  %2776 = vrot.lane.b32.xlu0 %v2086, 32
  %v2777 = vpop.permute.xlu0 %2776
  %2780 = vrot.lane.b32.xlu0 %v2222, 64
  %v2781 = vpop.permute.xlu0 %2780
  %2782 = vrot.lane.b32.xlu0 %v2223, 64
  %v2783 = vpop.permute.xlu0 %2782
  %2788 = vrot.lane.b32.xlu0 %v2633, 32
  %v2789 = vpop.permute.xlu0 %2788
  %2790 = vrot.lane.b32.xlu0 %v2634, 32
  %v2791 = vpop.permute.xlu0 %2790
  %2796 = vrot.lane.b32.xlu0 %v2770, 64
  %v2797 = vpop.permute.xlu0 %2796
  %2798 = vrot.lane.b32.xlu0 %v2771, 64
  %v2799 = vpop.permute.xlu0 %2798
  %v2802 = vsel %vm1682, %v1816, %v1948
  %v2803 = vsel %vm1682, %v1818, %v1949
  %vm2804 = vcmask 523264
  %v2805 = vsel %vm2804, %v2802, %v2775
  %v2806 = vsel %vm2804, %v2803, %v2777
  %vm2807 = vcmask 785408
  %v2808 = vsel %vm2807, %v2805, %v2781
  %v2809 = vsel %vm2807, %v2806, %v2783
  %v2810 = vsel %vm1682, %v2364, %v2496
  %v2811 = vsel %vm1682, %v2366, %v2497
  %v2812 = vsel %vm2804, %v2810, %v2789
  %v2813 = vsel %vm2804, %v2811, %v2791
  %v2814 = vsel %vm2807, %v2812, %v2797
  %v2815 = vsel %vm2807, %v2813, %v2799
  %2816 = vst [vmem:[%s5] sm:$0xff] %v2808
  %2817 = vst [vmem:[%s5 + $0x8] sm:$0xff] %v2814
  %2818 = vst [vmem:[%s5 + $0x10] sm:$0xff] %v2809
  %2819 = vst [vmem:[%s5 + $0x18] sm:$0xff] %v2815
  // Predicated region
  $region22: #{st_block_forward.1} parent=0 // pred_check
    _
  $region23: #{st_block_forward.1} parent=0 // pred_check_branch
    %2821 = sbr.rel (0) target = $region25
  $region24: #{st_block_forward.1} parent=0 // pred_region
    _
  $region25: #{st_block_forward.1} parent=0 // pred_fallthru
    _
  // Predicated region
  $region26: #{st_block_forward.1} parent=0 // pred_check
    _
  $region27: #{st_block_forward.1} parent=0 // pred_check_branch
    %2823 = sbr.rel (0) target = $region29
  $region28: #{st_block_forward.1} parent=0 // pred_region
    _
  $region29: #{st_block_forward.1} parent=0 // pred_fallthru
    _

</llo_original>
